<compile_context>
chip_gen: v7x
topology: tpu7x:2x2x1
jax: 0.10.0
libtpu: 0.0.40
codegen_flags: <defaults>
</compile_context>

<pallas_src>
import functools

import jax
import jax.numpy as jnp
from jax import lax
from jax.experimental import pallas as pl
from jax.experimental.pallas import tpu as pltpu


def _sigmoid(x):
    # exp on the EUP + approx reciprocal keeps the divide off the VALU.
    # NOTE: approx=True is ~1e-3-level vs torch.sigmoid; switch to approx=False
    # if bit-tight parity with the PyTorch module is required.
    return pl.reciprocal(1.0 + jnp.exp(-x), approx=True)


def _rmsnorm(x, w, eps):
    var = jnp.mean(x * x, axis=-1, keepdims=True)
    return x * lax.rsqrt(var + eps) * w


def _mamba_enc_kernel(
    x_ref,                          # (T, Bb, input_dim) f32
    embw_ref, embb_ref,             # (D, input_dim) bf16, (1, D) f32
    normw_ref,                      # (1, 1, D) f32        per-layer RMSNorm weight
    win_ref,                        # (1, 2*d_inner, D) bf16   fused in_proj (x | z)
    wconv_ref, bconv_ref,           # (1, d_conv, d_inner), (1, 1, d_inner) f32
    wxp_ref,                        # (1, dt_rank+2*d_state, d_inner) bf16 fused x_proj
    wdt_ref, bdt_ref,               # (1, d_inner, dt_rank) bf16, (1, 1, d_inner) f32
    aneg_ref, dvec_ref,             # (1, d_state, d_inner), (1, 1, d_inner) f32
    wout_ref,                       # (1, D, d_inner) bf16
    normf_ref, wdec_ref, bdec_ref,  # (1, D) f32, (repr_dim, D) bf16, (1, repr_dim) f32
    out_ref,                        # (T, Bb, repr_dim) f32
    hid_scr, res_scr,               # (T, Bb, D) f32        cross-layer carries
    conv_scr,                       # (T+d_conv-1, Bb, d_inner) f32  zero-padded conv buf
    delta_scr, dx_scr,              # (T, Bb, d_inner) f32  scan inputs (time-major)
    b_scr, c_scr,                   # (T, Bb, d_state) f32
    y_scr,                          # (T, Bb, d_inner) f32  scan output
    *, T, Bb, d_inner, d_state, d_conv, dt_rank, eps, scan_unroll,
):
    # NOTE: the hid/res carry is only correct because the layer axis is the
    # innermost grid axis ("arbitrary") and is re-initialized at l == 0; do not
    # reorder the grid or mark the layer axis parallel.
    cdims = (((1,), (1,)), ((), ()))        # contract last dims of both (x @ W.T)
    f32 = jnp.float32
    M = T * Bb
    D = hid_scr.shape[-1]
    R = out_ref.shape[-1]
    l = pl.program_id(1)
    last_l = pl.num_programs(1) - 1

    def mxu(x, w):                          # bf16 operands, f32 accumulate
        return lax.dot_general(x.astype(jnp.bfloat16), w, cdims,
                               preferred_element_type=f32)

    # ---- layer-0 prologue (once per batch block): embed + residual init ------
    @pl.when(l == 0)
    def _():
        x2 = x_ref[...].reshape(M, x_ref.shape[-1])
        emb = mxu(x2, embw_ref[...]) + embb_ref[...]
        hid_scr[...] = emb.reshape(T, Bb, D)
        res_scr[...] = jnp.zeros((T, Bb, D), f32)

    # ---- Block: residual add + RMSNorm ---------------------------------------
    residual = hid_scr[...] + res_scr[...]
    res_scr[...] = residual
    normed = _rmsnorm(residual, normw_ref[0], eps)                  # (T, Bb, D)

    # ---- fused in_proj (x | z): one MXU pass ----------------------------------
    xz = mxu(normed.reshape(M, D), win_ref[0])                      # (M, 2*d_inner) f32
    x_part = xz[:, :d_inner]
    z = xz[:, d_inner:]

    # ---- causal depthwise conv: zero-padded time-major buffer, static slices --
    PAD = d_conv - 1
    conv_scr[pl.ds(0, PAD), :, :] = jnp.zeros((PAD, Bb, d_inner), f32)
    conv_scr[pl.ds(PAD, T), :, :] = x_part.reshape(T, Bb, d_inner)
    wconv = wconv_ref[0]                                            # (d_conv, d_inner)
    conv = jnp.zeros((T, Bb, d_inner), f32)
    for k in range(d_conv):                 # buffer row (k + t) == x[t - (d_conv-1-k)]
        tap = wconv[k:k + 1, :].reshape(1, 1, d_inner)
        conv = conv + tap * conv_scr[pl.ds(k, T), :, :]
    conv = conv + bconv_ref[0].reshape(1, 1, d_inner)
    x_act = conv * _sigmoid(conv)                                   # SiLU

    # ---- fused x_proj (dt | B | C) + dt_proj + softplus -----------------------
    xa2 = x_act.reshape(M, d_inner)
    dbc = mxu(xa2, wxp_ref[0])                                      # (M, r + 2S)
    dpre = mxu(dbc[:, :dt_rank], wdt_ref[0]) + bdt_ref[0]           # (M, d_inner)
    delta = jnp.where(dpre > 30.0, dpre, jnp.log(1.0 + jnp.exp(dpre)))   # softplus

    # scan inputs -> time-major scratch (leading-dim indexed inside the loop)
    delta_scr[...] = delta.reshape(T, Bb, d_inner)
    dx_scr[...] = (delta * xa2).reshape(T, Bb, d_inner)
    b_scr[...] = dbc[:, dt_rank:dt_rank + d_state].reshape(T, Bb, d_state)
    c_scr[...] = dbc[:, dt_rank + d_state:].reshape(T, Bb, d_state)

    # ---- selective scan: fori_loop over T (unrolled by 8), y folded per step --
    # No (T, d_state, d_inner) history: only the state and one y row live per step.
    A_neg = aneg_ref[0]                                             # (d_state, d_inner)

    def step(t, h):
        dA = jnp.exp(delta_scr[t][:, None, :] * A_neg[None, :, :])  # (Bb, S, d_inner)
        h = dA * h + b_scr[t][:, :, None] * dx_scr[t][:, None, :]
        y_scr[t] = jnp.sum(c_scr[t][:, :, None] * h, axis=1)        # (Bb, d_inner)
        return h

    lax.fori_loop(0, T, step, jnp.zeros((Bb, d_state, d_inner), f32),
                  unroll=scan_unroll)

    # ---- D skip + SiLU(z) gate + out_proj -------------------------------------
    y = y_scr[...].reshape(M, d_inner) + dvec_ref[0] * xa2
    y = y * (z * _sigmoid(z))
    out = mxu(y, wout_ref[0]).reshape(T, Bb, D)

    @pl.when(l != last_l)
    def _():
        hid_scr[...] = out

    # ---- last-layer epilogue: final add + norm_f + decoder --------------------
    @pl.when(l == last_l)
    def _():
        res_f = out + res_scr[...]
        normed_f = _rmsnorm(res_f, normf_ref[...], eps)
        dec = mxu(normed_f.reshape(M, D), wdec_ref[...]) + bdec_ref[...]
        out_ref[...] = dec.reshape(T, Bb, R)


# -----------------------------------------------------------------------------
# Wrapper: one pallas_call for the whole MambaEnc forward
# -----------------------------------------------------------------------------
def mamba_enc_forward(x, params, cfg, *, block_b=None):
    B, T, C, H, W = x.shape
    in_dim = C * H * W
    D = cfg["model_dim"]
    R = cfg["repr_dim"]
    d_state, d_conv, eps = cfg["d_state"], cfg["d_conv"], cfg["eps"]

    Ls = params["layers_stacked"]
    nlayers = Ls["norm_w"].shape[0]
    d_inner = Ls["w_in"].shape[1] // 2
    dt_rank = Ls["w_dt"].shape[2]

    if block_b is None:
        # (T, Bb, feat) blocks need Bb == B or Bb % 8 == 0 (sublane constraint).
        # Tune Bb down when T*d_inner activations approach the VMEM budget; on
        # v7x keep B // block_b >= 2 so both TensorCores get work.
        block_b = 8 if (B % 8 == 0) else B
    assert B % block_b == 0

    # time-major activations (T, B, feat): features stay on lanes, the causal
    # conv / scan index the untiled leading time dim (full-tile row access).
    x_tm = jnp.transpose(x.reshape(B, T, in_dim).astype(jnp.float32), (1, 0, 2))

    # MXU operands in bf16 (halves weight DMA / VMEM, native MXU rate); small
    # per-channel params and the residual/scan math stay f32.
    bf16 = jnp.bfloat16
    embw = params["embed_w"].astype(bf16)
    wdec = params["dec_w"].astype(bf16)
    w_in = Ls["w_in"].astype(bf16)
    w_xp = Ls["w_xp"].astype(bf16)
    w_dt = Ls["w_dt"].astype(bf16)
    w_out = Ls["w_out"].astype(bf16)
    a_neg = -jnp.exp(Ls["alogT"].astype(jnp.float32))   # hoisted out of the kernel

    embb = params["embed_b"].reshape(1, D).astype(jnp.float32)
    normf = params["norm_f_w"].reshape(1, D).astype(jnp.float32)
    decb = params["dec_b"].reshape(1, R).astype(jnp.float32)

    kernel = functools.partial(
        _mamba_enc_kernel, T=T, Bb=block_b, d_inner=d_inner, d_state=d_state,
        d_conv=d_conv, dt_rank=dt_rank, eps=eps, scan_unroll=min(8, T))

    def shared(a):                      # whole array, block index constant
        # NOTE: on v7x consider pipeline_mode=pl.Buffered(1) here to halve the
        # VMEM footprint of these constant-index inputs.
        n = a.ndim
        return pl.BlockSpec(a.shape, lambda b, l, n=n: (0,) * n)

    def stacked(a):                     # per-layer slab of a stacked weight
        n = a.ndim - 1
        return pl.BlockSpec((1,) + a.shape[1:], lambda b, l, n=n: (l,) + (0,) * n)

    x_spec = pl.BlockSpec((T, block_b, in_dim), lambda b, l: (0, b, 0))
    out_spec = pl.BlockSpec((T, block_b, R), lambda b, l: (0, b, 0))

    args = (
        x_tm, embw, embb,
        Ls["norm_w"], w_in, Ls["w_conv"], Ls["b_conv"],
        w_xp, w_dt, Ls["b_dt"], a_neg, Ls["Dvec"], w_out,
        normf, wdec, decb,
    )
    in_specs = [
        x_spec, shared(embw), shared(embb),
        stacked(Ls["norm_w"]), stacked(w_in), stacked(Ls["w_conv"]),
        stacked(Ls["b_conv"]), stacked(w_xp), stacked(w_dt),
        stacked(Ls["b_dt"]), stacked(a_neg), stacked(Ls["Dvec"]),
        stacked(w_out),
        shared(normf), shared(wdec), shared(decb),
    ]

    out_tm = pl.pallas_call(
        kernel,
        out_shape=jax.ShapeDtypeStruct((T, B, R), jnp.float32),
        grid_spec=pltpu.PrefetchScalarGridSpec(
            num_scalar_prefetch=0,
            grid=(B // block_b, nlayers),           # batch blocks outer, layers inner
            in_specs=in_specs,
            out_specs=out_spec,
            scratch_shapes=[
                pltpu.VMEM((T, block_b, D), jnp.float32),                 # hid carry
                pltpu.VMEM((T, block_b, D), jnp.float32),                 # residual carry
                pltpu.VMEM((T + d_conv - 1, block_b, d_inner), jnp.float32),  # conv pad buf
                pltpu.VMEM((T, block_b, d_inner), jnp.float32),           # delta
                pltpu.VMEM((T, block_b, d_inner), jnp.float32),           # delta * x
                pltpu.VMEM((T, block_b, d_state), jnp.float32),           # B
                pltpu.VMEM((T, block_b, d_state), jnp.float32),           # C
                pltpu.VMEM((T, block_b, d_inner), jnp.float32),           # y
            ],
        ),
        compiler_params=pltpu.CompilerParams(
            dimension_semantics=("parallel", "arbitrary"),
            # Re-derive against the per-TC budget per generation (v7x: 64 MiB phys).
            vmem_limit_bytes=64 * 1024 * 1024,
        ),
    )(*args)

    return jnp.transpose(out_tm, (1, 0, 2))        # back to (B, T, repr_dim)


# -----------------------------------------------------------------------------
# Deterministic parameter init (synthetic; shapes follow the module __init__)
# -----------------------------------------------------------------------------
def init_params(key, *, input_dim, model_dim, repr_dim, nlayers,
                d_state, d_conv, expand, dt_rank):
    d_inner = expand * model_dim
    keys = jax.random.split(key, 4 + nlayers)

    def nrm(k, shape, scale=0.02):
        return (scale * jax.random.normal(k, shape)).astype(jnp.float32)

    params = {
        "embed_w": nrm(keys[0], (model_dim, input_dim)),
        "embed_b": nrm(keys[1], (model_dim,)),
        "dec_w": nrm(keys[2], (repr_dim, model_dim)),
        "dec_b": nrm(keys[3], (repr_dim,)),
        "norm_f_w": jnp.ones((model_dim,), jnp.float32),
    }

    per_layer = []
    for i in range(nlayers):
        lk = jax.random.split(keys[4 + i], 10)
        # S4D-real A init: A_log[c, s] = log(s+1); stored pre-transposed (d_state, d_inner)
        alogT = (jnp.log(jnp.arange(1, d_state + 1, dtype=jnp.float32))[:, None]
                 * jnp.ones((1, d_inner), jnp.float32))
        per_layer.append({
            "norm_w": jnp.ones((1, model_dim), jnp.float32),
            # in_proj (x | z) concatenated: (2*d_inner, D)
            "w_in": jnp.concatenate([nrm(lk[0], (d_inner, model_dim)),
                                     nrm(lk[1], (d_inner, model_dim))], axis=0),
            "w_conv": nrm(lk[2], (d_conv, d_inner), 0.1),     # depthwise conv taps
            "b_conv": nrm(lk[3], (1, d_inner), 0.1),
            # x_proj (dt | B | C) concatenated: (dt_rank + 2*d_state, d_inner)
            "w_xp": jnp.concatenate([nrm(lk[4], (dt_rank, d_inner), 0.1),
                                     nrm(lk[5], (d_state, d_inner), 0.1),
                                     nrm(lk[6], (d_state, d_inner), 0.1)], axis=0),
            "w_dt": nrm(lk[7], (d_inner, dt_rank), 0.1),
            "b_dt": nrm(lk[8], (1, d_inner), 0.1),
            "alogT": alogT,
            "Dvec": jnp.ones((1, d_inner), jnp.float32),
            "w_out": nrm(lk[9], (model_dim, d_inner)),
        })
    params["layers_stacked"] = {
        k: jnp.stack([layer[k] for layer in per_layer], axis=0)
        for k in per_layer[0]
    }
    return params


if __name__ == "__main__":
    # small shapes consistent with the forward: x is (B, L, C, H, W)
    B, T, C, H, W = 2, 8, 4, 4, 4
    model_dim, repr_dim = 32, 16
    nlayers, d_state, d_conv, expand = 2, 16, 4, 2
    dt_rank = max(1, -(-model_dim // 16))  # ceil(model_dim / 16) = 2

    key = jax.random.PRNGKey(0)
    kx, kp = jax.random.split(key)
    x = jax.random.normal(kx, (B, T, C, H, W), dtype=jnp.float32)

    params = init_params(
        kp, input_dim=C * H * W, model_dim=model_dim, repr_dim=repr_dim,
        nlayers=nlayers, d_state=d_state, d_conv=d_conv, expand=expand,
        dt_rank=dt_rank,
    )
    cfg = {"model_dim": model_dim, "repr_dim": repr_dim,
           "d_state": d_state, "d_conv": d_conv, "eps": 1e-5}

    out = mamba_enc_forward(x, params, cfg)
    out = jax.block_until_ready(out)
    assert out.shape == (B, T, repr_dim)
    assert bool(jnp.all(jnp.isfinite(out)))
    print("KERNEL_OK")
</pallas_src>

<mosaic_0001>
module attributes {stable_mosaic.version = 11 : i64} {
  func.func @_mamba_enc_kernel(%arg0: i32, %arg1: i32, %arg2: memref<8x2x64xf32, #tpu.memory_space<vmem>>, %arg3: memref<32x64xbf16, #tpu.memory_space<vmem>>, %arg4: memref<1x32xf32, #tpu.memory_space<vmem>>, %arg5: memref<1x1x32xf32, #tpu.memory_space<vmem>>, %arg6: memref<1x128x32xbf16, #tpu.memory_space<vmem>>, %arg7: memref<1x4x64xf32, #tpu.memory_space<vmem>>, %arg8: memref<1x1x64xf32, #tpu.memory_space<vmem>>, %arg9: memref<1x34x64xbf16, #tpu.memory_space<vmem>>, %arg10: memref<1x64x2xbf16, #tpu.memory_space<vmem>>, %arg11: memref<1x1x64xf32, #tpu.memory_space<vmem>>, %arg12: memref<1x16x64xf32, #tpu.memory_space<vmem>>, %arg13: memref<1x1x64xf32, #tpu.memory_space<vmem>>, %arg14: memref<1x32x64xbf16, #tpu.memory_space<vmem>>, %arg15: memref<1x32xf32, #tpu.memory_space<vmem>>, %arg16: memref<16x32xbf16, #tpu.memory_space<vmem>>, %arg17: memref<1x16xf32, #tpu.memory_space<vmem>>, %arg18: memref<8x2x16xf32, #tpu.memory_space<vmem>>, %arg19: memref<8x2x32xf32, #tpu.memory_space<vmem>>, %arg20: memref<8x2x32xf32, #tpu.memory_space<vmem>>, %arg21: memref<11x2x64xf32, #tpu.memory_space<vmem>>, %arg22: memref<8x2x64xf32, #tpu.memory_space<vmem>>, %arg23: memref<8x2x64xf32, #tpu.memory_space<vmem>>, %arg24: memref<8x2x16xf32, #tpu.memory_space<vmem>>, %arg25: memref<8x2x16xf32, #tpu.memory_space<vmem>>, %arg26: memref<8x2x64xf32, #tpu.memory_space<vmem>>) attributes {dimension_semantics = [#tpu.dimension_semantics<parallel>, #tpu.dimension_semantics<arbitrary>], iteration_bounds = array<i64: 1, 2>, scalar_prefetch = 0 : i64, scratch_operands = 8 : i64, tpu.core_type = #tpu.core_type<tc>, window_params = [{transform_indices = @transform_0, window_bounds = array<i64: 8, 2, 64>}, {pipeline_mode = #tpu.pipeline_mode<synchronous>, transform_indices = @transform_1, window_bounds = array<i64: 32, 64>}, {pipeline_mode = #tpu.pipeline_mode<synchronous>, transform_indices = @transform_2, window_bounds = array<i64: 1, 32>}, {transform_indices = @transform_3, window_bounds = array<i64: 1, 1, 32>}, {transform_indices = @transform_4, window_bounds = array<i64: 1, 128, 32>}, {transform_indices = @transform_5, window_bounds = array<i64: 1, 4, 64>}, {transform_indices = @transform_6, window_bounds = array<i64: 1, 1, 64>}, {transform_indices = @transform_7, window_bounds = array<i64: 1, 34, 64>}, {transform_indices = @transform_8, window_bounds = array<i64: 1, 64, 2>}, {transform_indices = @transform_9, window_bounds = array<i64: 1, 1, 64>}, {transform_indices = @transform_10, window_bounds = array<i64: 1, 16, 64>}, {transform_indices = @transform_11, window_bounds = array<i64: 1, 1, 64>}, {transform_indices = @transform_12, window_bounds = array<i64: 1, 32, 64>}, {pipeline_mode = #tpu.pipeline_mode<synchronous>, transform_indices = @transform_13, window_bounds = array<i64: 1, 32>}, {pipeline_mode = #tpu.pipeline_mode<synchronous>, transform_indices = @transform_14, window_bounds = array<i64: 16, 32>}, {pipeline_mode = #tpu.pipeline_mode<synchronous>, transform_indices = @transform_15, window_bounds = array<i64: 1, 16>}, {transform_indices = @transform_16, window_bounds = array<i64: 8, 2, 16>}]} {
    %c0_i32 = arith.constant 0 : i32
    %0 = arith.cmpi eq, %arg1, %c0_i32 : i32
    %1 = arith.extui %0 : i1 to i32
    %c0_i32_0 = arith.constant 0 : i32
    %2 = arith.cmpi ne, %1, %c0_i32_0 : i32
    scf.if %2 {
      %c0_177 = arith.constant 0 : index
      %c0_178 = arith.constant 0 : index
      %c0_179 = arith.constant 0 : index
      %397 = vector.load %arg2[%c0_177, %c0_178, %c0_179] : memref<8x2x64xf32, #tpu.memory_space<vmem>>, vector<8x2x64xf32>
      %398 = vector.shape_cast %397 : vector<8x2x64xf32> to vector<16x64xf32>
      %c0_180 = arith.constant 0 : index
      %c0_181 = arith.constant 0 : index
      %399 = vector.load %arg3[%c0_180, %c0_181] : memref<32x64xbf16, #tpu.memory_space<vmem>>, vector<32x64xbf16>
      %400 = arith.truncf %398 : vector<16x64xf32> to vector<16x64xbf16>
      %cst_182 = arith.constant dense<0.000000e+00> : vector<16x32xf32>
      %401 = tpu.matmul %400, %399, %cst_182 {dimension_numbers = #tpu.dot_dimension_numbers<[1], [1], [0], [0], [0, 0, 1, 0], [], []>} : vector<16x64xbf16>, vector<32x64xbf16>, vector<16x32xf32> -> vector<16x32xf32>
      %c0_183 = arith.constant 0 : index
      %c0_184 = arith.constant 0 : index
      %402 = vector.load %arg4[%c0_183, %c0_184] : memref<1x32xf32, #tpu.memory_space<vmem>>, vector<1x32xf32>
      %403 = vector.broadcast %402 : vector<1x32xf32> to vector<16x32xf32>
      %404 = arith.addf %401, %403 : vector<16x32xf32>
      %405 = vector.shape_cast %404 : vector<16x32xf32> to vector<8x2x32xf32>
      %c0_185 = arith.constant 0 : index
      %c0_186 = arith.constant 0 : index
      %c0_187 = arith.constant 0 : index
      %406 = vector.load %arg19[%c0_185, %c0_186, %c0_187] : memref<8x2x32xf32, #tpu.memory_space<vmem>>, vector<8x2x32xf32>
      tpu.vector_store %arg19[%c0_185, %c0_186, %c0_187], %405 {strides = array<i32>} : memref<8x2x32xf32, #tpu.memory_space<vmem>>, vector<8x2x32xf32>,
      %cst_188 = arith.constant 0.000000e+00 : f32
      %407 = vector.broadcast %cst_188 : f32 to vector<8x2x32xf32>
      %c0_189 = arith.constant 0 : index
      %c0_190 = arith.constant 0 : index
      %c0_191 = arith.constant 0 : index
      %408 = vector.load %arg20[%c0_189, %c0_190, %c0_191] : memref<8x2x32xf32, #tpu.memory_space<vmem>>, vector<8x2x32xf32>
      tpu.vector_store %arg20[%c0_189, %c0_190, %c0_191], %407 {strides = array<i32>} : memref<8x2x32xf32, #tpu.memory_space<vmem>>, vector<8x2x32xf32>,
    } else {
    }
    %c0 = arith.constant 0 : index
    %c0_1 = arith.constant 0 : index
    %c0_2 = arith.constant 0 : index
    %3 = vector.load %arg19[%c0, %c0_1, %c0_2] : memref<8x2x32xf32, #tpu.memory_space<vmem>>, vector<8x2x32xf32>
    %c0_3 = arith.constant 0 : index
    %c0_4 = arith.constant 0 : index
    %c0_5 = arith.constant 0 : index
    %4 = vector.load %arg20[%c0_3, %c0_4, %c0_5] : memref<8x2x32xf32, #tpu.memory_space<vmem>>, vector<8x2x32xf32>
    %5 = arith.addf %3, %4 : vector<8x2x32xf32>
    %c0_6 = arith.constant 0 : index
    %c0_7 = arith.constant 0 : index
    %c0_8 = arith.constant 0 : index
    %6 = vector.load %arg20[%c0_6, %c0_7, %c0_8] : memref<8x2x32xf32, #tpu.memory_space<vmem>>, vector<8x2x32xf32>
    tpu.vector_store %arg20[%c0_6, %c0_7, %c0_8], %5 {strides = array<i32>} : memref<8x2x32xf32, #tpu.memory_space<vmem>>, vector<8x2x32xf32>,
    %c0_9 = arith.constant 0 : index
    %c0_10 = arith.constant 0 : index
    %c0_11 = arith.constant 0 : index
    %7 = vector.load %arg5[%c0_9, %c0_10, %c0_11] : memref<1x1x32xf32, #tpu.memory_space<vmem>>, vector<1x1x32xf32>
    %8 = vector.shape_cast %7 : vector<1x1x32xf32> to vector<1x32xf32>
    %9 = arith.mulf %5, %5 : vector<8x2x32xf32>
    %cst = arith.constant dense<0.000000e+00> : vector<8x2xf32>
    %10 = vector.multi_reduction <add>, %9, %cst [2] : vector<8x2x32xf32> to vector<8x2xf32>
    %11 = vector.shape_cast %10 : vector<8x2xf32> to vector<8x2x1xf32>
    %cst_12 = arith.constant 3.200000e+01 : f32
    %12 = vector.broadcast %cst_12 : f32 to vector<8x2x1xf32>
    %13 = arith.divf %11, %12 : vector<8x2x1xf32>
    %cst_13 = arith.constant 9.99999974E-6 : f32
    %14 = vector.broadcast %cst_13 : f32 to vector<8x2x1xf32>
    %15 = arith.addf %13, %14 : vector<8x2x1xf32>
    %16 = math.rsqrt %15 : vector<8x2x1xf32>
    %17 = vector.broadcast %16 : vector<8x2x1xf32> to vector<8x2x32xf32>
    %18 = arith.mulf %5, %17 : vector<8x2x32xf32>
    %19 = vector.shape_cast %8 : vector<1x32xf32> to vector<1x1x32xf32>
    %20 = vector.broadcast %19 : vector<1x1x32xf32> to vector<8x2x32xf32>
    %21 = arith.mulf %18, %20 : vector<8x2x32xf32>
    %22 = vector.shape_cast %21 : vector<8x2x32xf32> to vector<16x32xf32>
    %c0_14 = arith.constant 0 : index
    %c0_15 = arith.constant 0 : index
    %c0_16 = arith.constant 0 : index
    %23 = vector.load %arg6[%c0_14, %c0_15, %c0_16] : memref<1x128x32xbf16, #tpu.memory_space<vmem>>, vector<1x128x32xbf16>
    %24 = vector.shape_cast %23 : vector<1x128x32xbf16> to vector<128x32xbf16>
    %25 = arith.truncf %22 : vector<16x32xf32> to vector<16x32xbf16>
    %cst_17 = arith.constant dense<0.000000e+00> : vector<16x128xf32>
    %26 = tpu.matmul %25, %24, %cst_17 {dimension_numbers = #tpu.dot_dimension_numbers<[1], [1], [0], [0], [0, 0, 1, 0], [], []>} : vector<16x32xbf16>, vector<128x32xbf16>, vector<16x128xf32> -> vector<16x128xf32>
    %27 = vector.extract_strided_slice %26 {offsets = [0, 0], sizes = [16, 64], strides = [1, 1]} : vector<16x128xf32> to vector<16x64xf32>
    %28 = vector.extract_strided_slice %26 {offsets = [0, 64], sizes = [16, 64], strides = [1, 1]} : vector<16x128xf32> to vector<16x64xf32>
    %cst_18 = arith.constant 0.000000e+00 : f32
    %29 = vector.broadcast %cst_18 : f32 to vector<3x2x64xf32>
    %c0_19 = arith.constant 0 : index
    %c0_20 = arith.constant 0 : index
    %c0_21 = arith.constant 0 : index
    %30 = vector.load %arg21[%c0_19, %c0_20, %c0_21] : memref<11x2x64xf32, #tpu.memory_space<vmem>>, vector<3x2x64xf32>
    tpu.vector_store %arg21[%c0_19, %c0_20, %c0_21], %29 {strides = array<i32>} : memref<11x2x64xf32, #tpu.memory_space<vmem>>, vector<3x2x64xf32>,
    %31 = vector.shape_cast %27 : vector<16x64xf32> to vector<8x2x64xf32>
    %c3 = arith.constant 3 : index
    %c0_22 = arith.constant 0 : index
    %c0_23 = arith.constant 0 : index
    %32 = vector.load %arg21[%c3, %c0_22, %c0_23] : memref<11x2x64xf32, #tpu.memory_space<vmem>>, vector<8x2x64xf32>
    tpu.vector_store %arg21[%c3, %c0_22, %c0_23], %31 {strides = array<i32>} : memref<11x2x64xf32, #tpu.memory_space<vmem>>, vector<8x2x64xf32>,
    %c0_24 = arith.constant 0 : index
    %c0_25 = arith.constant 0 : index
    %c0_26 = arith.constant 0 : index
    %33 = vector.load %arg7[%c0_24, %c0_25, %c0_26] : memref<1x4x64xf32, #tpu.memory_space<vmem>>, vector<1x4x64xf32>
    %34 = vector.shape_cast %33 : vector<1x4x64xf32> to vector<4x64xf32>
    %cst_27 = arith.constant 0.000000e+00 : f32
    %35 = vector.broadcast %cst_27 : f32 to vector<8x2x64xf32>
    %36 = vector.extract_strided_slice %34 {offsets = [0, 0], sizes = [1, 64], strides = [1, 1]} : vector<4x64xf32> to vector<1x64xf32>
    %37 = vector.shape_cast %36 : vector<1x64xf32> to vector<1x1x64xf32>
    %c0_28 = arith.constant 0 : index
    %c0_29 = arith.constant 0 : index
    %c0_30 = arith.constant 0 : index
    %38 = vector.load %arg21[%c0_28, %c0_29, %c0_30] : memref<11x2x64xf32, #tpu.memory_space<vmem>>, vector<8x2x64xf32>
    %39 = vector.broadcast %37 : vector<1x1x64xf32> to vector<8x2x64xf32>
    %40 = arith.mulf %39, %38 : vector<8x2x64xf32>
    %41 = arith.addf %35, %40 : vector<8x2x64xf32>
    %42 = vector.extract_strided_slice %34 {offsets = [1, 0], sizes = [1, 64], strides = [1, 1]} : vector<4x64xf32> to vector<1x64xf32>
    %43 = vector.shape_cast %42 : vector<1x64xf32> to vector<1x1x64xf32>
    %c1 = arith.constant 1 : index
    %c0_31 = arith.constant 0 : index
    %c0_32 = arith.constant 0 : index
    %44 = vector.load %arg21[%c1, %c0_31, %c0_32] : memref<11x2x64xf32, #tpu.memory_space<vmem>>, vector<8x2x64xf32>
    %45 = vector.broadcast %43 : vector<1x1x64xf32> to vector<8x2x64xf32>
    %46 = arith.mulf %45, %44 : vector<8x2x64xf32>
    %47 = arith.addf %41, %46 : vector<8x2x64xf32>
    %48 = vector.extract_strided_slice %34 {offsets = [2, 0], sizes = [1, 64], strides = [1, 1]} : vector<4x64xf32> to vector<1x64xf32>
    %49 = vector.shape_cast %48 : vector<1x64xf32> to vector<1x1x64xf32>
    %c2 = arith.constant 2 : index
    %c0_33 = arith.constant 0 : index
    %c0_34 = arith.constant 0 : index
    %50 = vector.load %arg21[%c2, %c0_33, %c0_34] : memref<11x2x64xf32, #tpu.memory_space<vmem>>, vector<8x2x64xf32>
    %51 = vector.broadcast %49 : vector<1x1x64xf32> to vector<8x2x64xf32>
    %52 = arith.mulf %51, %50 : vector<8x2x64xf32>
    %53 = arith.addf %47, %52 : vector<8x2x64xf32>
    %54 = vector.extract_strided_slice %34 {offsets = [3, 0], sizes = [1, 64], strides = [1, 1]} : vector<4x64xf32> to vector<1x64xf32>
    %55 = vector.shape_cast %54 : vector<1x64xf32> to vector<1x1x64xf32>
    %c3_35 = arith.constant 3 : index
    %c0_36 = arith.constant 0 : index
    %c0_37 = arith.constant 0 : index
    %56 = vector.load %arg21[%c3_35, %c0_36, %c0_37] : memref<11x2x64xf32, #tpu.memory_space<vmem>>, vector<8x2x64xf32>
    %57 = vector.broadcast %55 : vector<1x1x64xf32> to vector<8x2x64xf32>
    %58 = arith.mulf %57, %56 : vector<8x2x64xf32>
    %59 = arith.addf %53, %58 : vector<8x2x64xf32>
    %c0_38 = arith.constant 0 : index
    %c0_39 = arith.constant 0 : index
    %c0_40 = arith.constant 0 : index
    %60 = vector.load %arg8[%c0_38, %c0_39, %c0_40] : memref<1x1x64xf32, #tpu.memory_space<vmem>>, vector<1x1x64xf32>
    %61 = vector.shape_cast %60 : vector<1x1x64xf32> to vector<1x64xf32>
    %62 = vector.shape_cast %61 : vector<1x64xf32> to vector<1x1x64xf32>
    %63 = vector.broadcast %62 : vector<1x1x64xf32> to vector<8x2x64xf32>
    %64 = arith.addf %59, %63 : vector<8x2x64xf32>
    %cst_41 = arith.constant 0.000000e+00 : f32
    %65 = vector.broadcast %cst_41 : f32 to vector<8x2x64xf32>
    %66 = arith.subf %65, %64 : vector<8x2x64xf32>
    %67 = math.exp %66 : vector<8x2x64xf32>
    %cst_42 = arith.constant 1.000000e+00 : f32
    %68 = vector.broadcast %cst_42 : f32 to vector<8x2x64xf32>
    %69 = arith.addf %68, %67 : vector<8x2x64xf32>
    %70 = tpu.reciprocal %69 {approx = true} : vector<8x2x64xf32> -> vector<8x2x64xf32>
    %71 = arith.mulf %64, %70 : vector<8x2x64xf32>
    %72 = vector.shape_cast %71 : vector<8x2x64xf32> to vector<16x64xf32>
    %c0_43 = arith.constant 0 : index
    %c0_44 = arith.constant 0 : index
    %c0_45 = arith.constant 0 : index
    %73 = vector.load %arg9[%c0_43, %c0_44, %c0_45] : memref<1x34x64xbf16, #tpu.memory_space<vmem>>, vector<1x34x64xbf16>
    %74 = vector.shape_cast %73 : vector<1x34x64xbf16> to vector<34x64xbf16>
    %75 = arith.truncf %72 : vector<16x64xf32> to vector<16x64xbf16>
    %cst_46 = arith.constant dense<0.000000e+00> : vector<16x34xf32>
    %76 = tpu.matmul %75, %74, %cst_46 {dimension_numbers = #tpu.dot_dimension_numbers<[1], [1], [0], [0], [0, 0, 1, 0], [], []>} : vector<16x64xbf16>, vector<34x64xbf16>, vector<16x34xf32> -> vector<16x34xf32>
    %77 = vector.extract_strided_slice %76 {offsets = [0, 0], sizes = [16, 2], strides = [1, 1]} : vector<16x34xf32> to vector<16x2xf32>
    %c0_47 = arith.constant 0 : index
    %c0_48 = arith.constant 0 : index
    %c0_49 = arith.constant 0 : index
    %78 = vector.load %arg10[%c0_47, %c0_48, %c0_49] : memref<1x64x2xbf16, #tpu.memory_space<vmem>>, vector<1x64x2xbf16>
    %79 = vector.shape_cast %78 : vector<1x64x2xbf16> to vector<64x2xbf16>
    %80 = arith.truncf %77 : vector<16x2xf32> to vector<16x2xbf16>
    %cst_50 = arith.constant dense<0.000000e+00> : vector<16x64xf32>
    %81 = tpu.matmul %80, %79, %cst_50 {dimension_numbers = #tpu.dot_dimension_numbers<[1], [1], [0], [0], [0, 0, 1, 0], [], []>} : vector<16x2xbf16>, vector<64x2xbf16>, vector<16x64xf32> -> vector<16x64xf32>
    %c0_51 = arith.constant 0 : index
    %c0_52 = arith.constant 0 : index
    %c0_53 = arith.constant 0 : index
    %82 = vector.load %arg11[%c0_51, %c0_52, %c0_53] : memref<1x1x64xf32, #tpu.memory_space<vmem>>, vector<1x1x64xf32>
    %83 = vector.shape_cast %82 : vector<1x1x64xf32> to vector<1x64xf32>
    %84 = vector.broadcast %83 : vector<1x64xf32> to vector<16x64xf32>
    %85 = arith.addf %81, %84 : vector<16x64xf32>
    %cst_54 = arith.constant 3.000000e+01 : f32
    %86 = vector.broadcast %cst_54 : f32 to vector<16x64xf32>
    %87 = arith.cmpf ogt, %85, %86 : vector<16x64xf32>
    %88 = math.exp %85 : vector<16x64xf32>
    %cst_55 = arith.constant 1.000000e+00 : f32
    %89 = vector.broadcast %cst_55 : f32 to vector<16x64xf32>
    %90 = arith.addf %89, %88 : vector<16x64xf32>
    %91 = math.log %90 : vector<16x64xf32>
    %92 = arith.select %87, %85, %91 : vector<16x64xi1>, vector<16x64xf32>
    %93 = vector.shape_cast %92 : vector<16x64xf32> to vector<8x2x64xf32>
    %c0_56 = arith.constant 0 : index
    %c0_57 = arith.constant 0 : index
    %c0_58 = arith.constant 0 : index
    %94 = vector.load %arg22[%c0_56, %c0_57, %c0_58] : memref<8x2x64xf32, #tpu.memory_space<vmem>>, vector<8x2x64xf32>
    tpu.vector_store %arg22[%c0_56, %c0_57, %c0_58], %93 {strides = array<i32>} : memref<8x2x64xf32, #tpu.memory_space<vmem>>, vector<8x2x64xf32>,
    %95 = arith.mulf %92, %72 : vector<16x64xf32>
    %96 = vector.shape_cast %95 : vector<16x64xf32> to vector<8x2x64xf32>
    %c0_59 = arith.constant 0 : index
    %c0_60 = arith.constant 0 : index
    %c0_61 = arith.constant 0 : index
    %97 = vector.load %arg23[%c0_59, %c0_60, %c0_61] : memref<8x2x64xf32, #tpu.memory_space<vmem>>, vector<8x2x64xf32>
    tpu.vector_store %arg23[%c0_59, %c0_60, %c0_61], %96 {strides = array<i32>} : memref<8x2x64xf32, #tpu.memory_space<vmem>>, vector<8x2x64xf32>,
    %98 = vector.extract_strided_slice %76 {offsets = [0, 2], sizes = [16, 16], strides = [1, 1]} : vector<16x34xf32> to vector<16x16xf32>
    %99 = vector.shape_cast %98 : vector<16x16xf32> to vector<8x2x16xf32>
    %c0_62 = arith.constant 0 : index
    %c0_63 = arith.constant 0 : index
    %c0_64 = arith.constant 0 : index
    %100 = vector.load %arg24[%c0_62, %c0_63, %c0_64] : memref<8x2x16xf32, #tpu.memory_space<vmem>>, vector<8x2x16xf32>
    tpu.vector_store %arg24[%c0_62, %c0_63, %c0_64], %99 {strides = array<i32>} : memref<8x2x16xf32, #tpu.memory_space<vmem>>, vector<8x2x16xf32>,
    %101 = vector.extract_strided_slice %76 {offsets = [0, 18], sizes = [16, 16], strides = [1, 1]} : vector<16x34xf32> to vector<16x16xf32>
    %102 = vector.shape_cast %101 : vector<16x16xf32> to vector<8x2x16xf32>
    %c0_65 = arith.constant 0 : index
    %c0_66 = arith.constant 0 : index
    %c0_67 = arith.constant 0 : index
    %103 = vector.load %arg25[%c0_65, %c0_66, %c0_67] : memref<8x2x16xf32, #tpu.memory_space<vmem>>, vector<8x2x16xf32>
    tpu.vector_store %arg25[%c0_65, %c0_66, %c0_67], %102 {strides = array<i32>} : memref<8x2x16xf32, #tpu.memory_space<vmem>>, vector<8x2x16xf32>,
    %c0_68 = arith.constant 0 : index
    %c0_69 = arith.constant 0 : index
    %c0_70 = arith.constant 0 : index
    %104 = vector.load %arg12[%c0_68, %c0_69, %c0_70] : memref<1x16x64xf32, #tpu.memory_space<vmem>>, vector<1x16x64xf32>
    %105 = vector.shape_cast %104 : vector<1x16x64xf32> to vector<16x64xf32>
    %cst_71 = arith.constant 0.000000e+00 : f32
    %106 = vector.broadcast %cst_71 : f32 to vector<2x16x64xf32>
    %c0_i32_72 = arith.constant 0 : i32
    %107 = arith.index_cast %c0_i32_72 : i32 to index
    %c0_73 = arith.constant 0 : index
    %c0_74 = arith.constant 0 : index
    %108 = vector.load %arg22[%107, %c0_73, %c0_74] : memref<8x2x64xf32, #tpu.memory_space<vmem>>, vector<1x2x64xf32>
    %109 = vector.shape_cast %108 : vector<1x2x64xf32> to vector<2x64xf32>
    %110 = vector.shape_cast %109 : vector<2x64xf32> to vector<2x1x64xf32>
    %111 = vector.shape_cast %105 : vector<16x64xf32> to vector<1x16x64xf32>
    %112 = vector.broadcast %110 : vector<2x1x64xf32> to vector<2x16x64xf32>
    %113 = vector.broadcast %111 : vector<1x16x64xf32> to vector<2x16x64xf32>
    %114 = arith.mulf %112, %113 : vector<2x16x64xf32>
    %115 = math.exp %114 : vector<2x16x64xf32>
    %116 = arith.mulf %115, %106 : vector<2x16x64xf32>
    %117 = arith.index_cast %c0_i32_72 : i32 to index
    %c0_75 = arith.constant 0 : index
    %c0_76 = arith.constant 0 : index
    %118 = vector.load %arg24[%117, %c0_75, %c0_76] : memref<8x2x16xf32, #tpu.memory_space<vmem>>, vector<1x2x16xf32>
    %119 = vector.shape_cast %118 : vector<1x2x16xf32> to vector<2x16xf32>
    %120 = vector.shape_cast %119 : vector<2x16xf32> to vector<2x16x1xf32>
    %121 = arith.index_cast %c0_i32_72 : i32 to index
    %c0_77 = arith.constant 0 : index
    %c0_78 = arith.constant 0 : index
    %122 = vector.load %arg23[%121, %c0_77, %c0_78] : memref<8x2x64xf32, #tpu.memory_space<vmem>>, vector<1x2x64xf32>
    %123 = vector.shape_cast %122 : vector<1x2x64xf32> to vector<2x64xf32>
    %124 = vector.shape_cast %123 : vector<2x64xf32> to vector<2x1x64xf32>
    %125 = vector.broadcast %120 : vector<2x16x1xf32> to vector<2x16x64xf32>
    %126 = vector.broadcast %124 : vector<2x1x64xf32> to vector<2x16x64xf32>
    %127 = arith.mulf %125, %126 : vector<2x16x64xf32>
    %128 = arith.addf %116, %127 : vector<2x16x64xf32>
    %129 = arith.index_cast %c0_i32_72 : i32 to index
    %c0_79 = arith.constant 0 : index
    %c0_80 = arith.constant 0 : index
    %130 = vector.load %arg25[%129, %c0_79, %c0_80] : memref<8x2x16xf32, #tpu.memory_space<vmem>>, vector<1x2x16xf32>
    %131 = vector.shape_cast %130 : vector<1x2x16xf32> to vector<2x16xf32>
    %132 = vector.shape_cast %131 : vector<2x16xf32> to vector<2x16x1xf32>
    %133 = vector.broadcast %132 : vector<2x16x1xf32> to vector<2x16x64xf32>
    %134 = arith.mulf %133, %128 : vector<2x16x64xf32>
    %cst_81 = arith.constant dense<0.000000e+00> : vector<2x64xf32>
    %135 = vector.multi_reduction <add>, %134, %cst_81 [1] : vector<2x16x64xf32> to vector<2x64xf32>
    %136 = arith.index_cast %c0_i32_72 : i32 to index
    %c0_82 = arith.constant 0 : index
    %c0_83 = arith.constant 0 : index
    %137 = vector.load %arg26[%136, %c0_82, %c0_83] : memref<8x2x64xf32, #tpu.memory_space<vmem>>, vector<1x2x64xf32>
    %138 = vector.shape_cast %137 : vector<1x2x64xf32> to vector<2x64xf32>
    %139 = vector.shape_cast %135 : vector<2x64xf32> to vector<1x2x64xf32>
    tpu.vector_store %arg26[%136, %c0_82, %c0_83], %139 {strides = array<i32>} : memref<8x2x64xf32, #tpu.memory_space<vmem>>, vector<1x2x64xf32>,
    %c1_i32 = arith.constant 1 : i32
    %140 = arith.index_cast %c1_i32 : i32 to index
    %c0_84 = arith.constant 0 : index
    %c0_85 = arith.constant 0 : index
    %141 = vector.load %arg22[%140, %c0_84, %c0_85] : memref<8x2x64xf32, #tpu.memory_space<vmem>>, vector<1x2x64xf32>
    %142 = vector.shape_cast %141 : vector<1x2x64xf32> to vector<2x64xf32>
    %143 = vector.shape_cast %142 : vector<2x64xf32> to vector<2x1x64xf32>
    %144 = vector.shape_cast %105 : vector<16x64xf32> to vector<1x16x64xf32>
    %145 = vector.broadcast %143 : vector<2x1x64xf32> to vector<2x16x64xf32>
    %146 = vector.broadcast %144 : vector<1x16x64xf32> to vector<2x16x64xf32>
    %147 = arith.mulf %145, %146 : vector<2x16x64xf32>
    %148 = math.exp %147 : vector<2x16x64xf32>
    %149 = arith.mulf %148, %128 : vector<2x16x64xf32>
    %150 = arith.index_cast %c1_i32 : i32 to index
    %c0_86 = arith.constant 0 : index
    %c0_87 = arith.constant 0 : index
    %151 = vector.load %arg24[%150, %c0_86, %c0_87] : memref<8x2x16xf32, #tpu.memory_space<vmem>>, vector<1x2x16xf32>
    %152 = vector.shape_cast %151 : vector<1x2x16xf32> to vector<2x16xf32>
    %153 = vector.shape_cast %152 : vector<2x16xf32> to vector<2x16x1xf32>
    %154 = arith.index_cast %c1_i32 : i32 to index
    %c0_88 = arith.constant 0 : index
    %c0_89 = arith.constant 0 : index
    %155 = vector.load %arg23[%154, %c0_88, %c0_89] : memref<8x2x64xf32, #tpu.memory_space<vmem>>, vector<1x2x64xf32>
    %156 = vector.shape_cast %155 : vector<1x2x64xf32> to vector<2x64xf32>
    %157 = vector.shape_cast %156 : vector<2x64xf32> to vector<2x1x64xf32>
    %158 = vector.broadcast %153 : vector<2x16x1xf32> to vector<2x16x64xf32>
    %159 = vector.broadcast %157 : vector<2x1x64xf32> to vector<2x16x64xf32>
    %160 = arith.mulf %158, %159 : vector<2x16x64xf32>
    %161 = arith.addf %149, %160 : vector<2x16x64xf32>
    %162 = arith.index_cast %c1_i32 : i32 to index
    %c0_90 = arith.constant 0 : index
    %c0_91 = arith.constant 0 : index
    %163 = vector.load %arg25[%162, %c0_90, %c0_91] : memref<8x2x16xf32, #tpu.memory_space<vmem>>, vector<1x2x16xf32>
    %164 = vector.shape_cast %163 : vector<1x2x16xf32> to vector<2x16xf32>
    %165 = vector.shape_cast %164 : vector<2x16xf32> to vector<2x16x1xf32>
    %166 = vector.broadcast %165 : vector<2x16x1xf32> to vector<2x16x64xf32>
    %167 = arith.mulf %166, %161 : vector<2x16x64xf32>
    %cst_92 = arith.constant dense<0.000000e+00> : vector<2x64xf32>
    %168 = vector.multi_reduction <add>, %167, %cst_92 [1] : vector<2x16x64xf32> to vector<2x64xf32>
    %169 = arith.index_cast %c1_i32 : i32 to index
    %c0_93 = arith.constant 0 : index
    %c0_94 = arith.constant 0 : index
    %170 = vector.load %arg26[%169, %c0_93, %c0_94] : memref<8x2x64xf32, #tpu.memory_space<vmem>>, vector<1x2x64xf32>
    %171 = vector.shape_cast %170 : vector<1x2x64xf32> to vector<2x64xf32>
    %172 = vector.shape_cast %168 : vector<2x64xf32> to vector<1x2x64xf32>
    tpu.vector_store %arg26[%169, %c0_93, %c0_94], %172 {strides = array<i32>} : memref<8x2x64xf32, #tpu.memory_space<vmem>>, vector<1x2x64xf32>,
    %c2_i32 = arith.constant 2 : i32
    %173 = arith.index_cast %c2_i32 : i32 to index
    %c0_95 = arith.constant 0 : index
    %c0_96 = arith.constant 0 : index
    %174 = vector.load %arg22[%173, %c0_95, %c0_96] : memref<8x2x64xf32, #tpu.memory_space<vmem>>, vector<1x2x64xf32>
    %175 = vector.shape_cast %174 : vector<1x2x64xf32> to vector<2x64xf32>
    %176 = vector.shape_cast %175 : vector<2x64xf32> to vector<2x1x64xf32>
    %177 = vector.shape_cast %105 : vector<16x64xf32> to vector<1x16x64xf32>
    %178 = vector.broadcast %176 : vector<2x1x64xf32> to vector<2x16x64xf32>
    %179 = vector.broadcast %177 : vector<1x16x64xf32> to vector<2x16x64xf32>
    %180 = arith.mulf %178, %179 : vector<2x16x64xf32>
    %181 = math.exp %180 : vector<2x16x64xf32>
    %182 = arith.mulf %181, %161 : vector<2x16x64xf32>
    %183 = arith.index_cast %c2_i32 : i32 to index
    %c0_97 = arith.constant 0 : index
    %c0_98 = arith.constant 0 : index
    %184 = vector.load %arg24[%183, %c0_97, %c0_98] : memref<8x2x16xf32, #tpu.memory_space<vmem>>, vector<1x2x16xf32>
    %185 = vector.shape_cast %184 : vector<1x2x16xf32> to vector<2x16xf32>
    %186 = vector.shape_cast %185 : vector<2x16xf32> to vector<2x16x1xf32>
    %187 = arith.index_cast %c2_i32 : i32 to index
    %c0_99 = arith.constant 0 : index
    %c0_100 = arith.constant 0 : index
    %188 = vector.load %arg23[%187, %c0_99, %c0_100] : memref<8x2x64xf32, #tpu.memory_space<vmem>>, vector<1x2x64xf32>
    %189 = vector.shape_cast %188 : vector<1x2x64xf32> to vector<2x64xf32>
    %190 = vector.shape_cast %189 : vector<2x64xf32> to vector<2x1x64xf32>
    %191 = vector.broadcast %186 : vector<2x16x1xf32> to vector<2x16x64xf32>
    %192 = vector.broadcast %190 : vector<2x1x64xf32> to vector<2x16x64xf32>
    %193 = arith.mulf %191, %192 : vector<2x16x64xf32>
    %194 = arith.addf %182, %193 : vector<2x16x64xf32>
    %195 = arith.index_cast %c2_i32 : i32 to index
    %c0_101 = arith.constant 0 : index
    %c0_102 = arith.constant 0 : index
    %196 = vector.load %arg25[%195, %c0_101, %c0_102] : memref<8x2x16xf32, #tpu.memory_space<vmem>>, vector<1x2x16xf32>
    %197 = vector.shape_cast %196 : vector<1x2x16xf32> to vector<2x16xf32>
    %198 = vector.shape_cast %197 : vector<2x16xf32> to vector<2x16x1xf32>
    %199 = vector.broadcast %198 : vector<2x16x1xf32> to vector<2x16x64xf32>
    %200 = arith.mulf %199, %194 : vector<2x16x64xf32>
    %cst_103 = arith.constant dense<0.000000e+00> : vector<2x64xf32>
    %201 = vector.multi_reduction <add>, %200, %cst_103 [1] : vector<2x16x64xf32> to vector<2x64xf32>
    %202 = arith.index_cast %c2_i32 : i32 to index
    %c0_104 = arith.constant 0 : index
    %c0_105 = arith.constant 0 : index
    %203 = vector.load %arg26[%202, %c0_104, %c0_105] : memref<8x2x64xf32, #tpu.memory_space<vmem>>, vector<1x2x64xf32>
    %204 = vector.shape_cast %203 : vector<1x2x64xf32> to vector<2x64xf32>
    %205 = vector.shape_cast %201 : vector<2x64xf32> to vector<1x2x64xf32>
    tpu.vector_store %arg26[%202, %c0_104, %c0_105], %205 {strides = array<i32>} : memref<8x2x64xf32, #tpu.memory_space<vmem>>, vector<1x2x64xf32>,
    %c3_i32 = arith.constant 3 : i32
    %206 = arith.index_cast %c3_i32 : i32 to index
    %c0_106 = arith.constant 0 : index
    %c0_107 = arith.constant 0 : index
    %207 = vector.load %arg22[%206, %c0_106, %c0_107] : memref<8x2x64xf32, #tpu.memory_space<vmem>>, vector<1x2x64xf32>
    %208 = vector.shape_cast %207 : vector<1x2x64xf32> to vector<2x64xf32>
    %209 = vector.shape_cast %208 : vector<2x64xf32> to vector<2x1x64xf32>
    %210 = vector.shape_cast %105 : vector<16x64xf32> to vector<1x16x64xf32>
    %211 = vector.broadcast %209 : vector<2x1x64xf32> to vector<2x16x64xf32>
    %212 = vector.broadcast %210 : vector<1x16x64xf32> to vector<2x16x64xf32>
    %213 = arith.mulf %211, %212 : vector<2x16x64xf32>
    %214 = math.exp %213 : vector<2x16x64xf32>
    %215 = arith.mulf %214, %194 : vector<2x16x64xf32>
    %216 = arith.index_cast %c3_i32 : i32 to index
    %c0_108 = arith.constant 0 : index
    %c0_109 = arith.constant 0 : index
    %217 = vector.load %arg24[%216, %c0_108, %c0_109] : memref<8x2x16xf32, #tpu.memory_space<vmem>>, vector<1x2x16xf32>
    %218 = vector.shape_cast %217 : vector<1x2x16xf32> to vector<2x16xf32>
    %219 = vector.shape_cast %218 : vector<2x16xf32> to vector<2x16x1xf32>
    %220 = arith.index_cast %c3_i32 : i32 to index
    %c0_110 = arith.constant 0 : index
    %c0_111 = arith.constant 0 : index
    %221 = vector.load %arg23[%220, %c0_110, %c0_111] : memref<8x2x64xf32, #tpu.memory_space<vmem>>, vector<1x2x64xf32>
    %222 = vector.shape_cast %221 : vector<1x2x64xf32> to vector<2x64xf32>
    %223 = vector.shape_cast %222 : vector<2x64xf32> to vector<2x1x64xf32>
    %224 = vector.broadcast %219 : vector<2x16x1xf32> to vector<2x16x64xf32>
    %225 = vector.broadcast %223 : vector<2x1x64xf32> to vector<2x16x64xf32>
    %226 = arith.mulf %224, %225 : vector<2x16x64xf32>
    %227 = arith.addf %215, %226 : vector<2x16x64xf32>
    %228 = arith.index_cast %c3_i32 : i32 to index
    %c0_112 = arith.constant 0 : index
    %c0_113 = arith.constant 0 : index
    %229 = vector.load %arg25[%228, %c0_112, %c0_113] : memref<8x2x16xf32, #tpu.memory_space<vmem>>, vector<1x2x16xf32>
    %230 = vector.shape_cast %229 : vector<1x2x16xf32> to vector<2x16xf32>
    %231 = vector.shape_cast %230 : vector<2x16xf32> to vector<2x16x1xf32>
    %232 = vector.broadcast %231 : vector<2x16x1xf32> to vector<2x16x64xf32>
    %233 = arith.mulf %232, %227 : vector<2x16x64xf32>
    %cst_114 = arith.constant dense<0.000000e+00> : vector<2x64xf32>
    %234 = vector.multi_reduction <add>, %233, %cst_114 [1] : vector<2x16x64xf32> to vector<2x64xf32>
    %235 = arith.index_cast %c3_i32 : i32 to index
    %c0_115 = arith.constant 0 : index
    %c0_116 = arith.constant 0 : index
    %236 = vector.load %arg26[%235, %c0_115, %c0_116] : memref<8x2x64xf32, #tpu.memory_space<vmem>>, vector<1x2x64xf32>
    %237 = vector.shape_cast %236 : vector<1x2x64xf32> to vector<2x64xf32>
    %238 = vector.shape_cast %234 : vector<2x64xf32> to vector<1x2x64xf32>
    tpu.vector_store %arg26[%235, %c0_115, %c0_116], %238 {strides = array<i32>} : memref<8x2x64xf32, #tpu.memory_space<vmem>>, vector<1x2x64xf32>,
    %c4_i32 = arith.constant 4 : i32
    %239 = arith.index_cast %c4_i32 : i32 to index
    %c0_117 = arith.constant 0 : index
    %c0_118 = arith.constant 0 : index
    %240 = vector.load %arg22[%239, %c0_117, %c0_118] : memref<8x2x64xf32, #tpu.memory_space<vmem>>, vector<1x2x64xf32>
    %241 = vector.shape_cast %240 : vector<1x2x64xf32> to vector<2x64xf32>
    %242 = vector.shape_cast %241 : vector<2x64xf32> to vector<2x1x64xf32>
    %243 = vector.shape_cast %105 : vector<16x64xf32> to vector<1x16x64xf32>
    %244 = vector.broadcast %242 : vector<2x1x64xf32> to vector<2x16x64xf32>
    %245 = vector.broadcast %243 : vector<1x16x64xf32> to vector<2x16x64xf32>
    %246 = arith.mulf %244, %245 : vector<2x16x64xf32>
    %247 = math.exp %246 : vector<2x16x64xf32>
    %248 = arith.mulf %247, %227 : vector<2x16x64xf32>
    %249 = arith.index_cast %c4_i32 : i32 to index
    %c0_119 = arith.constant 0 : index
    %c0_120 = arith.constant 0 : index
    %250 = vector.load %arg24[%249, %c0_119, %c0_120] : memref<8x2x16xf32, #tpu.memory_space<vmem>>, vector<1x2x16xf32>
    %251 = vector.shape_cast %250 : vector<1x2x16xf32> to vector<2x16xf32>
    %252 = vector.shape_cast %251 : vector<2x16xf32> to vector<2x16x1xf32>
    %253 = arith.index_cast %c4_i32 : i32 to index
    %c0_121 = arith.constant 0 : index
    %c0_122 = arith.constant 0 : index
    %254 = vector.load %arg23[%253, %c0_121, %c0_122] : memref<8x2x64xf32, #tpu.memory_space<vmem>>, vector<1x2x64xf32>
    %255 = vector.shape_cast %254 : vector<1x2x64xf32> to vector<2x64xf32>
    %256 = vector.shape_cast %255 : vector<2x64xf32> to vector<2x1x64xf32>
    %257 = vector.broadcast %252 : vector<2x16x1xf32> to vector<2x16x64xf32>
    %258 = vector.broadcast %256 : vector<2x1x64xf32> to vector<2x16x64xf32>
    %259 = arith.mulf %257, %258 : vector<2x16x64xf32>
    %260 = arith.addf %248, %259 : vector<2x16x64xf32>
    %261 = arith.index_cast %c4_i32 : i32 to index
    %c0_123 = arith.constant 0 : index
    %c0_124 = arith.constant 0 : index
    %262 = vector.load %arg25[%261, %c0_123, %c0_124] : memref<8x2x16xf32, #tpu.memory_space<vmem>>, vector<1x2x16xf32>
    %263 = vector.shape_cast %262 : vector<1x2x16xf32> to vector<2x16xf32>
    %264 = vector.shape_cast %263 : vector<2x16xf32> to vector<2x16x1xf32>
    %265 = vector.broadcast %264 : vector<2x16x1xf32> to vector<2x16x64xf32>
    %266 = arith.mulf %265, %260 : vector<2x16x64xf32>
    %cst_125 = arith.constant dense<0.000000e+00> : vector<2x64xf32>
    %267 = vector.multi_reduction <add>, %266, %cst_125 [1] : vector<2x16x64xf32> to vector<2x64xf32>
    %268 = arith.index_cast %c4_i32 : i32 to index
    %c0_126 = arith.constant 0 : index
    %c0_127 = arith.constant 0 : index
    %269 = vector.load %arg26[%268, %c0_126, %c0_127] : memref<8x2x64xf32, #tpu.memory_space<vmem>>, vector<1x2x64xf32>
    %270 = vector.shape_cast %269 : vector<1x2x64xf32> to vector<2x64xf32>
    %271 = vector.shape_cast %267 : vector<2x64xf32> to vector<1x2x64xf32>
    tpu.vector_store %arg26[%268, %c0_126, %c0_127], %271 {strides = array<i32>} : memref<8x2x64xf32, #tpu.memory_space<vmem>>, vector<1x2x64xf32>,
    %c5_i32 = arith.constant 5 : i32
    %272 = arith.index_cast %c5_i32 : i32 to index
    %c0_128 = arith.constant 0 : index
    %c0_129 = arith.constant 0 : index
    %273 = vector.load %arg22[%272, %c0_128, %c0_129] : memref<8x2x64xf32, #tpu.memory_space<vmem>>, vector<1x2x64xf32>
    %274 = vector.shape_cast %273 : vector<1x2x64xf32> to vector<2x64xf32>
    %275 = vector.shape_cast %274 : vector<2x64xf32> to vector<2x1x64xf32>
    %276 = vector.shape_cast %105 : vector<16x64xf32> to vector<1x16x64xf32>
    %277 = vector.broadcast %275 : vector<2x1x64xf32> to vector<2x16x64xf32>
    %278 = vector.broadcast %276 : vector<1x16x64xf32> to vector<2x16x64xf32>
    %279 = arith.mulf %277, %278 : vector<2x16x64xf32>
    %280 = math.exp %279 : vector<2x16x64xf32>
    %281 = arith.mulf %280, %260 : vector<2x16x64xf32>
    %282 = arith.index_cast %c5_i32 : i32 to index
    %c0_130 = arith.constant 0 : index
    %c0_131 = arith.constant 0 : index
    %283 = vector.load %arg24[%282, %c0_130, %c0_131] : memref<8x2x16xf32, #tpu.memory_space<vmem>>, vector<1x2x16xf32>
    %284 = vector.shape_cast %283 : vector<1x2x16xf32> to vector<2x16xf32>
    %285 = vector.shape_cast %284 : vector<2x16xf32> to vector<2x16x1xf32>
    %286 = arith.index_cast %c5_i32 : i32 to index
    %c0_132 = arith.constant 0 : index
    %c0_133 = arith.constant 0 : index
    %287 = vector.load %arg23[%286, %c0_132, %c0_133] : memref<8x2x64xf32, #tpu.memory_space<vmem>>, vector<1x2x64xf32>
    %288 = vector.shape_cast %287 : vector<1x2x64xf32> to vector<2x64xf32>
    %289 = vector.shape_cast %288 : vector<2x64xf32> to vector<2x1x64xf32>
    %290 = vector.broadcast %285 : vector<2x16x1xf32> to vector<2x16x64xf32>
    %291 = vector.broadcast %289 : vector<2x1x64xf32> to vector<2x16x64xf32>
    %292 = arith.mulf %290, %291 : vector<2x16x64xf32>
    %293 = arith.addf %281, %292 : vector<2x16x64xf32>
    %294 = arith.index_cast %c5_i32 : i32 to index
    %c0_134 = arith.constant 0 : index
    %c0_135 = arith.constant 0 : index
    %295 = vector.load %arg25[%294, %c0_134, %c0_135] : memref<8x2x16xf32, #tpu.memory_space<vmem>>, vector<1x2x16xf32>
    %296 = vector.shape_cast %295 : vector<1x2x16xf32> to vector<2x16xf32>
    %297 = vector.shape_cast %296 : vector<2x16xf32> to vector<2x16x1xf32>
    %298 = vector.broadcast %297 : vector<2x16x1xf32> to vector<2x16x64xf32>
    %299 = arith.mulf %298, %293 : vector<2x16x64xf32>
    %cst_136 = arith.constant dense<0.000000e+00> : vector<2x64xf32>
    %300 = vector.multi_reduction <add>, %299, %cst_136 [1] : vector<2x16x64xf32> to vector<2x64xf32>
    %301 = arith.index_cast %c5_i32 : i32 to index
    %c0_137 = arith.constant 0 : index
    %c0_138 = arith.constant 0 : index
    %302 = vector.load %arg26[%301, %c0_137, %c0_138] : memref<8x2x64xf32, #tpu.memory_space<vmem>>, vector<1x2x64xf32>
    %303 = vector.shape_cast %302 : vector<1x2x64xf32> to vector<2x64xf32>
    %304 = vector.shape_cast %300 : vector<2x64xf32> to vector<1x2x64xf32>
    tpu.vector_store %arg26[%301, %c0_137, %c0_138], %304 {strides = array<i32>} : memref<8x2x64xf32, #tpu.memory_space<vmem>>, vector<1x2x64xf32>,
    %c6_i32 = arith.constant 6 : i32
    %305 = arith.index_cast %c6_i32 : i32 to index
    %c0_139 = arith.constant 0 : index
    %c0_140 = arith.constant 0 : index
    %306 = vector.load %arg22[%305, %c0_139, %c0_140] : memref<8x2x64xf32, #tpu.memory_space<vmem>>, vector<1x2x64xf32>
    %307 = vector.shape_cast %306 : vector<1x2x64xf32> to vector<2x64xf32>
    %308 = vector.shape_cast %307 : vector<2x64xf32> to vector<2x1x64xf32>
    %309 = vector.shape_cast %105 : vector<16x64xf32> to vector<1x16x64xf32>
    %310 = vector.broadcast %308 : vector<2x1x64xf32> to vector<2x16x64xf32>
    %311 = vector.broadcast %309 : vector<1x16x64xf32> to vector<2x16x64xf32>
    %312 = arith.mulf %310, %311 : vector<2x16x64xf32>
    %313 = math.exp %312 : vector<2x16x64xf32>
    %314 = arith.mulf %313, %293 : vector<2x16x64xf32>
    %315 = arith.index_cast %c6_i32 : i32 to index
    %c0_141 = arith.constant 0 : index
    %c0_142 = arith.constant 0 : index
    %316 = vector.load %arg24[%315, %c0_141, %c0_142] : memref<8x2x16xf32, #tpu.memory_space<vmem>>, vector<1x2x16xf32>
    %317 = vector.shape_cast %316 : vector<1x2x16xf32> to vector<2x16xf32>
    %318 = vector.shape_cast %317 : vector<2x16xf32> to vector<2x16x1xf32>
    %319 = arith.index_cast %c6_i32 : i32 to index
    %c0_143 = arith.constant 0 : index
    %c0_144 = arith.constant 0 : index
    %320 = vector.load %arg23[%319, %c0_143, %c0_144] : memref<8x2x64xf32, #tpu.memory_space<vmem>>, vector<1x2x64xf32>
    %321 = vector.shape_cast %320 : vector<1x2x64xf32> to vector<2x64xf32>
    %322 = vector.shape_cast %321 : vector<2x64xf32> to vector<2x1x64xf32>
    %323 = vector.broadcast %318 : vector<2x16x1xf32> to vector<2x16x64xf32>
    %324 = vector.broadcast %322 : vector<2x1x64xf32> to vector<2x16x64xf32>
    %325 = arith.mulf %323, %324 : vector<2x16x64xf32>
    %326 = arith.addf %314, %325 : vector<2x16x64xf32>
    %327 = arith.index_cast %c6_i32 : i32 to index
    %c0_145 = arith.constant 0 : index
    %c0_146 = arith.constant 0 : index
    %328 = vector.load %arg25[%327, %c0_145, %c0_146] : memref<8x2x16xf32, #tpu.memory_space<vmem>>, vector<1x2x16xf32>
    %329 = vector.shape_cast %328 : vector<1x2x16xf32> to vector<2x16xf32>
    %330 = vector.shape_cast %329 : vector<2x16xf32> to vector<2x16x1xf32>
    %331 = vector.broadcast %330 : vector<2x16x1xf32> to vector<2x16x64xf32>
    %332 = arith.mulf %331, %326 : vector<2x16x64xf32>
    %cst_147 = arith.constant dense<0.000000e+00> : vector<2x64xf32>
    %333 = vector.multi_reduction <add>, %332, %cst_147 [1] : vector<2x16x64xf32> to vector<2x64xf32>
    %334 = arith.index_cast %c6_i32 : i32 to index
    %c0_148 = arith.constant 0 : index
    %c0_149 = arith.constant 0 : index
    %335 = vector.load %arg26[%334, %c0_148, %c0_149] : memref<8x2x64xf32, #tpu.memory_space<vmem>>, vector<1x2x64xf32>
    %336 = vector.shape_cast %335 : vector<1x2x64xf32> to vector<2x64xf32>
    %337 = vector.shape_cast %333 : vector<2x64xf32> to vector<1x2x64xf32>
    tpu.vector_store %arg26[%334, %c0_148, %c0_149], %337 {strides = array<i32>} : memref<8x2x64xf32, #tpu.memory_space<vmem>>, vector<1x2x64xf32>,
    %c7_i32 = arith.constant 7 : i32
    %338 = arith.index_cast %c7_i32 : i32 to index
    %c0_150 = arith.constant 0 : index
    %c0_151 = arith.constant 0 : index
    %339 = vector.load %arg22[%338, %c0_150, %c0_151] : memref<8x2x64xf32, #tpu.memory_space<vmem>>, vector<1x2x64xf32>
    %340 = vector.shape_cast %339 : vector<1x2x64xf32> to vector<2x64xf32>
    %341 = vector.shape_cast %340 : vector<2x64xf32> to vector<2x1x64xf32>
    %342 = vector.shape_cast %105 : vector<16x64xf32> to vector<1x16x64xf32>
    %343 = vector.broadcast %341 : vector<2x1x64xf32> to vector<2x16x64xf32>
    %344 = vector.broadcast %342 : vector<1x16x64xf32> to vector<2x16x64xf32>
    %345 = arith.mulf %343, %344 : vector<2x16x64xf32>
    %346 = math.exp %345 : vector<2x16x64xf32>
    %347 = arith.mulf %346, %326 : vector<2x16x64xf32>
    %348 = arith.index_cast %c7_i32 : i32 to index
    %c0_152 = arith.constant 0 : index
    %c0_153 = arith.constant 0 : index
    %349 = vector.load %arg24[%348, %c0_152, %c0_153] : memref<8x2x16xf32, #tpu.memory_space<vmem>>, vector<1x2x16xf32>
    %350 = vector.shape_cast %349 : vector<1x2x16xf32> to vector<2x16xf32>
    %351 = vector.shape_cast %350 : vector<2x16xf32> to vector<2x16x1xf32>
    %352 = arith.index_cast %c7_i32 : i32 to index
    %c0_154 = arith.constant 0 : index
    %c0_155 = arith.constant 0 : index
    %353 = vector.load %arg23[%352, %c0_154, %c0_155] : memref<8x2x64xf32, #tpu.memory_space<vmem>>, vector<1x2x64xf32>
    %354 = vector.shape_cast %353 : vector<1x2x64xf32> to vector<2x64xf32>
    %355 = vector.shape_cast %354 : vector<2x64xf32> to vector<2x1x64xf32>
    %356 = vector.broadcast %351 : vector<2x16x1xf32> to vector<2x16x64xf32>
    %357 = vector.broadcast %355 : vector<2x1x64xf32> to vector<2x16x64xf32>
    %358 = arith.mulf %356, %357 : vector<2x16x64xf32>
    %359 = arith.addf %347, %358 : vector<2x16x64xf32>
    %360 = arith.index_cast %c7_i32 : i32 to index
    %c0_156 = arith.constant 0 : index
    %c0_157 = arith.constant 0 : index
    %361 = vector.load %arg25[%360, %c0_156, %c0_157] : memref<8x2x16xf32, #tpu.memory_space<vmem>>, vector<1x2x16xf32>
    %362 = vector.shape_cast %361 : vector<1x2x16xf32> to vector<2x16xf32>
    %363 = vector.shape_cast %362 : vector<2x16xf32> to vector<2x16x1xf32>
    %364 = vector.broadcast %363 : vector<2x16x1xf32> to vector<2x16x64xf32>
    %365 = arith.mulf %364, %359 : vector<2x16x64xf32>
    %cst_158 = arith.constant dense<0.000000e+00> : vector<2x64xf32>
    %366 = vector.multi_reduction <add>, %365, %cst_158 [1] : vector<2x16x64xf32> to vector<2x64xf32>
    %367 = arith.index_cast %c7_i32 : i32 to index
    %c0_159 = arith.constant 0 : index
    %c0_160 = arith.constant 0 : index
    %368 = vector.load %arg26[%367, %c0_159, %c0_160] : memref<8x2x64xf32, #tpu.memory_space<vmem>>, vector<1x2x64xf32>
    %369 = vector.shape_cast %368 : vector<1x2x64xf32> to vector<2x64xf32>
    %370 = vector.shape_cast %366 : vector<2x64xf32> to vector<1x2x64xf32>
    tpu.vector_store %arg26[%367, %c0_159, %c0_160], %370 {strides = array<i32>} : memref<8x2x64xf32, #tpu.memory_space<vmem>>, vector<1x2x64xf32>,
    %c8_i32 = arith.constant 8 : i32
    %c0_161 = arith.constant 0 : index
    %c0_162 = arith.constant 0 : index
    %c0_163 = arith.constant 0 : index
    %371 = vector.load %arg26[%c0_161, %c0_162, %c0_163] : memref<8x2x64xf32, #tpu.memory_space<vmem>>, vector<8x2x64xf32>
    %372 = vector.shape_cast %371 : vector<8x2x64xf32> to vector<16x64xf32>
    %c0_164 = arith.constant 0 : index
    %c0_165 = arith.constant 0 : index
    %c0_166 = arith.constant 0 : index
    %373 = vector.load %arg13[%c0_164, %c0_165, %c0_166] : memref<1x1x64xf32, #tpu.memory_space<vmem>>, vector<1x1x64xf32>
    %374 = vector.shape_cast %373 : vector<1x1x64xf32> to vector<1x64xf32>
    %375 = vector.broadcast %374 : vector<1x64xf32> to vector<16x64xf32>
    %376 = arith.mulf %375, %72 : vector<16x64xf32>
    %377 = arith.addf %372, %376 : vector<16x64xf32>
    %cst_167 = arith.constant 0.000000e+00 : f32
    %378 = vector.broadcast %cst_167 : f32 to vector<16x64xf32>
    %379 = arith.subf %378, %28 : vector<16x64xf32>
    %380 = math.exp %379 : vector<16x64xf32>
    %cst_168 = arith.constant 1.000000e+00 : f32
    %381 = vector.broadcast %cst_168 : f32 to vector<16x64xf32>
    %382 = arith.addf %381, %380 : vector<16x64xf32>
    %383 = tpu.reciprocal %382 {approx = true} : vector<16x64xf32> -> vector<16x64xf32>
    %384 = arith.mulf %28, %383 : vector<16x64xf32>
    %385 = arith.mulf %377, %384 : vector<16x64xf32>
    %c0_169 = arith.constant 0 : index
    %c0_170 = arith.constant 0 : index
    %c0_171 = arith.constant 0 : index
    %386 = vector.load %arg14[%c0_169, %c0_170, %c0_171] : memref<1x32x64xbf16, #tpu.memory_space<vmem>>, vector<1x32x64xbf16>
    %387 = vector.shape_cast %386 : vector<1x32x64xbf16> to vector<32x64xbf16>
    %388 = arith.truncf %385 : vector<16x64xf32> to vector<16x64xbf16>
    %cst_172 = arith.constant dense<0.000000e+00> : vector<16x32xf32>
    %389 = tpu.matmul %388, %387, %cst_172 {dimension_numbers = #tpu.dot_dimension_numbers<[1], [1], [0], [0], [0, 0, 1, 0], [], []>} : vector<16x64xbf16>, vector<32x64xbf16>, vector<16x32xf32> -> vector<16x32xf32>
    %390 = vector.shape_cast %389 : vector<16x32xf32> to vector<8x2x32xf32>
    %c1_i32_173 = arith.constant 1 : i32
    %391 = arith.cmpi ne, %arg1, %c1_i32_173 : i32
    %392 = arith.extui %391 : i1 to i32
    %c0_i32_174 = arith.constant 0 : i32
    %393 = arith.cmpi ne, %392, %c0_i32_174 : i32
    scf.if %393 {
      %c0_177 = arith.constant 0 : index
      %c0_178 = arith.constant 0 : index
      %c0_179 = arith.constant 0 : index
      %397 = vector.load %arg19[%c0_177, %c0_178, %c0_179] : memref<8x2x32xf32, #tpu.memory_space<vmem>>, vector<8x2x32xf32>
      tpu.vector_store %arg19[%c0_177, %c0_178, %c0_179], %390 {strides = array<i32>} : memref<8x2x32xf32, #tpu.memory_space<vmem>>, vector<8x2x32xf32>,
    } else {
    }
    %c1_i32_175 = arith.constant 1 : i32
    %394 = arith.cmpi eq, %arg1, %c1_i32_175 : i32
    %395 = arith.extui %394 : i1 to i32
    %c0_i32_176 = arith.constant 0 : i32
    %396 = arith.cmpi ne, %395, %c0_i32_176 : i32
    scf.if %396 {
      %c0_177 = arith.constant 0 : index
      %c0_178 = arith.constant 0 : index
      %c0_179 = arith.constant 0 : index
      %397 = vector.load %arg20[%c0_177, %c0_178, %c0_179] : memref<8x2x32xf32, #tpu.memory_space<vmem>>, vector<8x2x32xf32>
      %398 = arith.addf %390, %397 : vector<8x2x32xf32>
      %c0_180 = arith.constant 0 : index
      %c0_181 = arith.constant 0 : index
      %399 = vector.load %arg15[%c0_180, %c0_181] : memref<1x32xf32, #tpu.memory_space<vmem>>, vector<1x32xf32>
      %400 = arith.mulf %398, %398 : vector<8x2x32xf32>
      %cst_182 = arith.constant dense<0.000000e+00> : vector<8x2xf32>
      %401 = vector.multi_reduction <add>, %400, %cst_182 [2] : vector<8x2x32xf32> to vector<8x2xf32>
      %402 = vector.shape_cast %401 : vector<8x2xf32> to vector<8x2x1xf32>
      %cst_183 = arith.constant 3.200000e+01 : f32
      %403 = vector.broadcast %cst_183 : f32 to vector<8x2x1xf32>
      %404 = arith.divf %402, %403 : vector<8x2x1xf32>
      %cst_184 = arith.constant 9.99999974E-6 : f32
      %405 = vector.broadcast %cst_184 : f32 to vector<8x2x1xf32>
      %406 = arith.addf %404, %405 : vector<8x2x1xf32>
      %407 = math.rsqrt %406 : vector<8x2x1xf32>
      %408 = vector.broadcast %407 : vector<8x2x1xf32> to vector<8x2x32xf32>
      %409 = arith.mulf %398, %408 : vector<8x2x32xf32>
      %410 = vector.shape_cast %399 : vector<1x32xf32> to vector<1x1x32xf32>
      %411 = vector.broadcast %410 : vector<1x1x32xf32> to vector<8x2x32xf32>
      %412 = arith.mulf %409, %411 : vector<8x2x32xf32>
      %413 = vector.shape_cast %412 : vector<8x2x32xf32> to vector<16x32xf32>
      %c0_185 = arith.constant 0 : index
      %c0_186 = arith.constant 0 : index
      %414 = vector.load %arg16[%c0_185, %c0_186] : memref<16x32xbf16, #tpu.memory_space<vmem>>, vector<16x32xbf16>
      %415 = arith.truncf %413 : vector<16x32xf32> to vector<16x32xbf16>
      %cst_187 = arith.constant dense<0.000000e+00> : vector<16x16xf32>
      %416 = tpu.matmul %415, %414, %cst_187 {dimension_numbers = #tpu.dot_dimension_numbers<[1], [1], [0], [0], [0, 0, 1, 0], [], []>} : vector<16x32xbf16>, vector<16x32xbf16>, vector<16x16xf32> -> vector<16x16xf32>
      %c0_188 = arith.constant 0 : index
      %c0_189 = arith.constant 0 : index
      %417 = vector.load %arg17[%c0_188, %c0_189] : memref<1x16xf32, #tpu.memory_space<vmem>>, vector<1x16xf32>
      %418 = vector.broadcast %417 : vector<1x16xf32> to vector<16x16xf32>
      %419 = arith.addf %416, %418 : vector<16x16xf32>
      %420 = vector.shape_cast %419 : vector<16x16xf32> to vector<8x2x16xf32>
      %c0_190 = arith.constant 0 : index
      %c0_191 = arith.constant 0 : index
      %c0_192 = arith.constant 0 : index
      %421 = vector.load %arg18[%c0_190, %c0_191, %c0_192] : memref<8x2x16xf32, #tpu.memory_space<vmem>>, vector<8x2x16xf32>
      tpu.vector_store %arg18[%c0_190, %c0_191, %c0_192], %420 {strides = array<i32>} : memref<8x2x16xf32, #tpu.memory_space<vmem>>, vector<8x2x16xf32>,
    } else {
    }
    return
  }
  func.func @transform_0(%arg0: i32, %arg1: i32) -> (i32, i32, i32) {
    %c0_i32 = arith.constant 0 : i32
    %c0_i32_0 = arith.constant 0 : i32
    %c0_i32_1 = arith.constant 0 : i32
    return %c0_i32, %arg0, %c0_i32_0 : i32, i32, i32
  }
  func.func @transform_1(%arg0: i32, %arg1: i32) -> (i32, i32) {
    %c0_i32 = arith.constant 0 : i32
    %c0_i32_0 = arith.constant 0 : i32
    %c0_i32_1 = arith.constant 0 : i32
    return %c0_i32, %c0_i32_0 : i32, i32
  }
  func.func @transform_2(%arg0: i32, %arg1: i32) -> (i32, i32) {
    %c0_i32 = arith.constant 0 : i32
    %c0_i32_0 = arith.constant 0 : i32
    %c0_i32_1 = arith.constant 0 : i32
    return %c0_i32, %c0_i32_0 : i32, i32
  }
  func.func @transform_3(%arg0: i32, %arg1: i32) -> (i32, i32, i32) {
    %c0_i32 = arith.constant 0 : i32
    %c0_i32_0 = arith.constant 0 : i32
    %c0_i32_1 = arith.constant 0 : i32
    return %arg1, %c0_i32, %c0_i32_0 : i32, i32, i32
  }
  func.func @transform_4(%arg0: i32, %arg1: i32) -> (i32, i32, i32) {
    %c0_i32 = arith.constant 0 : i32
    %c0_i32_0 = arith.constant 0 : i32
    %c0_i32_1 = arith.constant 0 : i32
    return %arg1, %c0_i32, %c0_i32_0 : i32, i32, i32
  }
  func.func @transform_5(%arg0: i32, %arg1: i32) -> (i32, i32, i32) {
    %c0_i32 = arith.constant 0 : i32
    %c0_i32_0 = arith.constant 0 : i32
    %c0_i32_1 = arith.constant 0 : i32
    return %arg1, %c0_i32, %c0_i32_0 : i32, i32, i32
  }
  func.func @transform_6(%arg0: i32, %arg1: i32) -> (i32, i32, i32) {
    %c0_i32 = arith.constant 0 : i32
    %c0_i32_0 = arith.constant 0 : i32
    %c0_i32_1 = arith.constant 0 : i32
    return %arg1, %c0_i32, %c0_i32_0 : i32, i32, i32
  }
  func.func @transform_7(%arg0: i32, %arg1: i32) -> (i32, i32, i32) {
    %c0_i32 = arith.constant 0 : i32
    %c0_i32_0 = arith.constant 0 : i32
    %c0_i32_1 = arith.constant 0 : i32
    return %arg1, %c0_i32, %c0_i32_0 : i32, i32, i32
  }
  func.func @transform_8(%arg0: i32, %arg1: i32) -> (i32, i32, i32) {
    %c0_i32 = arith.constant 0 : i32
    %c0_i32_0 = arith.constant 0 : i32
    %c0_i32_1 = arith.constant 0 : i32
    return %arg1, %c0_i32, %c0_i32_0 : i32, i32, i32
  }
  func.func @transform_9(%arg0: i32, %arg1: i32) -> (i32, i32, i32) {
    %c0_i32 = arith.constant 0 : i32
    %c0_i32_0 = arith.constant 0 : i32
    %c0_i32_1 = arith.constant 0 : i32
    return %arg1, %c0_i32, %c0_i32_0 : i32, i32, i32
  }
  func.func @transform_10(%arg0: i32, %arg1: i32) -> (i32, i32, i32) {
    %c0_i32 = arith.constant 0 : i32
    %c0_i32_0 = arith.constant 0 : i32
    %c0_i32_1 = arith.constant 0 : i32
    return %arg1, %c0_i32, %c0_i32_0 : i32, i32, i32
  }
  func.func @transform_11(%arg0: i32, %arg1: i32) -> (i32, i32, i32) {
    %c0_i32 = arith.constant 0 : i32
    %c0_i32_0 = arith.constant 0 : i32
    %c0_i32_1 = arith.constant 0 : i32
    return %arg1, %c0_i32, %c0_i32_0 : i32, i32, i32
  }
  func.func @transform_12(%arg0: i32, %arg1: i32) -> (i32, i32, i32) {
    %c0_i32 = arith.constant 0 : i32
    %c0_i32_0 = arith.constant 0 : i32
    %c0_i32_1 = arith.constant 0 : i32
    return %arg1, %c0_i32, %c0_i32_0 : i32, i32, i32
  }
  func.func @transform_13(%arg0: i32, %arg1: i32) -> (i32, i32) {
    %c0_i32 = arith.constant 0 : i32
    %c0_i32_0 = arith.constant 0 : i32
    %c0_i32_1 = arith.constant 0 : i32
    return %c0_i32, %c0_i32_0 : i32, i32
  }
  func.func @transform_14(%arg0: i32, %arg1: i32) -> (i32, i32) {
    %c0_i32 = arith.constant 0 : i32
    %c0_i32_0 = arith.constant 0 : i32
    %c0_i32_1 = arith.constant 0 : i32
    return %c0_i32, %c0_i32_0 : i32, i32
  }
  func.func @transform_15(%arg0: i32, %arg1: i32) -> (i32, i32) {
    %c0_i32 = arith.constant 0 : i32
    %c0_i32_0 = arith.constant 0 : i32
    %c0_i32_1 = arith.constant 0 : i32
    return %c0_i32, %c0_i32_0 : i32, i32
  }
  func.func @transform_16(%arg0: i32, %arg1: i32) -> (i32, i32, i32) {
    %c0_i32 = arith.constant 0 : i32
    %c0_i32_0 = arith.constant 0 : i32
    %c0_i32_1 = arith.constant 0 : i32
    return %c0_i32, %arg0, %c0_i32_0 : i32, i32, i32
  }
}

</mosaic_0001>

<llo_original>
// kernel: tpu_custom_call.1
$region0: #{tpu_custom_call.1}
  #allocation0 [shape = 'u32[]', space=smem, size = 0x4, offset = 0x4, fixed_abs, tag = 'smem constant byte address 0x4 - core index']
  #allocation1 [shape = 'u32[144,128]{1,0:T(1,128)}', space=vmem, size = 0x12000, scoped, tag = 'internal scratch']
  #allocation2 [shape = 'f32[8,2,32]{2,1,0:T(2,128)}', space=vmem, size = 0x2000, scoped, tag = 'scratch operand']
  #allocation3 [shape = 'f32[8,2,32]{2,1,0:T(2,128)}', space=vmem, size = 0x2000, scoped, tag = 'scratch operand']
  #allocation4 [shape = 'f32[11,2,64]{2,1,0:T(2,128)}', space=vmem, size = 0x2c00, scoped, tag = 'scratch operand']
  #allocation5 [shape = 'f32[8,2,64]{2,1,0:T(2,128)}', space=vmem, size = 0x2000, scoped, tag = 'scratch operand']
  #allocation6 [shape = 'f32[8,2,64]{2,1,0:T(2,128)}', space=vmem, size = 0x2000, scoped, tag = 'scratch operand']
  #allocation7 [shape = 'f32[8,2,16]{2,1,0:T(2,128)}', space=vmem, size = 0x2000, scoped, tag = 'scratch operand']
  #allocation8 [shape = 'f32[8,2,16]{2,1,0:T(2,128)}', space=vmem, size = 0x2000, scoped, tag = 'scratch operand']
  #allocation9 [shape = 'f32[8,2,64]{2,1,0:T(2,128)}', space=vmem, size = 0x2000, scoped, tag = 'scratch operand']
  %s0 = inlined_call_operand.hbm [shape: f32[8,2,64], index: 0, kind: input, shape index: {}]
  %s1 = inlined_call_operand.hbm [shape: bf16[32,64], index: 1, kind: input, shape index: {}]
  %s2 = inlined_call_operand.hbm [shape: f32[1,32], index: 2, kind: input, shape index: {}]
  %s3 = inlined_call_operand.hbm [shape: f32[2,1,32], index: 3, kind: input, shape index: {}]
  %s4 = inlined_call_operand.hbm [shape: bf16[2,128,32], index: 4, kind: input, shape index: {}]
  %s5 = inlined_call_operand.hbm [shape: f32[2,4,64], index: 5, kind: input, shape index: {}]
  %s6 = inlined_call_operand.hbm [shape: f32[2,1,64], index: 6, kind: input, shape index: {}]
  %s7 = inlined_call_operand.hbm [shape: bf16[2,34,64], index: 7, kind: input, shape index: {}]
  %s8 = inlined_call_operand.hbm [shape: bf16[2,64,2], index: 8, kind: input, shape index: {}]
  %s9 = inlined_call_operand.hbm [shape: f32[2,1,64], index: 9, kind: input, shape index: {}]
  %s10 = inlined_call_operand.hbm [shape: f32[2,16,64], index: 10, kind: input, shape index: {}]
  %s11 = inlined_call_operand.hbm [shape: f32[2,1,64], index: 11, kind: input, shape index: {}]
  %s12 = inlined_call_operand.hbm [shape: bf16[2,32,64], index: 12, kind: input, shape index: {}]
  %s13 = inlined_call_operand.hbm [shape: f32[1,32], index: 13, kind: input, shape index: {}]
  %s14 = inlined_call_operand.hbm [shape: bf16[16,32], index: 14, kind: input, shape index: {}]
  %s15 = inlined_call_operand.hbm [shape: f32[1,16], index: 15, kind: input, shape index: {}]
  %s16 = inlined_call_operand.hbm [shape: f32[8,2,16], index: 16, kind: output, shape index: {}]
  %s17 = sld [smem:[#allocation0]]
  $region173: #{tpu_custom_call.1} parent=0
    _
  %s19 = ssub.s32 1, %s17
  %s20 = scalar_select 0, %s19, %s17
  $region1: #{tpu_custom_call.1} parent=0
    #allocation10 [shape = 'u8[8192]{0}', space=vmem, size = 0x2000, scoped, tag = 'input window, operand 0, single buffered']
    #allocation11 [shape = 's32[2]{0}', space=sflag, size = 0x8, scoped, tag = 'scoped memory for tpu_custom_call.1']
    #allocation12 [shape = 's32[2]{0}', space=sflag, size = 0x8, scoped, tag = 'scoped memory for tpu_custom_call.1']
    #allocation13 [shape = 'u8[8192]{0}', space=vmem, size = 0x2000, scoped, tag = 'input window, operand 1, single buffered']
    #allocation14 [shape = 's32[1]{0}', space=sflag, size = 0x4, scoped, tag = 'scoped memory for tpu_custom_call.1']
    #allocation15 [shape = 'u8[512]{0}', space=vmem, size = 0x400, scoped, tag = 'input window, operand 2, single buffered']
    #allocation16 [shape = 'u8[1024]{0}', space=vmem, size = 0x400, scoped, tag = 'input window, operand 3']
    #allocation17 [shape = 's32[2]{0}', space=sflag, size = 0x8, scoped, tag = 'scoped memory for tpu_custom_call.1']
    #allocation18 [shape = 'u8[65536]{0}', space=vmem, size = 0x10000, scoped, tag = 'input window, operand 4']
    #allocation19 [shape = 'u8[4096]{0}', space=vmem, size = 0x1000, scoped, tag = 'input window, operand 5']
    #allocation20 [shape = 's32[2]{0}', space=sflag, size = 0x8, scoped, tag = 'scoped memory for tpu_custom_call.1']
    #allocation21 [shape = 'u8[1024]{0}', space=vmem, size = 0x400, scoped, tag = 'input window, operand 6']
    #allocation22 [shape = 'u8[20480]{0}', space=vmem, size = 0x5000, scoped, tag = 'input window, operand 7']
    #allocation23 [shape = 's32[2]{0}', space=sflag, size = 0x8, scoped, tag = 'scoped memory for tpu_custom_call.1']
    #allocation24 [shape = 'u8[32768]{0}', space=vmem, size = 0x8000, scoped, tag = 'input window, operand 8']
    #allocation25 [shape = 'u8[1024]{0}', space=vmem, size = 0x400, scoped, tag = 'input window, operand 9']
    #allocation26 [shape = 's32[2]{0}', space=sflag, size = 0x8, scoped, tag = 'scoped memory for tpu_custom_call.1']
    #allocation27 [shape = 'u8[16384]{0}', space=vmem, size = 0x4000, scoped, tag = 'input window, operand 10']
    #allocation28 [shape = 'u8[1024]{0}', space=vmem, size = 0x400, scoped, tag = 'input window, operand 11']
    #allocation29 [shape = 's32[2]{0}', space=sflag, size = 0x8, scoped, tag = 'scoped memory for tpu_custom_call.1']
    #allocation30 [shape = 'u8[16384]{0}', space=vmem, size = 0x4000, scoped, tag = 'input window, operand 12']
    #allocation31 [shape = 'u8[512]{0}', space=vmem, size = 0x400, scoped, tag = 'input window, operand 13, single buffered']
    #allocation32 [shape = 's32[1]{0}', space=sflag, size = 0x4, scoped, tag = 'scoped memory for tpu_custom_call.1']
    #allocation33 [shape = 'u8[4096]{0}', space=vmem, size = 0x1000, scoped, tag = 'input window, operand 14, single buffered']
    #allocation34 [shape = 'u8[512]{0}', space=vmem, size = 0x400, scoped, tag = 'input window, operand 15, single buffered']
    #allocation35 [shape = 's32[1]{0}', space=sflag, size = 0x4, scoped, tag = 'scoped memory for tpu_custom_call.1']
    #allocation36 [shape = 'u8[8192]{0}', space=vmem, size = 0x2000, scoped, tag = 'output window, operand 0, single buffered']
    %21 = vsyncpa [#allocation11], 0
    %22 = vsyncpa [#allocation14], 0
    %23 = vsyncpa [#allocation17], 0
    %s24 = scalar_lea.sflag [#allocation17], 1
    %25 = vsyncpa %s24, 0
    %26 = vsyncpa [#allocation20], 0
    %s27 = scalar_lea.sflag [#allocation20], 1
    %28 = vsyncpa %s27, 0
    %29 = vsyncpa [#allocation23], 0
    %s30 = scalar_lea.sflag [#allocation23], 1
    %31 = vsyncpa %s30, 0
    %32 = vsyncpa [#allocation26], 0
    %s33 = scalar_lea.sflag [#allocation26], 1
    %34 = vsyncpa %s33, 0
    %35 = vsyncpa [#allocation29], 0
    %s36 = scalar_lea.sflag [#allocation29], 1
    %37 = vsyncpa %s36, 0
    %38 = vsyncpa [#allocation32], 0
    %39 = vsyncpa [#allocation35], 0
    %40 = vsyncpa [#allocation12], 0
    loop: start=0, step=1, limit=4
    $region2: #{tpu_custom_call.1} parent=1 // loop_pre_header
      _
    $region3: #{tpu_custom_call.1} parent=1 // loop_header
      %s42 = sphi 0, %s46
      %p43 = scmp.ge.s32.totalorder %s42, 4
      %s49 = sphi 0, %s61
      %s50 = sphi 0, %s57
      %s51 = sphi 0, %s49
      %s52 = sphi 0, %s50
      %s53 = sphi 0, %s51
      %s54 = sphi 0, %s52
      %s64 = sphi 0, %s66
      %s67 = sphi 0, %s64
      %s68 = sphi 0, %s67
      %s84 = sphi 0, %s68
      %s88 = sphi 0, %s88
      %s90 = sphi 0, %s88
      %s91 = sphi 0, %s90
      %s105 = sphi 0, %s91
      %s109 = sphi 0, %s109
      %s111 = sphi 0, %s109
      %s112 = sphi 0, %s111
      %s126 = sphi 0, %s112
      %s132 = sphi 0, %s134
      %s135 = sphi 0, %s132
      %s136 = sphi 0, %s135
      %s152 = sphi 0, %s136
      %s158 = sphi 0, %s160
      %s161 = sphi 0, %s158
      %s162 = sphi 0, %s161
      %s178 = sphi 0, %s162
      %s184 = sphi 0, %s186
      %s187 = sphi 0, %s184
      %s188 = sphi 0, %s187
      %s204 = sphi 0, %s188
      %s210 = sphi 0, %s212
      %s213 = sphi 0, %s210
      %s214 = sphi 0, %s213
      %s230 = sphi 0, %s214
      %s236 = sphi 0, %s238
      %s239 = sphi 0, %s236
      %s240 = sphi 0, %s239
      %s256 = sphi 0, %s240
      %s262 = sphi 0, %s264
      %s265 = sphi 0, %s262
      %s266 = sphi 0, %s265
      %s282 = sphi 0, %s266
      %s288 = sphi 0, %s290
      %s291 = sphi 0, %s288
      %s292 = sphi 0, %s291
      %s308 = sphi 0, %s292
      %s314 = sphi 0, %s316
      %s317 = sphi 0, %s314
      %s318 = sphi 0, %s317
      %s334 = sphi 0, %s318
      %s340 = sphi 0, %s342
      %s343 = sphi 0, %s340
      %s344 = sphi 0, %s343
      %s360 = sphi 0, %s344
      %s366 = sphi 0, %s368
      %s369 = sphi 0, %s366
      %s370 = sphi 0, %s369
      %s386 = sphi 0, %s370
      %s390 = sphi 0, %s390
      %s392 = sphi 0, %s390
      %s393 = sphi 0, %s392
      %s407 = sphi 0, %s393
      %s411 = sphi 0, %s411
      %s413 = sphi 0, %s411
      %s414 = sphi 0, %s413
      %s428 = sphi 0, %s414
      %s432 = sphi 0, %s432
      %s434 = sphi 0, %s432
      %s435 = sphi 0, %s434
      %s449 = sphi 0, %s435
      %s455 = sphi 0, %s457
      %s458 = sphi 0, %s455
      %s459 = sphi 0, %s458
      %s475 = sphi 0, %s459
    $region4: #{tpu_custom_call.1} parent=1 // loop_header_branch
      %45 = sbr.rel (%p43) target = $region8
    $region5: #{tpu_custom_call.1} parent=1 // loop_body
      %s47 = ssub.s32 %s42, 1
      %s48 = ssub.s32 %s42, 2
      %s55 = sadd.s32 1, %s50
      %p56 = scmp.ge.s32.totalorder %s55, 2
      %s57 = scalar_select %p56, 0, %s55
      %s58 = sadd.s32 1, %s49
      %s59 = scalar_select %p56, %s58, %s49
      %p60 = scmp.ge.s32.totalorder %s59, 1
      %s61 = scalar_select %p60, 0, %s59
      %s62 = ssub.s32 %s49, %s61
      %p63 = scmp.eq.s32.totalorder %s62, 0
      %s65 = sadd.s32 %s64, 1
      %s66 = scalar_select %p63, %s64, %s65
      %p69 = pneg %p63
      %p70 = scmp.eq.s32.totalorder %s42, 1
      %p71 = por %p69, %p70
      %p72 = scmp.ne.s32.totalorder %s64, %s67
      %p73 = scmp.eq.s32.totalorder %s42, 0
      %p74 = por %p72, %p73
      %p75 = scmp.ne.s32.totalorder %s64, %s67
      %p76 = scmp.eq.s32.totalorder %s47, 1
      %p77 = por %p75, %p76
      %p78 = scmp.ne.s32.totalorder %s67, %s68
      %p79 = scmp.eq.s32.totalorder %s47, 0
      %p80 = por %p78, %p79
      %p81 = scmp.ne.s32.totalorder %s67, %s68
      %p82 = scmp.eq.s32.totalorder %s48, 1
      %p83 = por %p81, %p82
      %p85 = scmp.ne.s32.totalorder %s68, %s84
      %p86 = scmp.eq.s32.totalorder %s48, 0
      %p87 = por %p85, %p86
      %s89 = sadd.s32 %s88, 1
      %p92 = scmp.eq.s32.totalorder %s42, 1
      %p93 = scmp.ne.s32.totalorder %s88, %s90
      %p94 = scmp.eq.s32.totalorder %s42, 0
      %p95 = por %p93, %p94
      %p96 = scmp.ne.s32.totalorder %s88, %s90
      %p97 = scmp.eq.s32.totalorder %s47, 1
      %p98 = por %p96, %p97
      %p99 = scmp.ne.s32.totalorder %s90, %s91
      %p100 = scmp.eq.s32.totalorder %s47, 0
      %p101 = por %p99, %p100
      %p102 = scmp.ne.s32.totalorder %s90, %s91
      %p103 = scmp.eq.s32.totalorder %s48, 1
      %p104 = por %p102, %p103
      %p106 = scmp.ne.s32.totalorder %s91, %s105
      %p107 = scmp.eq.s32.totalorder %s48, 0
      %p108 = por %p106, %p107
      %s110 = sadd.s32 %s109, 1
      %p113 = scmp.eq.s32.totalorder %s42, 1
      %p114 = scmp.ne.s32.totalorder %s109, %s111
      %p115 = scmp.eq.s32.totalorder %s42, 0
      %p116 = por %p114, %p115
      %p117 = scmp.ne.s32.totalorder %s109, %s111
      %p118 = scmp.eq.s32.totalorder %s47, 1
      %p119 = por %p117, %p118
      %p120 = scmp.ne.s32.totalorder %s111, %s112
      %p121 = scmp.eq.s32.totalorder %s47, 0
      %p122 = por %p120, %p121
      %p123 = scmp.ne.s32.totalorder %s111, %s112
      %p124 = scmp.eq.s32.totalorder %s48, 1
      %p125 = por %p123, %p124
      %p127 = scmp.ne.s32.totalorder %s112, %s126
      %p128 = scmp.eq.s32.totalorder %s48, 0
      %p129 = por %p127, %p128
      %s130 = ssub.s32 %s50, %s57
      %p131 = scmp.eq.s32.totalorder %s130, 0
      %s133 = sadd.s32 %s132, 1
      %s134 = scalar_select %p131, %s132, %s133
      %p137 = pneg %p131
      %p138 = scmp.eq.s32.totalorder %s42, 1
      %p139 = por %p137, %p138
      %p140 = scmp.ne.s32.totalorder %s132, %s135
      %p141 = scmp.eq.s32.totalorder %s42, 0
      %p142 = por %p140, %p141
      %p143 = scmp.ne.s32.totalorder %s132, %s135
      %p144 = scmp.eq.s32.totalorder %s47, 1
      %p145 = por %p143, %p144
      %p146 = scmp.ne.s32.totalorder %s135, %s136
      %p147 = scmp.eq.s32.totalorder %s47, 0
      %p148 = por %p146, %p147
      %p149 = scmp.ne.s32.totalorder %s135, %s136
      %p150 = scmp.eq.s32.totalorder %s48, 1
      %p151 = por %p149, %p150
      %p153 = scmp.ne.s32.totalorder %s136, %s152
      %p154 = scmp.eq.s32.totalorder %s48, 0
      %p155 = por %p153, %p154
      %s156 = ssub.s32 %s50, %s57
      %p157 = scmp.eq.s32.totalorder %s156, 0
      %s159 = sadd.s32 %s158, 1
      %s160 = scalar_select %p157, %s158, %s159
      %p163 = pneg %p157
      %p164 = scmp.eq.s32.totalorder %s42, 1
      %p165 = por %p163, %p164
      %p166 = scmp.ne.s32.totalorder %s158, %s161
      %p167 = scmp.eq.s32.totalorder %s42, 0
      %p168 = por %p166, %p167
      %p169 = scmp.ne.s32.totalorder %s158, %s161
      %p170 = scmp.eq.s32.totalorder %s47, 1
      %p171 = por %p169, %p170
      %p172 = scmp.ne.s32.totalorder %s161, %s162
      %p173 = scmp.eq.s32.totalorder %s47, 0
      %p174 = por %p172, %p173
      %p175 = scmp.ne.s32.totalorder %s161, %s162
      %p176 = scmp.eq.s32.totalorder %s48, 1
      %p177 = por %p175, %p176
      %p179 = scmp.ne.s32.totalorder %s162, %s178
      %p180 = scmp.eq.s32.totalorder %s48, 0
      %p181 = por %p179, %p180
      %s182 = ssub.s32 %s50, %s57
      %p183 = scmp.eq.s32.totalorder %s182, 0
      %s185 = sadd.s32 %s184, 1
      %s186 = scalar_select %p183, %s184, %s185
      %p189 = pneg %p183
      %p190 = scmp.eq.s32.totalorder %s42, 1
      %p191 = por %p189, %p190
      %p192 = scmp.ne.s32.totalorder %s184, %s187
      %p193 = scmp.eq.s32.totalorder %s42, 0
      %p194 = por %p192, %p193
      %p195 = scmp.ne.s32.totalorder %s184, %s187
      %p196 = scmp.eq.s32.totalorder %s47, 1
      %p197 = por %p195, %p196
      %p198 = scmp.ne.s32.totalorder %s187, %s188
      %p199 = scmp.eq.s32.totalorder %s47, 0
      %p200 = por %p198, %p199
      %p201 = scmp.ne.s32.totalorder %s187, %s188
      %p202 = scmp.eq.s32.totalorder %s48, 1
      %p203 = por %p201, %p202
      %p205 = scmp.ne.s32.totalorder %s188, %s204
      %p206 = scmp.eq.s32.totalorder %s48, 0
      %p207 = por %p205, %p206
      %s208 = ssub.s32 %s50, %s57
      %p209 = scmp.eq.s32.totalorder %s208, 0
      %s211 = sadd.s32 %s210, 1
      %s212 = scalar_select %p209, %s210, %s211
      %p215 = pneg %p209
      %p216 = scmp.eq.s32.totalorder %s42, 1
      %p217 = por %p215, %p216
      %p218 = scmp.ne.s32.totalorder %s210, %s213
      %p219 = scmp.eq.s32.totalorder %s42, 0
      %p220 = por %p218, %p219
      %p221 = scmp.ne.s32.totalorder %s210, %s213
      %p222 = scmp.eq.s32.totalorder %s47, 1
      %p223 = por %p221, %p222
      %p224 = scmp.ne.s32.totalorder %s213, %s214
      %p225 = scmp.eq.s32.totalorder %s47, 0
      %p226 = por %p224, %p225
      %p227 = scmp.ne.s32.totalorder %s213, %s214
      %p228 = scmp.eq.s32.totalorder %s48, 1
      %p229 = por %p227, %p228
      %p231 = scmp.ne.s32.totalorder %s214, %s230
      %p232 = scmp.eq.s32.totalorder %s48, 0
      %p233 = por %p231, %p232
      %s234 = ssub.s32 %s50, %s57
      %p235 = scmp.eq.s32.totalorder %s234, 0
      %s237 = sadd.s32 %s236, 1
      %s238 = scalar_select %p235, %s236, %s237
      %p241 = pneg %p235
      %p242 = scmp.eq.s32.totalorder %s42, 1
      %p243 = por %p241, %p242
      %p244 = scmp.ne.s32.totalorder %s236, %s239
      %p245 = scmp.eq.s32.totalorder %s42, 0
      %p246 = por %p244, %p245
      %p247 = scmp.ne.s32.totalorder %s236, %s239
      %p248 = scmp.eq.s32.totalorder %s47, 1
      %p249 = por %p247, %p248
      %p250 = scmp.ne.s32.totalorder %s239, %s240
      %p251 = scmp.eq.s32.totalorder %s47, 0
      %p252 = por %p250, %p251
      %p253 = scmp.ne.s32.totalorder %s239, %s240
      %p254 = scmp.eq.s32.totalorder %s48, 1
      %p255 = por %p253, %p254
      %p257 = scmp.ne.s32.totalorder %s240, %s256
      %p258 = scmp.eq.s32.totalorder %s48, 0
      %p259 = por %p257, %p258
      %s260 = ssub.s32 %s50, %s57
      %p261 = scmp.eq.s32.totalorder %s260, 0
      %s263 = sadd.s32 %s262, 1
      %s264 = scalar_select %p261, %s262, %s263
      %p267 = pneg %p261
      %p268 = scmp.eq.s32.totalorder %s42, 1
      %p269 = por %p267, %p268
      %p270 = scmp.ne.s32.totalorder %s262, %s265
      %p271 = scmp.eq.s32.totalorder %s42, 0
      %p272 = por %p270, %p271
      %p273 = scmp.ne.s32.totalorder %s262, %s265
      %p274 = scmp.eq.s32.totalorder %s47, 1
      %p275 = por %p273, %p274
      %p276 = scmp.ne.s32.totalorder %s265, %s266
      %p277 = scmp.eq.s32.totalorder %s47, 0
      %p278 = por %p276, %p277
      %p279 = scmp.ne.s32.totalorder %s265, %s266
      %p280 = scmp.eq.s32.totalorder %s48, 1
      %p281 = por %p279, %p280
      %p283 = scmp.ne.s32.totalorder %s266, %s282
      %p284 = scmp.eq.s32.totalorder %s48, 0
      %p285 = por %p283, %p284
      %s286 = ssub.s32 %s50, %s57
      %p287 = scmp.eq.s32.totalorder %s286, 0
      %s289 = sadd.s32 %s288, 1
      %s290 = scalar_select %p287, %s288, %s289
      %p293 = pneg %p287
      %p294 = scmp.eq.s32.totalorder %s42, 1
      %p295 = por %p293, %p294
      %p296 = scmp.ne.s32.totalorder %s288, %s291
      %p297 = scmp.eq.s32.totalorder %s42, 0
      %p298 = por %p296, %p297
      %p299 = scmp.ne.s32.totalorder %s288, %s291
      %p300 = scmp.eq.s32.totalorder %s47, 1
      %p301 = por %p299, %p300
      %p302 = scmp.ne.s32.totalorder %s291, %s292
      %p303 = scmp.eq.s32.totalorder %s47, 0
      %p304 = por %p302, %p303
      %p305 = scmp.ne.s32.totalorder %s291, %s292
      %p306 = scmp.eq.s32.totalorder %s48, 1
      %p307 = por %p305, %p306
      %p309 = scmp.ne.s32.totalorder %s292, %s308
      %p310 = scmp.eq.s32.totalorder %s48, 0
      %p311 = por %p309, %p310
      %s312 = ssub.s32 %s50, %s57
      %p313 = scmp.eq.s32.totalorder %s312, 0
      %s315 = sadd.s32 %s314, 1
      %s316 = scalar_select %p313, %s314, %s315
      %p319 = pneg %p313
      %p320 = scmp.eq.s32.totalorder %s42, 1
      %p321 = por %p319, %p320
      %p322 = scmp.ne.s32.totalorder %s314, %s317
      %p323 = scmp.eq.s32.totalorder %s42, 0
      %p324 = por %p322, %p323
      %p325 = scmp.ne.s32.totalorder %s314, %s317
      %p326 = scmp.eq.s32.totalorder %s47, 1
      %p327 = por %p325, %p326
      %p328 = scmp.ne.s32.totalorder %s317, %s318
      %p329 = scmp.eq.s32.totalorder %s47, 0
      %p330 = por %p328, %p329
      %p331 = scmp.ne.s32.totalorder %s317, %s318
      %p332 = scmp.eq.s32.totalorder %s48, 1
      %p333 = por %p331, %p332
      %p335 = scmp.ne.s32.totalorder %s318, %s334
      %p336 = scmp.eq.s32.totalorder %s48, 0
      %p337 = por %p335, %p336
      %s338 = ssub.s32 %s50, %s57
      %p339 = scmp.eq.s32.totalorder %s338, 0
      %s341 = sadd.s32 %s340, 1
      %s342 = scalar_select %p339, %s340, %s341
      %p345 = pneg %p339
      %p346 = scmp.eq.s32.totalorder %s42, 1
      %p347 = por %p345, %p346
      %p348 = scmp.ne.s32.totalorder %s340, %s343
      %p349 = scmp.eq.s32.totalorder %s42, 0
      %p350 = por %p348, %p349
      %p351 = scmp.ne.s32.totalorder %s340, %s343
      %p352 = scmp.eq.s32.totalorder %s47, 1
      %p353 = por %p351, %p352
      %p354 = scmp.ne.s32.totalorder %s343, %s344
      %p355 = scmp.eq.s32.totalorder %s47, 0
      %p356 = por %p354, %p355
      %p357 = scmp.ne.s32.totalorder %s343, %s344
      %p358 = scmp.eq.s32.totalorder %s48, 1
      %p359 = por %p357, %p358
      %p361 = scmp.ne.s32.totalorder %s344, %s360
      %p362 = scmp.eq.s32.totalorder %s48, 0
      %p363 = por %p361, %p362
      %s364 = ssub.s32 %s50, %s57
      %p365 = scmp.eq.s32.totalorder %s364, 0
      %s367 = sadd.s32 %s366, 1
      %s368 = scalar_select %p365, %s366, %s367
      %p371 = pneg %p365
      %p372 = scmp.eq.s32.totalorder %s42, 1
      %p373 = por %p371, %p372
      %p374 = scmp.ne.s32.totalorder %s366, %s369
      %p375 = scmp.eq.s32.totalorder %s42, 0
      %p376 = por %p374, %p375
      %p377 = scmp.ne.s32.totalorder %s366, %s369
      %p378 = scmp.eq.s32.totalorder %s47, 1
      %p379 = por %p377, %p378
      %p380 = scmp.ne.s32.totalorder %s369, %s370
      %p381 = scmp.eq.s32.totalorder %s47, 0
      %p382 = por %p380, %p381
      %p383 = scmp.ne.s32.totalorder %s369, %s370
      %p384 = scmp.eq.s32.totalorder %s48, 1
      %p385 = por %p383, %p384
      %p387 = scmp.ne.s32.totalorder %s370, %s386
      %p388 = scmp.eq.s32.totalorder %s48, 0
      %p389 = por %p387, %p388
      %s391 = sadd.s32 %s390, 1
      %p394 = scmp.eq.s32.totalorder %s42, 1
      %p395 = scmp.ne.s32.totalorder %s390, %s392
      %p396 = scmp.eq.s32.totalorder %s42, 0
      %p397 = por %p395, %p396
      %p398 = scmp.ne.s32.totalorder %s390, %s392
      %p399 = scmp.eq.s32.totalorder %s47, 1
      %p400 = por %p398, %p399
      %p401 = scmp.ne.s32.totalorder %s392, %s393
      %p402 = scmp.eq.s32.totalorder %s47, 0
      %p403 = por %p401, %p402
      %p404 = scmp.ne.s32.totalorder %s392, %s393
      %p405 = scmp.eq.s32.totalorder %s48, 1
      %p406 = por %p404, %p405
      %p408 = scmp.ne.s32.totalorder %s393, %s407
      %p409 = scmp.eq.s32.totalorder %s48, 0
      %p410 = por %p408, %p409
      %s412 = sadd.s32 %s411, 1
      %p415 = scmp.eq.s32.totalorder %s42, 1
      %p416 = scmp.ne.s32.totalorder %s411, %s413
      %p417 = scmp.eq.s32.totalorder %s42, 0
      %p418 = por %p416, %p417
      %p419 = scmp.ne.s32.totalorder %s411, %s413
      %p420 = scmp.eq.s32.totalorder %s47, 1
      %p421 = por %p419, %p420
      %p422 = scmp.ne.s32.totalorder %s413, %s414
      %p423 = scmp.eq.s32.totalorder %s47, 0
      %p424 = por %p422, %p423
      %p425 = scmp.ne.s32.totalorder %s413, %s414
      %p426 = scmp.eq.s32.totalorder %s48, 1
      %p427 = por %p425, %p426
      %p429 = scmp.ne.s32.totalorder %s414, %s428
      %p430 = scmp.eq.s32.totalorder %s48, 0
      %p431 = por %p429, %p430
      %s433 = sadd.s32 %s432, 1
      %p436 = scmp.eq.s32.totalorder %s42, 1
      %p437 = scmp.ne.s32.totalorder %s432, %s434
      %p438 = scmp.eq.s32.totalorder %s42, 0
      %p439 = por %p437, %p438
      %p440 = scmp.ne.s32.totalorder %s432, %s434
      %p441 = scmp.eq.s32.totalorder %s47, 1
      %p442 = por %p440, %p441
      %p443 = scmp.ne.s32.totalorder %s434, %s435
      %p444 = scmp.eq.s32.totalorder %s47, 0
      %p445 = por %p443, %p444
      %p446 = scmp.ne.s32.totalorder %s434, %s435
      %p447 = scmp.eq.s32.totalorder %s48, 1
      %p448 = por %p446, %p447
      %p450 = scmp.ne.s32.totalorder %s435, %s449
      %p451 = scmp.eq.s32.totalorder %s48, 0
      %p452 = por %p450, %p451
      %s453 = ssub.s32 %s49, %s61
      %p454 = scmp.eq.s32.totalorder %s453, 0
      %s456 = sadd.s32 %s455, 1
      %s457 = scalar_select %p454, %s455, %s456
      %p460 = pneg %p454
      %p461 = scmp.eq.s32.totalorder %s42, 1
      %p462 = por %p460, %p461
      %p463 = scmp.ne.s32.totalorder %s455, %s458
      %p464 = scmp.eq.s32.totalorder %s42, 0
      %p465 = por %p463, %p464
      %p466 = scmp.ne.s32.totalorder %s455, %s458
      %p467 = scmp.eq.s32.totalorder %s47, 1
      %p468 = por %p466, %p467
      %p469 = scmp.ne.s32.totalorder %s458, %s459
      %p470 = scmp.eq.s32.totalorder %s47, 0
      %p471 = por %p469, %p470
      %p472 = scmp.ne.s32.totalorder %s458, %s459
      %p473 = scmp.eq.s32.totalorder %s48, 1
      %p474 = por %p472, %p473
      %p476 = scmp.ne.s32.totalorder %s459, %s475
      %p477 = scmp.eq.s32.totalorder %s48, 0
      %p478 = por %p476, %p477
      %p479 = scmp.le.s32.totalorder 1, %s42
      %p480 = scmp.lt.s32.totalorder %s42, 3
      %p481 = pnand %p479, %p480
      %p482 = pneg %p481
      // Predicated region
      $region9: #{tpu_custom_call.1} parent=5 // pred_check
        _
      $region10: #{tpu_custom_call.1} parent=5 // pred_check_branch
        %484 = sbr.rel (%p481) target = $region12
      $region11: #{tpu_custom_call.1} parent=5 // pred_region
        %s485 = ssub.s32 %s42, 1
        // Predicated region
        $region13: #{tpu_custom_call.1} parent=11 // pred_check
          %p486 = pneg %p80
        $region14: #{tpu_custom_call.1} parent=11 // pred_check_branch
          %488 = sbr.rel (%p486) target = $region16
        $region15: #{tpu_custom_call.1} parent=11 // pred_region
          %s490 = ssub.s32 256, 256
          %491 = vsyncadd [#allocation11], %s490
          %s492 = smul.addr %s51, 32
          %s493 = scalar_lea.hbm %s0, %s492
          %s494 = sshll.u32 [#allocation10], 4
          %s495 = int_to_ptr.vmem [resolvable:$true] %s494
          %500 = dma.hbm_to_vmem [thread:$0]  %s493, 256, %s495, [#allocation11], 32, 32, 2
        $region16: #{tpu_custom_call.1} parent=11 // pred_fallthru
          _
        // Predicated region
        $region17: #{tpu_custom_call.1} parent=11 // pred_check
          %p501 = pneg %p101
        $region18: #{tpu_custom_call.1} parent=11 // pred_check_branch
          %503 = sbr.rel (%p501) target = $region20
        $region19: #{tpu_custom_call.1} parent=11 // pred_region
          %s505 = ssub.s32 256, 256
          %506 = vsyncadd [#allocation14], %s505
          %s507 = sshll.u32 [#allocation13], 4
          %s508 = int_to_ptr.vmem [resolvable:$true] %s507
          %513 = dma.hbm_to_vmem [thread:$0]  %s1, 256, %s508, [#allocation14], 64, 64, 4
        $region20: #{tpu_custom_call.1} parent=11 // pred_fallthru
          _
        // Predicated region
        $region21: #{tpu_custom_call.1} parent=11 // pred_check
          %p514 = pneg %p122
        $region22: #{tpu_custom_call.1} parent=11 // pred_check_branch
          %516 = sbr.rel (%p514) target = $region24
        $region23: #{tpu_custom_call.1} parent=11 // pred_region
          %s518 = ssub.s32 16, 16
          %519 = vsyncadd [#allocation14], %s518
          %s521 = sshll.u32 [#allocation15], 4
          %s522 = int_to_ptr.vmem [resolvable:$true] %s521
          %524 = dma.hbm_to_vmem [thread:$0]  %s2, 16, %s522, [#allocation14]
        $region24: #{tpu_custom_call.1} parent=11 // pred_fallthru
          _
        // Predicated region
        $region25: #{tpu_custom_call.1} parent=11 // pred_check
          %p525 = pneg %p403
        $region26: #{tpu_custom_call.1} parent=11 // pred_check_branch
          %527 = sbr.rel (%p525) target = $region28
        $region27: #{tpu_custom_call.1} parent=11 // pred_region
          %s529 = ssub.s32 16, 16
          %530 = vsyncadd [#allocation32], %s529
          %s532 = sshll.u32 [#allocation31], 4
          %s533 = int_to_ptr.vmem [resolvable:$true] %s532
          %535 = dma.hbm_to_vmem [thread:$0]  %s13, 16, %s533, [#allocation32]
        $region28: #{tpu_custom_call.1} parent=11 // pred_fallthru
          _
        // Predicated region
        $region29: #{tpu_custom_call.1} parent=11 // pred_check
          %p536 = pneg %p424
        $region30: #{tpu_custom_call.1} parent=11 // pred_check_branch
          %538 = sbr.rel (%p536) target = $region32
        $region31: #{tpu_custom_call.1} parent=11 // pred_region
          %s540 = ssub.s32 128, 128
          %541 = vsyncadd [#allocation32], %s540
          %s542 = sshll.u32 [#allocation33], 4
          %s543 = int_to_ptr.vmem [resolvable:$true] %s542
          %548 = dma.hbm_to_vmem [thread:$0]  %s14, 128, %s543, [#allocation32], 64, 64, 4
        $region32: #{tpu_custom_call.1} parent=11 // pred_fallthru
          _
        // Predicated region
        $region33: #{tpu_custom_call.1} parent=11 // pred_check
          %p549 = pneg %p445
        $region34: #{tpu_custom_call.1} parent=11 // pred_check_branch
          %551 = sbr.rel (%p549) target = $region36
        $region35: #{tpu_custom_call.1} parent=11 // pred_region
          %s553 = ssub.s32 16, 16
          %554 = vsyncadd [#allocation35], %s553
          %s556 = sshll.u32 [#allocation34], 4
          %s557 = int_to_ptr.vmem [resolvable:$true] %s556
          %559 = dma.hbm_to_vmem [thread:$0]  %s15, 16, %s557, [#allocation35]
        $region36: #{tpu_custom_call.1} parent=11 // pred_fallthru
          _
      $region12: #{tpu_custom_call.1} parent=5 // pred_fallthru
        _
      %p560 = scmp.lt.s32.totalorder %s42, 2
      // Predicated region
      $region37: #{tpu_custom_call.1} parent=5 // pred_check
        %p561 = pneg %p560
      $region38: #{tpu_custom_call.1} parent=5 // pred_check_branch
        %563 = sbr.rel (%p561) target = $region40
      $region39: #{tpu_custom_call.1} parent=5 // pred_region
        // Predicated region
        $region41: #{tpu_custom_call.1} parent=39 // pred_check
          %p564 = pneg %p142
        $region42: #{tpu_custom_call.1} parent=39 // pred_check_branch
          %566 = sbr.rel (%p564) target = $region44
        $region43: #{tpu_custom_call.1} parent=39 // pred_region
          %s567 = sand.u32 %s42, 1
          %s568 = scalar_lea.sflag [#allocation17], %s567
          %s569 = sand.u32 %s132, 1
          %s570 = scalar_lea.vmem [#allocation16], %s569
          %s572 = ssub.s32 16, 16
          %573 = vsyncadd %s568, %s572
          %s574 = smul.addr %s50, 16
          %s575 = scalar_lea.hbm %s3, %s574
          %s577 = sshll.u32 %s570, 4
          %s578 = int_to_ptr.vmem [resolvable:$true] %s577
          %580 = dma.hbm_to_vmem [thread:$0]  %s575, 16, %s578, %s568
        $region44: #{tpu_custom_call.1} parent=39 // pred_fallthru
          _
        // Predicated region
        $region45: #{tpu_custom_call.1} parent=39 // pred_check
          %p581 = pneg %p168
        $region46: #{tpu_custom_call.1} parent=39 // pred_check_branch
          %583 = sbr.rel (%p581) target = $region48
        $region47: #{tpu_custom_call.1} parent=39 // pred_region
          %s584 = sand.u32 %s42, 1
          %s585 = scalar_lea.sflag [#allocation17], %s584
          %s586 = sand.u32 %s158, 1
          %s587 = smul.addr %s586, 64
          %s588 = scalar_lea.vmem [#allocation18], %s587
          %s590 = ssub.s32 1024, 1024
          %591 = vsyncadd %s585, %s590
          %s592 = smul.addr %s50, 16
          %s593 = smul.addr %s592, 64
          %s594 = scalar_lea.hbm %s4, %s593
          %s595 = sshll.u32 %s588, 4
          %s596 = int_to_ptr.vmem [resolvable:$true] %s595
          %601 = dma.hbm_to_vmem [thread:$0]  %s594, 1024, %s596, %s585, 64, 64, 4
        $region48: #{tpu_custom_call.1} parent=39 // pred_fallthru
          _
        // Predicated region
        $region49: #{tpu_custom_call.1} parent=39 // pred_check
          %p602 = pneg %p194
        $region50: #{tpu_custom_call.1} parent=39 // pred_check_branch
          %604 = sbr.rel (%p602) target = $region52
        $region51: #{tpu_custom_call.1} parent=39 // pred_region
          %s605 = sand.u32 %s42, 1
          %s606 = scalar_lea.sflag [#allocation20], %s605
          %s607 = sand.u32 %s184, 1
          %s608 = smul.addr %s607, 4
          %s609 = scalar_lea.vmem [#allocation19], %s608
          %s611 = ssub.s32 64, 64
          %612 = vsyncadd %s606, %s611
          %s613 = smul.addr %s50, 64
          %s614 = scalar_lea.hbm %s5, %s613
          %s616 = sshll.u32 %s609, 4
          %s617 = int_to_ptr.vmem [resolvable:$true] %s616
          %619 = dma.hbm_to_vmem [thread:$0]  %s614, 64, %s617, %s606
        $region52: #{tpu_custom_call.1} parent=39 // pred_fallthru
          _
        // Predicated region
        $region53: #{tpu_custom_call.1} parent=39 // pred_check
          %p620 = pneg %p220
        $region54: #{tpu_custom_call.1} parent=39 // pred_check_branch
          %622 = sbr.rel (%p620) target = $region56
        $region55: #{tpu_custom_call.1} parent=39 // pred_region
          %s623 = sand.u32 %s42, 1
          %s624 = scalar_lea.sflag [#allocation20], %s623
          %s625 = sand.u32 %s210, 1
          %s626 = scalar_lea.vmem [#allocation21], %s625
          %s628 = ssub.s32 16, 16
          %629 = vsyncadd %s624, %s628
          %s630 = smul.addr %s50, 16
          %s631 = scalar_lea.hbm %s6, %s630
          %s633 = sshll.u32 %s626, 4
          %s634 = int_to_ptr.vmem [resolvable:$true] %s633
          %636 = dma.hbm_to_vmem [thread:$0]  %s631, 16, %s634, %s624
        $region56: #{tpu_custom_call.1} parent=39 // pred_fallthru
          _
        // Predicated region
        $region57: #{tpu_custom_call.1} parent=39 // pred_check
          %p637 = pneg %p246
        $region58: #{tpu_custom_call.1} parent=39 // pred_check_branch
          %639 = sbr.rel (%p637) target = $region60
        $region59: #{tpu_custom_call.1} parent=39 // pred_region
          %s640 = sand.u32 %s42, 1
          %s641 = scalar_lea.sflag [#allocation23], %s640
          %s642 = sand.u32 %s236, 1
          %s643 = smul.addr %s642, 20
          %s644 = scalar_lea.vmem [#allocation22], %s643
          %s646 = ssub.s32 320, 320
          %647 = vsyncadd %s641, %s646
          %s648 = smul.addr %s50, 5
          %s649 = smul.addr %s648, 64
          %s650 = scalar_lea.hbm %s7, %s649
          %s651 = sshll.u32 %s644, 4
          %s652 = int_to_ptr.vmem [resolvable:$true] %s651
          %657 = dma.hbm_to_vmem [thread:$0]  %s650, 320, %s652, %s641, 64, 64, 4
        $region60: #{tpu_custom_call.1} parent=39 // pred_fallthru
          _
        // Predicated region
        $region61: #{tpu_custom_call.1} parent=39 // pred_check
          %p658 = pneg %p272
        $region62: #{tpu_custom_call.1} parent=39 // pred_check_branch
          %660 = sbr.rel (%p658) target = $region64
        $region63: #{tpu_custom_call.1} parent=39 // pred_region
          %s661 = sand.u32 %s42, 1
          %s662 = scalar_lea.sflag [#allocation23], %s661
          %s663 = sand.u32 %s262, 1
          %s664 = smul.addr %s663, 32
          %s665 = scalar_lea.vmem [#allocation24], %s664
          %s667 = ssub.s32 512, 512
          %668 = vsyncadd %s662, %s667
          %s669 = smul.addr %s50, 8
          %s670 = smul.addr %s669, 64
          %s671 = scalar_lea.hbm %s8, %s670
          %s672 = sshll.u32 %s665, 4
          %s673 = int_to_ptr.vmem [resolvable:$true] %s672
          %678 = dma.hbm_to_vmem [thread:$0]  %s671, 512, %s673, %s662, 64, 64, 4
        $region64: #{tpu_custom_call.1} parent=39 // pred_fallthru
          _
        // Predicated region
        $region65: #{tpu_custom_call.1} parent=39 // pred_check
          %p679 = pneg %p298
        $region66: #{tpu_custom_call.1} parent=39 // pred_check_branch
          %681 = sbr.rel (%p679) target = $region68
        $region67: #{tpu_custom_call.1} parent=39 // pred_region
          %s682 = sand.u32 %s42, 1
          %s683 = scalar_lea.sflag [#allocation26], %s682
          %s684 = sand.u32 %s288, 1
          %s685 = scalar_lea.vmem [#allocation25], %s684
          %s687 = ssub.s32 16, 16
          %688 = vsyncadd %s683, %s687
          %s689 = smul.addr %s50, 16
          %s690 = scalar_lea.hbm %s9, %s689
          %s692 = sshll.u32 %s685, 4
          %s693 = int_to_ptr.vmem [resolvable:$true] %s692
          %695 = dma.hbm_to_vmem [thread:$0]  %s690, 16, %s693, %s683
        $region68: #{tpu_custom_call.1} parent=39 // pred_fallthru
          _
        // Predicated region
        $region69: #{tpu_custom_call.1} parent=39 // pred_check
          %p696 = pneg %p324
        $region70: #{tpu_custom_call.1} parent=39 // pred_check_branch
          %698 = sbr.rel (%p696) target = $region72
        $region71: #{tpu_custom_call.1} parent=39 // pred_region
          %s699 = sand.u32 %s42, 1
          %s700 = scalar_lea.sflag [#allocation26], %s699
          %s701 = sand.u32 %s314, 1
          %s702 = smul.addr %s701, 16
          %s703 = scalar_lea.vmem [#allocation27], %s702
          %s705 = ssub.s32 256, 256
          %706 = vsyncadd %s700, %s705
          %s707 = smul.addr %s50, 2
          %s708 = smul.addr %s707, 128
          %s709 = scalar_lea.hbm %s10, %s708
          %s710 = sshll.u32 %s703, 4
          %s711 = int_to_ptr.vmem [resolvable:$true] %s710
          %716 = dma.hbm_to_vmem [thread:$0]  %s709, 256, %s711, %s700, 128, 128, 8
        $region72: #{tpu_custom_call.1} parent=39 // pred_fallthru
          _
        // Predicated region
        $region73: #{tpu_custom_call.1} parent=39 // pred_check
          %p717 = pneg %p350
        $region74: #{tpu_custom_call.1} parent=39 // pred_check_branch
          %719 = sbr.rel (%p717) target = $region76
        $region75: #{tpu_custom_call.1} parent=39 // pred_region
          %s720 = sand.u32 %s42, 1
          %s721 = scalar_lea.sflag [#allocation29], %s720
          %s722 = sand.u32 %s340, 1
          %s723 = scalar_lea.vmem [#allocation28], %s722
          %s725 = ssub.s32 16, 16
          %726 = vsyncadd %s721, %s725
          %s727 = smul.addr %s50, 16
          %s728 = scalar_lea.hbm %s11, %s727
          %s730 = sshll.u32 %s723, 4
          %s731 = int_to_ptr.vmem [resolvable:$true] %s730
          %733 = dma.hbm_to_vmem [thread:$0]  %s728, 16, %s731, %s721
        $region76: #{tpu_custom_call.1} parent=39 // pred_fallthru
          _
        // Predicated region
        $region77: #{tpu_custom_call.1} parent=39 // pred_check
          %p734 = pneg %p376
        $region78: #{tpu_custom_call.1} parent=39 // pred_check_branch
          %736 = sbr.rel (%p734) target = $region80
        $region79: #{tpu_custom_call.1} parent=39 // pred_region
          %s737 = sand.u32 %s42, 1
          %s738 = scalar_lea.sflag [#allocation29], %s737
          %s739 = sand.u32 %s366, 1
          %s740 = smul.addr %s739, 16
          %s741 = scalar_lea.vmem [#allocation30], %s740
          %s743 = ssub.s32 256, 256
          %744 = vsyncadd %s738, %s743
          %s745 = smul.addr %s50, 4
          %s746 = smul.addr %s745, 64
          %s747 = scalar_lea.hbm %s12, %s746
          %s748 = sshll.u32 %s741, 4
          %s749 = int_to_ptr.vmem [resolvable:$true] %s748
          %754 = dma.hbm_to_vmem [thread:$0]  %s747, 256, %s749, %s738, 64, 64, 4
        $region80: #{tpu_custom_call.1} parent=39 // pred_fallthru
          _
      $region40: #{tpu_custom_call.1} parent=5 // pred_fallthru
        _
      %p755 = scmp.le.s32.totalorder 1, %s42
      %p756 = scmp.lt.s32.totalorder %s42, 3
      %p757 = pnand %p755, %p756
      %p758 = pneg %p757
      // Predicated region
      $region81: #{tpu_custom_call.1} parent=5 // pred_check
        _
      $region82: #{tpu_custom_call.1} parent=5 // pred_check_branch
        %760 = sbr.rel (%p757) target = $region84
      $region83: #{tpu_custom_call.1} parent=5 // pred_region
        %s761 = ssub.s32 %s42, 1
        // Predicated region
        $region85: #{tpu_custom_call.1} parent=83 // pred_check
          %p762 = pneg %p80
        $region86: #{tpu_custom_call.1} parent=83 // pred_check_branch
          %764 = sbr.rel (%p762) target = $region88
        $region87: #{tpu_custom_call.1} parent=83 // pred_region
          %765 = dma.done [#allocation11], 256
        $region88: #{tpu_custom_call.1} parent=83 // pred_fallthru
          _
        // Predicated region
        $region89: #{tpu_custom_call.1} parent=83 // pred_check
          %p766 = pneg %p101
        $region90: #{tpu_custom_call.1} parent=83 // pred_check_branch
          %768 = sbr.rel (%p766) target = $region92
        $region91: #{tpu_custom_call.1} parent=83 // pred_region
          %769 = dma.done [#allocation14], 256
        $region92: #{tpu_custom_call.1} parent=83 // pred_fallthru
          _
        // Predicated region
        $region93: #{tpu_custom_call.1} parent=83 // pred_check
          %p770 = pneg %p122
        $region94: #{tpu_custom_call.1} parent=83 // pred_check_branch
          %772 = sbr.rel (%p770) target = $region96
        $region95: #{tpu_custom_call.1} parent=83 // pred_region
          %773 = dma.done [#allocation14], 16
        $region96: #{tpu_custom_call.1} parent=83 // pred_fallthru
          _
        %s774 = sand.u32 %s47, 1
        %s775 = scalar_lea.sflag [#allocation17], %s774
        %s776 = sand.u32 %s135, 1
        %s777 = scalar_lea.vmem [#allocation16], %s776
        // Predicated region
        $region97: #{tpu_custom_call.1} parent=83 // pred_check
          %p778 = pneg %p148
        $region98: #{tpu_custom_call.1} parent=83 // pred_check_branch
          %780 = sbr.rel (%p778) target = $region100
        $region99: #{tpu_custom_call.1} parent=83 // pred_region
          %781 = dma.done %s775, 16
        $region100: #{tpu_custom_call.1} parent=83 // pred_fallthru
          _
        %s782 = sand.u32 %s47, 1
        %s783 = scalar_lea.sflag [#allocation17], %s782
        %s784 = sand.u32 %s161, 1
        %s785 = smul.addr %s784, 64
        %s786 = scalar_lea.vmem [#allocation18], %s785
        // Predicated region
        $region101: #{tpu_custom_call.1} parent=83 // pred_check
          %p787 = pneg %p174
        $region102: #{tpu_custom_call.1} parent=83 // pred_check_branch
          %789 = sbr.rel (%p787) target = $region104
        $region103: #{tpu_custom_call.1} parent=83 // pred_region
          %790 = dma.done %s783, 1024
        $region104: #{tpu_custom_call.1} parent=83 // pred_fallthru
          _
        %s791 = sand.u32 %s47, 1
        %s792 = scalar_lea.sflag [#allocation20], %s791
        %s793 = sand.u32 %s187, 1
        %s794 = smul.addr %s793, 4
        %s795 = scalar_lea.vmem [#allocation19], %s794
        // Predicated region
        $region105: #{tpu_custom_call.1} parent=83 // pred_check
          %p796 = pneg %p200
        $region106: #{tpu_custom_call.1} parent=83 // pred_check_branch
          %798 = sbr.rel (%p796) target = $region108
        $region107: #{tpu_custom_call.1} parent=83 // pred_region
          %799 = dma.done %s792, 64
        $region108: #{tpu_custom_call.1} parent=83 // pred_fallthru
          _
        %s800 = sand.u32 %s47, 1
        %s801 = scalar_lea.sflag [#allocation20], %s800
        %s802 = sand.u32 %s213, 1
        %s803 = scalar_lea.vmem [#allocation21], %s802
        // Predicated region
        $region109: #{tpu_custom_call.1} parent=83 // pred_check
          %p804 = pneg %p226
        $region110: #{tpu_custom_call.1} parent=83 // pred_check_branch
          %806 = sbr.rel (%p804) target = $region112
        $region111: #{tpu_custom_call.1} parent=83 // pred_region
          %807 = dma.done %s801, 16
        $region112: #{tpu_custom_call.1} parent=83 // pred_fallthru
          _
        %s808 = sand.u32 %s47, 1
        %s809 = scalar_lea.sflag [#allocation23], %s808
        %s810 = sand.u32 %s239, 1
        %s811 = smul.addr %s810, 20
        %s812 = scalar_lea.vmem [#allocation22], %s811
        // Predicated region
        $region113: #{tpu_custom_call.1} parent=83 // pred_check
          %p813 = pneg %p252
        $region114: #{tpu_custom_call.1} parent=83 // pred_check_branch
          %815 = sbr.rel (%p813) target = $region116
        $region115: #{tpu_custom_call.1} parent=83 // pred_region
          %816 = dma.done %s809, 320
        $region116: #{tpu_custom_call.1} parent=83 // pred_fallthru
          _
        %s817 = sand.u32 %s47, 1
        %s818 = scalar_lea.sflag [#allocation23], %s817
        %s819 = sand.u32 %s265, 1
        %s820 = smul.addr %s819, 32
        %s821 = scalar_lea.vmem [#allocation24], %s820
        // Predicated region
        $region117: #{tpu_custom_call.1} parent=83 // pred_check
          %p822 = pneg %p278
        $region118: #{tpu_custom_call.1} parent=83 // pred_check_branch
          %824 = sbr.rel (%p822) target = $region120
        $region119: #{tpu_custom_call.1} parent=83 // pred_region
          %825 = dma.done %s818, 512
        $region120: #{tpu_custom_call.1} parent=83 // pred_fallthru
          _
        %s826 = sand.u32 %s47, 1
        %s827 = scalar_lea.sflag [#allocation26], %s826
        %s828 = sand.u32 %s291, 1
        %s829 = scalar_lea.vmem [#allocation25], %s828
        // Predicated region
        $region121: #{tpu_custom_call.1} parent=83 // pred_check
          %p830 = pneg %p304
        $region122: #{tpu_custom_call.1} parent=83 // pred_check_branch
          %832 = sbr.rel (%p830) target = $region124
        $region123: #{tpu_custom_call.1} parent=83 // pred_region
          %833 = dma.done %s827, 16
        $region124: #{tpu_custom_call.1} parent=83 // pred_fallthru
          _
        %s834 = sand.u32 %s47, 1
        %s835 = scalar_lea.sflag [#allocation26], %s834
        %s836 = sand.u32 %s317, 1
        %s837 = smul.addr %s836, 16
        %s838 = scalar_lea.vmem [#allocation27], %s837
        // Predicated region
        $region125: #{tpu_custom_call.1} parent=83 // pred_check
          %p839 = pneg %p330
        $region126: #{tpu_custom_call.1} parent=83 // pred_check_branch
          %841 = sbr.rel (%p839) target = $region128
        $region127: #{tpu_custom_call.1} parent=83 // pred_region
          %842 = dma.done %s835, 256
        $region128: #{tpu_custom_call.1} parent=83 // pred_fallthru
          _
        %s843 = sand.u32 %s47, 1
        %s844 = scalar_lea.sflag [#allocation29], %s843
        %s845 = sand.u32 %s343, 1
        %s846 = scalar_lea.vmem [#allocation28], %s845
        // Predicated region
        $region129: #{tpu_custom_call.1} parent=83 // pred_check
          %p847 = pneg %p356
        $region130: #{tpu_custom_call.1} parent=83 // pred_check_branch
          %849 = sbr.rel (%p847) target = $region132
        $region131: #{tpu_custom_call.1} parent=83 // pred_region
          %850 = dma.done %s844, 16
        $region132: #{tpu_custom_call.1} parent=83 // pred_fallthru
          _
        %s851 = sand.u32 %s47, 1
        %s852 = scalar_lea.sflag [#allocation29], %s851
        %s853 = sand.u32 %s369, 1
        %s854 = smul.addr %s853, 16
        %s855 = scalar_lea.vmem [#allocation30], %s854
        // Predicated region
        $region133: #{tpu_custom_call.1} parent=83 // pred_check
          %p856 = pneg %p382
        $region134: #{tpu_custom_call.1} parent=83 // pred_check_branch
          %858 = sbr.rel (%p856) target = $region136
        $region135: #{tpu_custom_call.1} parent=83 // pred_region
          %859 = dma.done %s852, 256
        $region136: #{tpu_custom_call.1} parent=83 // pred_fallthru
          _
        // Predicated region
        $region137: #{tpu_custom_call.1} parent=83 // pred_check
          %p860 = pneg %p403
        $region138: #{tpu_custom_call.1} parent=83 // pred_check_branch
          %862 = sbr.rel (%p860) target = $region140
        $region139: #{tpu_custom_call.1} parent=83 // pred_region
          %863 = dma.done [#allocation32], 16
        $region140: #{tpu_custom_call.1} parent=83 // pred_fallthru
          _
        // Predicated region
        $region141: #{tpu_custom_call.1} parent=83 // pred_check
          %p864 = pneg %p424
        $region142: #{tpu_custom_call.1} parent=83 // pred_check_branch
          %866 = sbr.rel (%p864) target = $region144
        $region143: #{tpu_custom_call.1} parent=83 // pred_region
          %867 = dma.done [#allocation32], 128
        $region144: #{tpu_custom_call.1} parent=83 // pred_fallthru
          _
        // Predicated region
        $region145: #{tpu_custom_call.1} parent=83 // pred_check
          %p868 = pneg %p445
        $region146: #{tpu_custom_call.1} parent=83 // pred_check_branch
          %870 = sbr.rel (%p868) target = $region148
        $region147: #{tpu_custom_call.1} parent=83 // pred_region
          %871 = dma.done [#allocation35], 16
        $region148: #{tpu_custom_call.1} parent=83 // pred_fallthru
          _
        %p872 = pneg %p80
        %p873 = pneg %p77
        %p874 = pneg %p101
        %p875 = pneg %p98
        %p876 = pneg %p122
        %p877 = pneg %p119
        %s878 = sand.u32 %s47, 1
        %s879 = scalar_lea.sflag [#allocation17], %s878
        %s880 = sand.u32 %s135, 1
        %s881 = scalar_lea.vmem [#allocation16], %s880
        %p882 = pneg %p148
        %p883 = pneg %p145
        %s884 = sand.u32 %s47, 1
        %s885 = scalar_lea.sflag [#allocation17], %s884
        %s886 = sand.u32 %s161, 1
        %s887 = smul.addr %s886, 64
        %s888 = scalar_lea.vmem [#allocation18], %s887
        %p889 = pneg %p174
        %p890 = pneg %p171
        %s891 = sand.u32 %s47, 1
        %s892 = scalar_lea.sflag [#allocation20], %s891
        %s893 = sand.u32 %s187, 1
        %s894 = smul.addr %s893, 4
        %s895 = scalar_lea.vmem [#allocation19], %s894
        %p896 = pneg %p200
        %p897 = pneg %p197
        %s898 = sand.u32 %s47, 1
        %s899 = scalar_lea.sflag [#allocation20], %s898
        %s900 = sand.u32 %s213, 1
        %s901 = scalar_lea.vmem [#allocation21], %s900
        %p902 = pneg %p226
        %p903 = pneg %p223
        %s904 = sand.u32 %s47, 1
        %s905 = scalar_lea.sflag [#allocation23], %s904
        %s906 = sand.u32 %s239, 1
        %s907 = smul.addr %s906, 20
        %s908 = scalar_lea.vmem [#allocation22], %s907
        %p909 = pneg %p252
        %p910 = pneg %p249
        %s911 = sand.u32 %s47, 1
        %s912 = scalar_lea.sflag [#allocation23], %s911
        %s913 = sand.u32 %s265, 1
        %s914 = smul.addr %s913, 32
        %s915 = scalar_lea.vmem [#allocation24], %s914
        %p916 = pneg %p278
        %p917 = pneg %p275
        %s918 = sand.u32 %s47, 1
        %s919 = scalar_lea.sflag [#allocation26], %s918
        %s920 = sand.u32 %s291, 1
        %s921 = scalar_lea.vmem [#allocation25], %s920
        %p922 = pneg %p304
        %p923 = pneg %p301
        %s924 = sand.u32 %s47, 1
        %s925 = scalar_lea.sflag [#allocation26], %s924
        %s926 = sand.u32 %s317, 1
        %s927 = smul.addr %s926, 16
        %s928 = scalar_lea.vmem [#allocation27], %s927
        %p929 = pneg %p330
        %p930 = pneg %p327
        %s931 = sand.u32 %s47, 1
        %s932 = scalar_lea.sflag [#allocation29], %s931
        %s933 = sand.u32 %s343, 1
        %s934 = scalar_lea.vmem [#allocation28], %s933
        %p935 = pneg %p356
        %p936 = pneg %p353
        %s937 = sand.u32 %s47, 1
        %s938 = scalar_lea.sflag [#allocation29], %s937
        %s939 = sand.u32 %s369, 1
        %s940 = smul.addr %s939, 16
        %s941 = scalar_lea.vmem [#allocation30], %s940
        %p942 = pneg %p382
        %p943 = pneg %p379
        %p944 = pneg %p403
        %p945 = pneg %p400
        %p946 = pneg %p424
        %p947 = pneg %p421
        %p948 = pneg %p445
        %p949 = pneg %p442
        %p950 = pneg %p471
        %p951 = pneg %p468
        %p953 = scmp.eq.s32.totalorder %s52, 0
        // Predicated region
        $region149: #{tpu_custom_call.1} parent=83 // pred_check
          %p954 = pneg %p953
        $region150: #{tpu_custom_call.1} parent=83 // pred_check_branch
          %956 = sbr.rel (%p954) target = $region152
        $region151: #{tpu_custom_call.1} parent=83 // pred_region
          %v957 = vld [vmem:[#allocation10] sm:$0x3]
          %v958 = vld [vmem:[#allocation10 + $0x2] sm:$0x3]
          %v959 = vld [vmem:[#allocation10 + $0x4] sm:$0x3]
          %v960 = vld [vmem:[#allocation10 + $0x6] sm:$0x3]
          %v961 = vld [vmem:[#allocation10 + $0x8] sm:$0x3]
          %v962 = vld [vmem:[#allocation10 + $0xa] sm:$0x3]
          %v963 = vld [vmem:[#allocation10 + $0xc] sm:$0x3]
          %v964 = vld [vmem:[#allocation10 + $0xe] sm:$0x3]
          %v965 = vld [vmem:[#allocation13] sm:$0xf]
          %v966 = vld [vmem:[#allocation13 + $0x4] sm:$0xf]
          %v967 = vld [vmem:[#allocation13 + $0x8] sm:$0xf]
          %v968 = vld [vmem:[#allocation13 + $0xc] sm:$0xf]
          %v977 = vcombine.low %v957, %v958
          %v978 = vcombine.low %v959, %v960
          %v980 = vunpack.c.l.s4 1983009808
          %v981 = vunpack.c.0.s8 %v980
          %v982 = vlaneseq
          %v983 = vshrl.u32 %v982, 7
          %v984 = vsub.s32 %v981, %v983
          %v985 = vrot.slane %v977, %v984
          %v987 = vunpack.c.l.s4 1983009808
          %v988 = vunpack.c.0.s8 %v987
          %v989 = vlaneseq
          %v990 = vshrl.u32 %v989, 7
          %v991 = vsub.s32 %v988, %v990
          %v992 = vrot.slane %v978, %v991
          %v993 = vcombine.low %v985, %v992
          %v994 = vcombine.low %v961, %v962
          %v995 = vcombine.low %v963, %v964
          %v997 = vunpack.c.l.s4 1983009808
          %v998 = vunpack.c.0.s8 %v997
          %v999 = vlaneseq
          %v1000 = vshrl.u32 %v999, 7
          %v1001 = vsub.s32 %v998, %v1000
          %v1002 = vrot.slane %v994, %v1001
          %v1004 = vunpack.c.l.s4 1983009808
          %v1005 = vunpack.c.0.s8 %v1004
          %v1006 = vlaneseq
          %v1007 = vshrl.u32 %v1006, 7
          %v1008 = vsub.s32 %v1005, %v1007
          %v1009 = vrot.slane %v995, %v1008
          %v1010 = vcombine.low %v1002, %v1009
          %v1013 = vpack.c.bf16 %v1010, %v993
          %v1014 = vld [vmem:[#allocation15] sm:$0x1]
          %v1016 = vlaneseq
          %v1017 = vshrl.u32 %v1016, 7
          %v1018 = vsub.s32 0, %v1017
          %v1019 = vrot.slane %v1014, %v1018
          %v1025 = vunpack.c.l.b16 %v965
          %v1026 = vunpack.c.l.b16 %v966
          %v1027 = vunpack.c.l.b16 %v967
          %v1028 = vunpack.c.l.b16 %v968
          %v1029 = vpack.c.b16 %v1026, %v1025
          %v1030 = vpack.c.b16 %v1028, %v1027
          %vm1031 = vcmask 523264
          %v1033 = vsel %vm1031, %v1013, 0
          %v1036 = vsel %vm1031, %v1029, 0
          %v1039 = vsel %vm1031, %v1030, 0
          %1041 = vmatprep.subr.bf16.mxu0 0
          %1042 = vmatpush1.bf16.xpose.msra.mxu0 %v1036
          %1043 = vmatprep.subr.bf16.mxu0 0
          %1044 = vmatpush1.bf16.xpose.msra.mxu0 %v1039
          %1045 = vmatprep.subr.bf16.mxu0 0
          %1046 = vmatpush1.bf16.xpose.msra.mxu0 0
          %1047 = vmatprep.subr.bf16.mxu0 0
          %1048 = vmatpush1.bf16.xpose.msra.mxu0 0
          %1049 = vmatprep.subr.bf16.mxu0 0
          %1050 = vmatpush1.bf16.xpose.msra.mxu0 0
          %1051 = vmatprep.subr.bf16.mxu0 0
          %1052 = vmatpush1.bf16.xpose.msra.mxu0 0
          %1053 = vmatprep.subr.bf16.mxu0 0
          %1054 = vmatpush1.bf16.xpose.msra.mxu0 0
          %1055 = vmatprep.subr.bf16.mxu0 0
          %1056 = vmatpush1.bf16.xpose.msra.mxu0 0
          %1057 = vmatprep.subr.bf16.mxu0 0
          %1058 = vmatpush1.bf16.xpose.msra.mxu0 0
          %1059 = vmatprep.subr.bf16.mxu0 0
          %1060 = vmatpush1.bf16.xpose.msra.mxu0 0
          %1061 = vmatprep.subr.bf16.mxu0 0
          %1062 = vmatpush1.bf16.xpose.msra.mxu0 0
          %1063 = vmatprep.subr.bf16.mxu0 0
          %1064 = vmatpush1.bf16.xpose.msra.mxu0 0
          %1065 = vmatprep.subr.bf16.mxu0 0
          %1066 = vmatpush1.bf16.xpose.msra.mxu0 0
          %1067 = vmatprep.subr.bf16.mxu0 0
          %1068 = vmatpush1.bf16.xpose.msra.mxu0 0
          %1069 = vmatprep.subr.bf16.mxu0 0
          %1070 = vmatpush1.bf16.xpose.msra.mxu0 0
          %1071 = vmatprep.subr.bf16.mxu0 0
          %1072 = vmatpush1.bf16.xpose.msra.mxu0 0
          %1073 = vmatprep.mubr.bf16.mxu0 0
          %1074 = vmatmul.mubr.bf16.gmra.mrb[0].mxu0 %v1033
          %v1075 = vpop.f32.mrb[0].mxu0
          %v1076 = vadd.f32 %v1019, %v1075
          %v1077 = vpop.f32.mrb[0].mxu0
          %v1078 = vpop.f32.mrb[0].mxu0
          %v1079 = vadd.f32 %v1019, %v1078
          %v1080 = vpop.f32.mrb[0].mxu0
          %1081 = vdwg.mxu0
          %v1084 = vcombine.high %v1076, %v1076
          %v1086 = vunpack.c.l.s4 1983009808
          %v1087 = vunpack.c.0.s8 %v1086
          %v1088 = vlaneseq
          %v1089 = vshrl.u32 %v1088, 7
          %v1090 = vsub.s32 %v1087, %v1089
          %v1091 = vrot.slane %v1076, %v1090
          %v1093 = vunpack.c.l.s4 1983009808
          %v1094 = vunpack.c.0.s8 %v1093
          %v1095 = vlaneseq
          %v1096 = vshrl.u32 %v1095, 7
          %v1097 = vsub.s32 %v1094, %v1096
          %v1098 = vrot.slane %v1084, %v1097
          %v1099 = vcombine.high %v1091, %v1091
          %v1100 = vcombine.high %v1098, %v1098
          %v1101 = vcombine.high %v1079, %v1079
          %v1103 = vunpack.c.l.s4 1983009808
          %v1104 = vunpack.c.0.s8 %v1103
          %v1105 = vlaneseq
          %v1106 = vshrl.u32 %v1105, 7
          %v1107 = vsub.s32 %v1104, %v1106
          %v1108 = vrot.slane %v1079, %v1107
          %v1110 = vunpack.c.l.s4 1983009808
          %v1111 = vunpack.c.0.s8 %v1110
          %v1112 = vlaneseq
          %v1113 = vshrl.u32 %v1112, 7
          %v1114 = vsub.s32 %v1111, %v1113
          %v1115 = vrot.slane %v1101, %v1114
          %v1116 = vcombine.high %v1108, %v1108
          %v1117 = vcombine.high %v1115, %v1115
          %vm1126 = vcmask 254976
          %1127 = vst.msk [vmem:[#allocation2] sm:$0x3] %vm1126, %v1091
          %1128 = vst.msk [vmem:[#allocation2 + $0x2] sm:$0x3] %vm1126, %v1099
          %1129 = vst.msk [vmem:[#allocation2 + $0x4] sm:$0x3] %vm1126, %v1098
          %1130 = vst.msk [vmem:[#allocation2 + $0x6] sm:$0x3] %vm1126, %v1100
          %1131 = vst.msk [vmem:[#allocation2 + $0x8] sm:$0x3] %vm1126, %v1108
          %1132 = vst.msk [vmem:[#allocation2 + $0xa] sm:$0x3] %vm1126, %v1116
          %1133 = vst.msk [vmem:[#allocation2 + $0xc] sm:$0x3] %vm1126, %v1115
          %1134 = vst.msk [vmem:[#allocation2 + $0xe] sm:$0x3] %vm1126, %v1117
          %1135 = vst.msk [vmem:[#allocation3] sm:$0x3] %vm1126, 0.0
          %1136 = vst.msk [vmem:[#allocation3 + $0x2] sm:$0x3] %vm1126, 0.0
          %1137 = vst.msk [vmem:[#allocation3 + $0x4] sm:$0x3] %vm1126, 0.0
          %1138 = vst.msk [vmem:[#allocation3 + $0x6] sm:$0x3] %vm1126, 0.0
          %1139 = vst.msk [vmem:[#allocation3 + $0x8] sm:$0x3] %vm1126, 0.0
          %1140 = vst.msk [vmem:[#allocation3 + $0xa] sm:$0x3] %vm1126, 0.0
          %1141 = vst.msk [vmem:[#allocation3 + $0xc] sm:$0x3] %vm1126, 0.0
          %1142 = vst.msk [vmem:[#allocation3 + $0xe] sm:$0x3] %vm1126, 0.0
        $region152: #{tpu_custom_call.1} parent=83 // pred_fallthru
          _
        %v1143 = vld [vmem:[#allocation2] sm:$0x3]
        %v1144 = vld [vmem:[#allocation2 + $0x2] sm:$0x3]
        %v1145 = vld [vmem:[#allocation2 + $0x4] sm:$0x3]
        %v1146 = vld [vmem:[#allocation2 + $0x6] sm:$0x3]
        %v1147 = vld [vmem:[#allocation2 + $0x8] sm:$0x3]
        %v1148 = vld [vmem:[#allocation2 + $0xa] sm:$0x3]
        %v1149 = vld [vmem:[#allocation2 + $0xc] sm:$0x3]
        %v1150 = vld [vmem:[#allocation2 + $0xe] sm:$0x3]
        %v1151 = vld [vmem:[#allocation3] sm:$0x3]
        %v1152 = vld [vmem:[#allocation3 + $0x2] sm:$0x3]
        %v1153 = vld [vmem:[#allocation3 + $0x4] sm:$0x3]
        %v1154 = vld [vmem:[#allocation3 + $0x6] sm:$0x3]
        %v1155 = vld [vmem:[#allocation3 + $0x8] sm:$0x3]
        %v1156 = vld [vmem:[#allocation3 + $0xa] sm:$0x3]
        %v1157 = vld [vmem:[#allocation3 + $0xc] sm:$0x3]
        %v1158 = vld [vmem:[#allocation3 + $0xe] sm:$0x3]
        %v1159 = vadd.f32 %v1143, %v1151
        %v1160 = vadd.f32 %v1144, %v1152
        %v1161 = vadd.f32 %v1145, %v1153
        %v1162 = vadd.f32 %v1146, %v1154
        %v1163 = vadd.f32 %v1147, %v1155
        %v1164 = vadd.f32 %v1148, %v1156
        %v1165 = vadd.f32 %v1149, %v1157
        %v1166 = vadd.f32 %v1150, %v1158
        %vm1167 = vcmask 254976
        %1168 = vst.msk [vmem:[#allocation3] sm:$0x3] %vm1167, %v1159
        %1169 = vst.msk [vmem:[#allocation3 + $0x2] sm:$0x3] %vm1167, %v1160
        %1170 = vst.msk [vmem:[#allocation3 + $0x4] sm:$0x3] %vm1167, %v1161
        %1171 = vst.msk [vmem:[#allocation3 + $0x6] sm:$0x3] %vm1167, %v1162
        %1172 = vst.msk [vmem:[#allocation3 + $0x8] sm:$0x3] %vm1167, %v1163
        %1173 = vst.msk [vmem:[#allocation3 + $0xa] sm:$0x3] %vm1167, %v1164
        %1174 = vst.msk [vmem:[#allocation3 + $0xc] sm:$0x3] %vm1167, %v1165
        %1175 = vst.msk [vmem:[#allocation3 + $0xe] sm:$0x3] %vm1167, %v1166
        %v1176 = vld [vmem:[%s777] sm:$0x1]
        %v1177 = vmul.f32 %v1159, %v1159
        %v1178 = vmul.f32 %v1160, %v1160
        %v1179 = vmul.f32 %v1161, %v1161
        %v1180 = vmul.f32 %v1162, %v1162
        %v1181 = vmul.f32 %v1163, %v1163
        %v1182 = vmul.f32 %v1164, %v1164
        %v1183 = vmul.f32 %v1165, %v1165
        %v1184 = vmul.f32 %v1166, %v1166
        %v1185 = vsel %vm1167, %v1177, 0.0
        %1186 = vadd.xlane.f32.xlu0 %v1185
        %v1187 = vpop.xlane.xlu0 %1186
        %v1188 = vsel %vm1167, %v1178, 0.0
        %1189 = vadd.xlane.f32.xlu0 %v1188
        %v1190 = vpop.xlane.xlu0 %1189
        %v1191 = vsel %vm1167, %v1179, 0.0
        %1192 = vadd.xlane.f32.xlu0 %v1191
        %v1193 = vpop.xlane.xlu0 %1192
        %v1194 = vsel %vm1167, %v1180, 0.0
        %1195 = vadd.xlane.f32.xlu0 %v1194
        %v1196 = vpop.xlane.xlu0 %1195
        %v1197 = vsel %vm1167, %v1181, 0.0
        %1198 = vadd.xlane.f32.xlu0 %v1197
        %v1199 = vpop.xlane.xlu0 %1198
        %v1200 = vsel %vm1167, %v1182, 0.0
        %1201 = vadd.xlane.f32.xlu0 %v1200
        %v1202 = vpop.xlane.xlu0 %1201
        %v1203 = vsel %vm1167, %v1183, 0.0
        %1204 = vadd.xlane.f32.xlu0 %v1203
        %v1205 = vpop.xlane.xlu0 %1204
        %v1206 = vsel %vm1167, %v1184, 0.0
        %1207 = vadd.xlane.f32.xlu0 %v1206
        %v1208 = vpop.xlane.xlu0 %1207
        %v1209 = vrcp.pop 32.0
        %v1210 = vmul.f32 %v1187, %v1209
        %v1211 = vmul.f32 %v1190, %v1209
        %v1212 = vmul.f32 %v1193, %v1209
        %v1213 = vmul.f32 %v1196, %v1209
        %v1214 = vmul.f32 %v1199, %v1209
        %v1215 = vmul.f32 %v1202, %v1209
        %v1216 = vmul.f32 %v1205, %v1209
        %v1217 = vmul.f32 %v1208, %v1209
        %v1218 = vadd.f32 %v1210, 1e-05
        %v1219 = vadd.f32 %v1211, 1e-05
        %v1220 = vadd.f32 %v1212, 1e-05
        %v1221 = vadd.f32 %v1213, 1e-05
        %v1222 = vadd.f32 %v1214, 1e-05
        %v1223 = vadd.f32 %v1215, 1e-05
        %v1224 = vadd.f32 %v1216, 1e-05
        %v1225 = vadd.f32 %v1217, 1e-05
        %v1226 = vrsqrt.pop %v1218
        %v1227 = vrsqrt.pop %v1219
        %v1228 = vrsqrt.pop %v1220
        %v1229 = vrsqrt.pop %v1221
        %v1230 = vrsqrt.pop %v1222
        %v1231 = vrsqrt.pop %v1223
        %v1232 = vrsqrt.pop %v1224
        %v1233 = vrsqrt.pop %v1225
        %v1234 = vmul.f32 %v1159, %v1226
        %v1235 = vmul.f32 %v1160, %v1227
        %v1236 = vmul.f32 %v1161, %v1228
        %v1237 = vmul.f32 %v1162, %v1229
        %v1238 = vmul.f32 %v1163, %v1230
        %v1239 = vmul.f32 %v1164, %v1231
        %v1240 = vmul.f32 %v1165, %v1232
        %v1241 = vmul.f32 %v1166, %v1233
        %v1243 = vlaneseq
        %v1244 = vshrl.u32 %v1243, 7
        %v1245 = vsub.s32 0, %v1244
        %v1246 = vrot.slane %v1176, %v1245
        %v1248 = vmul.f32 %v1234, %v1246
        %v1249 = vmul.f32 %v1235, %v1246
        %v1250 = vmul.f32 %v1236, %v1246
        %v1251 = vmul.f32 %v1237, %v1246
        %v1252 = vmul.f32 %v1238, %v1246
        %v1253 = vmul.f32 %v1239, %v1246
        %v1254 = vmul.f32 %v1240, %v1246
        %v1255 = vmul.f32 %v1241, %v1246
        %v1256 = vld [vmem:[%s786] sm:$0xf]
        %v1257 = vld [vmem:[%s786 + $0x4] sm:$0xf]
        %v1258 = vld [vmem:[%s786 + $0x8] sm:$0xf]
        %v1259 = vld [vmem:[%s786 + $0xc] sm:$0xf]
        %v1260 = vld [vmem:[%s786 + $0x10] sm:$0xf]
        %v1261 = vld [vmem:[%s786 + $0x14] sm:$0xf]
        %v1262 = vld [vmem:[%s786 + $0x18] sm:$0xf]
        %v1263 = vld [vmem:[%s786 + $0x1c] sm:$0xf]
        %v1264 = vld [vmem:[%s786 + $0x20] sm:$0xf]
        %v1265 = vld [vmem:[%s786 + $0x24] sm:$0xf]
        %v1266 = vld [vmem:[%s786 + $0x28] sm:$0xf]
        %v1267 = vld [vmem:[%s786 + $0x2c] sm:$0xf]
        %v1268 = vld [vmem:[%s786 + $0x30] sm:$0xf]
        %v1269 = vld [vmem:[%s786 + $0x34] sm:$0xf]
        %v1270 = vld [vmem:[%s786 + $0x38] sm:$0xf]
        %v1271 = vld [vmem:[%s786 + $0x3c] sm:$0xf]
        %v1280 = vcombine.low %v1248, %v1249
        %v1281 = vcombine.low %v1250, %v1251
        %v1283 = vunpack.c.l.s4 1983009808
        %v1284 = vunpack.c.0.s8 %v1283
        %v1285 = vlaneseq
        %v1286 = vshrl.u32 %v1285, 7
        %v1287 = vsub.s32 %v1284, %v1286
        %v1288 = vrot.slane %v1280, %v1287
        %v1290 = vunpack.c.l.s4 1983009808
        %v1291 = vunpack.c.0.s8 %v1290
        %v1292 = vlaneseq
        %v1293 = vshrl.u32 %v1292, 7
        %v1294 = vsub.s32 %v1291, %v1293
        %v1295 = vrot.slane %v1281, %v1294
        %v1296 = vcombine.low %v1288, %v1295
        %v1297 = vcombine.low %v1252, %v1253
        %v1298 = vcombine.low %v1254, %v1255
        %v1300 = vunpack.c.l.s4 1983009808
        %v1301 = vunpack.c.0.s8 %v1300
        %v1302 = vlaneseq
        %v1303 = vshrl.u32 %v1302, 7
        %v1304 = vsub.s32 %v1301, %v1303
        %v1305 = vrot.slane %v1297, %v1304
        %v1307 = vunpack.c.l.s4 1983009808
        %v1308 = vunpack.c.0.s8 %v1307
        %v1309 = vlaneseq
        %v1310 = vshrl.u32 %v1309, 7
        %v1311 = vsub.s32 %v1308, %v1310
        %v1312 = vrot.slane %v1298, %v1311
        %v1313 = vcombine.low %v1305, %v1312
        %v1316 = vpack.c.bf16 %v1313, %v1296
        %v1333 = vunpack.c.l.b16 %v1256
        %v1334 = vunpack.c.l.b16 %v1257
        %v1335 = vunpack.c.l.b16 %v1258
        %v1336 = vunpack.c.l.b16 %v1259
        %v1337 = vunpack.c.l.b16 %v1260
        %v1338 = vunpack.c.l.b16 %v1261
        %v1339 = vunpack.c.l.b16 %v1262
        %v1340 = vunpack.c.l.b16 %v1263
        %v1341 = vunpack.c.l.b16 %v1264
        %v1342 = vunpack.c.l.b16 %v1265
        %v1343 = vunpack.c.l.b16 %v1266
        %v1344 = vunpack.c.l.b16 %v1267
        %v1345 = vunpack.c.l.b16 %v1268
        %v1346 = vunpack.c.l.b16 %v1269
        %v1347 = vunpack.c.l.b16 %v1270
        %v1348 = vunpack.c.l.b16 %v1271
        %v1349 = vpack.c.b16 %v1334, %v1333
        %v1350 = vpack.c.b16 %v1336, %v1335
        %v1351 = vpack.c.b16 %v1338, %v1337
        %v1352 = vpack.c.b16 %v1340, %v1339
        %v1353 = vpack.c.b16 %v1342, %v1341
        %v1354 = vpack.c.b16 %v1344, %v1343
        %v1355 = vpack.c.b16 %v1346, %v1345
        %v1356 = vpack.c.b16 %v1348, %v1347
        %vm1357 = vcmask 261120
        %v1359 = vsel %vm1357, %v1316, 0
        %v1362 = vsel %vm1357, %v1349, 0
        %v1365 = vsel %vm1357, %v1350, 0
        %v1368 = vsel %vm1357, %v1351, 0
        %v1371 = vsel %vm1357, %v1352, 0
        %v1374 = vsel %vm1357, %v1353, 0
        %v1377 = vsel %vm1357, %v1354, 0
        %v1380 = vsel %vm1357, %v1355, 0
        %v1383 = vsel %vm1357, %v1356, 0
        %1385 = vmatprep.subr.bf16.mxu0 0
        %1386 = vmatpush1.bf16.xpose.msra.mxu0 %v1362
        %1387 = vmatprep.subr.bf16.mxu0 0
        %1388 = vmatpush1.bf16.xpose.msra.mxu0 %v1365
        %1389 = vmatprep.subr.bf16.mxu0 0
        %1390 = vmatpush1.bf16.xpose.msra.mxu0 %v1368
        %1391 = vmatprep.subr.bf16.mxu0 0
        %1392 = vmatpush1.bf16.xpose.msra.mxu0 %v1371
        %1393 = vmatprep.subr.bf16.mxu0 0
        %1394 = vmatpush1.bf16.xpose.msra.mxu0 %v1374
        %1395 = vmatprep.subr.bf16.mxu0 0
        %1396 = vmatpush1.bf16.xpose.msra.mxu0 %v1377
        %1397 = vmatprep.subr.bf16.mxu0 0
        %1398 = vmatpush1.bf16.xpose.msra.mxu0 %v1380
        %1399 = vmatprep.subr.bf16.mxu0 0
        %1400 = vmatpush1.bf16.xpose.msra.mxu0 %v1383
        %1401 = vmatprep.subr.bf16.mxu0 0
        %1402 = vmatpush1.bf16.xpose.msra.mxu0 0
        %1403 = vmatprep.subr.bf16.mxu0 0
        %1404 = vmatpush1.bf16.xpose.msra.mxu0 0
        %1405 = vmatprep.subr.bf16.mxu0 0
        %1406 = vmatpush1.bf16.xpose.msra.mxu0 0
        %1407 = vmatprep.subr.bf16.mxu0 0
        %1408 = vmatpush1.bf16.xpose.msra.mxu0 0
        %1409 = vmatprep.subr.bf16.mxu0 0
        %1410 = vmatpush1.bf16.xpose.msra.mxu0 0
        %1411 = vmatprep.subr.bf16.mxu0 0
        %1412 = vmatpush1.bf16.xpose.msra.mxu0 0
        %1413 = vmatprep.subr.bf16.mxu0 0
        %1414 = vmatpush1.bf16.xpose.msra.mxu0 0
        %1415 = vmatprep.subr.bf16.mxu0 0
        %1416 = vmatpush1.bf16.xpose.msra.mxu0 0
        %1417 = vmatprep.mubr.bf16.mxu0 0
        %1418 = vmatmul.mubr.bf16.gmra.mrb[0].mxu0 %v1359
        %v1419 = vpop.f32.mrb[0].mxu0
        %v1420 = vadd.f32 0.0, %v1419
        %v1421 = vpop.f32.mrb[0].mxu0
        %v1422 = vpop.f32.mrb[0].mxu0
        %v1423 = vadd.f32 0.0, %v1422
        %v1424 = vpop.f32.mrb[0].mxu0
        %1425 = vdwg.mxu0
        %vm1426 = vcmask 517120
        %1427 = vst.msk [vmem:[#allocation4] sm:$0x3] %vm1426, 0.0
        %1428 = vst.msk [vmem:[#allocation4 + $0x2] sm:$0x3] %vm1426, 0.0
        %1429 = vst.msk [vmem:[#allocation4 + $0x4] sm:$0x3] %vm1426, 0.0
        %v1432 = vcombine.high %v1420, %v1420
        %v1434 = vunpack.c.l.s4 1983009808
        %v1435 = vunpack.c.0.s8 %v1434
        %v1436 = vlaneseq
        %v1437 = vshrl.u32 %v1436, 7
        %v1438 = vsub.s32 %v1435, %v1437
        %v1439 = vrot.slane %v1420, %v1438
        %v1441 = vunpack.c.l.s4 1983009808
        %v1442 = vunpack.c.0.s8 %v1441
        %v1443 = vlaneseq
        %v1444 = vshrl.u32 %v1443, 7
        %v1445 = vsub.s32 %v1442, %v1444
        %v1446 = vrot.slane %v1432, %v1445
        %v1447 = vcombine.high %v1439, %v1439
        %v1448 = vcombine.high %v1446, %v1446
        %v1449 = vcombine.high %v1423, %v1423
        %v1451 = vunpack.c.l.s4 1983009808
        %v1452 = vunpack.c.0.s8 %v1451
        %v1453 = vlaneseq
        %v1454 = vshrl.u32 %v1453, 7
        %v1455 = vsub.s32 %v1452, %v1454
        %v1456 = vrot.slane %v1423, %v1455
        %v1458 = vunpack.c.l.s4 1983009808
        %v1459 = vunpack.c.0.s8 %v1458
        %v1460 = vlaneseq
        %v1461 = vshrl.u32 %v1460, 7
        %v1462 = vsub.s32 %v1459, %v1461
        %v1463 = vrot.slane %v1449, %v1462
        %v1464 = vcombine.high %v1456, %v1456
        %v1465 = vcombine.high %v1463, %v1463
        %s1474 = scalar_lea.vmem [#allocation4], 6
        %1475 = vst.msk [vmem:[%s1474] sm:$0x3] %vm1426, %v1439
        %1476 = vst.msk [vmem:[%s1474 + $0x2] sm:$0x3] %vm1426, %v1447
        %1477 = vst.msk [vmem:[%s1474 + $0x4] sm:$0x3] %vm1426, %v1446
        %1478 = vst.msk [vmem:[%s1474 + $0x6] sm:$0x3] %vm1426, %v1448
        %1479 = vst.msk [vmem:[%s1474 + $0x8] sm:$0x3] %vm1426, %v1456
        %1480 = vst.msk [vmem:[%s1474 + $0xa] sm:$0x3] %vm1426, %v1464
        %1481 = vst.msk [vmem:[%s1474 + $0xc] sm:$0x3] %vm1426, %v1463
        %1482 = vst.msk [vmem:[%s1474 + $0xe] sm:$0x3] %vm1426, %v1465
        %v1483 = vld [vmem:[%s795] sm:$0xf]
        %v1484 = vld [vmem:[#allocation4] sm:$0x3]
        %v1485 = vld [vmem:[#allocation4 + $0x2] sm:$0x3]
        %v1486 = vld [vmem:[#allocation4 + $0x4] sm:$0x3]
        %v1487 = vld [vmem:[#allocation4 + $0x6] sm:$0x3]
        %v1488 = vld [vmem:[#allocation4 + $0x8] sm:$0x3]
        %v1489 = vld [vmem:[#allocation4 + $0xa] sm:$0x3]
        %v1490 = vld [vmem:[#allocation4 + $0xc] sm:$0x3]
        %v1491 = vld [vmem:[#allocation4 + $0xe] sm:$0x3]
        %v1492 = vlaneseq
        %v1493 = vshrl.u32 %v1492, 7
        %v1494 = vsub.s32 0, %v1493
        %v1495 = vrot.slane %v1483, %v1494
        %v1496 = vmul.f32 %v1495, %v1484
        %v1497 = vmul.f32 %v1495, %v1485
        %v1498 = vmul.f32 %v1495, %v1486
        %v1499 = vmul.f32 %v1495, %v1487
        %v1500 = vmul.f32 %v1495, %v1488
        %v1501 = vmul.f32 %v1495, %v1489
        %v1502 = vmul.f32 %v1495, %v1490
        %v1503 = vmul.f32 %v1495, %v1491
        %v1504 = vadd.f32 %v1496, 0.0
        %v1505 = vadd.f32 %v1497, 0.0
        %v1506 = vadd.f32 %v1498, 0.0
        %v1507 = vadd.f32 %v1499, 0.0
        %v1508 = vadd.f32 %v1500, 0.0
        %v1509 = vadd.f32 %v1501, 0.0
        %v1510 = vadd.f32 %v1502, 0.0
        %v1511 = vadd.f32 %v1503, 0.0
        %s1512 = scalar_lea.vmem [#allocation4], 2
        %v1513 = vld [vmem:[%s1512] sm:$0x3]
        %v1514 = vld [vmem:[%s1512 + $0x2] sm:$0x3]
        %v1515 = vld [vmem:[%s1512 + $0x4] sm:$0x3]
        %v1516 = vld [vmem:[%s1512 + $0x6] sm:$0x3]
        %v1517 = vld [vmem:[%s1512 + $0x8] sm:$0x3]
        %v1518 = vld [vmem:[%s1512 + $0xa] sm:$0x3]
        %v1519 = vld [vmem:[%s1512 + $0xc] sm:$0x3]
        %v1520 = vld [vmem:[%s1512 + $0xe] sm:$0x3]
        %v1521 = vlaneseq
        %v1522 = vshrl.u32 %v1521, 7
        %v1523 = vsub.s32 1, %v1522
        %v1524 = vrot.slane %v1483, %v1523
        %v1525 = vmul.f32 %v1524, %v1513
        %v1526 = vmul.f32 %v1524, %v1514
        %v1527 = vmul.f32 %v1524, %v1515
        %v1528 = vmul.f32 %v1524, %v1516
        %v1529 = vmul.f32 %v1524, %v1517
        %v1530 = vmul.f32 %v1524, %v1518
        %v1531 = vmul.f32 %v1524, %v1519
        %v1532 = vmul.f32 %v1524, %v1520
        %v1533 = vadd.f32 %v1504, %v1525
        %v1534 = vadd.f32 %v1505, %v1526
        %v1535 = vadd.f32 %v1506, %v1527
        %v1536 = vadd.f32 %v1507, %v1528
        %v1537 = vadd.f32 %v1508, %v1529
        %v1538 = vadd.f32 %v1509, %v1530
        %v1539 = vadd.f32 %v1510, %v1531
        %v1540 = vadd.f32 %v1511, %v1532
        %s1541 = scalar_lea.vmem [#allocation4], 4
        %v1542 = vld [vmem:[%s1541] sm:$0x3]
        %v1543 = vld [vmem:[%s1541 + $0x2] sm:$0x3]
        %v1544 = vld [vmem:[%s1541 + $0x4] sm:$0x3]
        %v1545 = vld [vmem:[%s1541 + $0x6] sm:$0x3]
        %v1546 = vld [vmem:[%s1541 + $0x8] sm:$0x3]
        %v1547 = vld [vmem:[%s1541 + $0xa] sm:$0x3]
        %v1548 = vld [vmem:[%s1541 + $0xc] sm:$0x3]
        %v1549 = vld [vmem:[%s1541 + $0xe] sm:$0x3]
        %v1550 = vlaneseq
        %v1551 = vshrl.u32 %v1550, 7
        %v1552 = vsub.s32 2, %v1551
        %v1553 = vrot.slane %v1483, %v1552
        %v1554 = vmul.f32 %v1553, %v1542
        %v1555 = vmul.f32 %v1553, %v1543
        %v1556 = vmul.f32 %v1553, %v1544
        %v1557 = vmul.f32 %v1553, %v1545
        %v1558 = vmul.f32 %v1553, %v1546
        %v1559 = vmul.f32 %v1553, %v1547
        %v1560 = vmul.f32 %v1553, %v1548
        %v1561 = vmul.f32 %v1553, %v1549
        %v1562 = vadd.f32 %v1533, %v1554
        %v1563 = vadd.f32 %v1534, %v1555
        %v1564 = vadd.f32 %v1535, %v1556
        %v1565 = vadd.f32 %v1536, %v1557
        %v1566 = vadd.f32 %v1537, %v1558
        %v1567 = vadd.f32 %v1538, %v1559
        %v1568 = vadd.f32 %v1539, %v1560
        %v1569 = vadd.f32 %v1540, %v1561
        %v1570 = vld [vmem:[%s1474] sm:$0x3]
        %v1571 = vld [vmem:[%s1474 + $0x2] sm:$0x3]
        %v1572 = vld [vmem:[%s1474 + $0x4] sm:$0x3]
        %v1573 = vld [vmem:[%s1474 + $0x6] sm:$0x3]
        %v1574 = vld [vmem:[%s1474 + $0x8] sm:$0x3]
        %v1575 = vld [vmem:[%s1474 + $0xa] sm:$0x3]
        %v1576 = vld [vmem:[%s1474 + $0xc] sm:$0x3]
        %v1577 = vld [vmem:[%s1474 + $0xe] sm:$0x3]
        %v1578 = vlaneseq
        %v1579 = vshrl.u32 %v1578, 7
        %v1580 = vsub.s32 3, %v1579
        %v1581 = vrot.slane %v1483, %v1580
        %v1582 = vmul.f32 %v1581, %v1570
        %v1583 = vmul.f32 %v1581, %v1571
        %v1584 = vmul.f32 %v1581, %v1572
        %v1585 = vmul.f32 %v1581, %v1573
        %v1586 = vmul.f32 %v1581, %v1574
        %v1587 = vmul.f32 %v1581, %v1575
        %v1588 = vmul.f32 %v1581, %v1576
        %v1589 = vmul.f32 %v1581, %v1577
        %v1590 = vadd.f32 %v1562, %v1582
        %v1591 = vadd.f32 %v1563, %v1583
        %v1592 = vadd.f32 %v1564, %v1584
        %v1593 = vadd.f32 %v1565, %v1585
        %v1594 = vadd.f32 %v1566, %v1586
        %v1595 = vadd.f32 %v1567, %v1587
        %v1596 = vadd.f32 %v1568, %v1588
        %v1597 = vadd.f32 %v1569, %v1589
        %v1598 = vld [vmem:[%s803] sm:$0x1]
        %v1600 = vlaneseq
        %v1601 = vshrl.u32 %v1600, 7
        %v1602 = vsub.s32 0, %v1601
        %v1603 = vrot.slane %v1598, %v1602
        %v1605 = vadd.f32 %v1590, %v1603
        %v1606 = vadd.f32 %v1591, %v1603
        %v1607 = vadd.f32 %v1592, %v1603
        %v1608 = vadd.f32 %v1593, %v1603
        %v1609 = vadd.f32 %v1594, %v1603
        %v1610 = vadd.f32 %v1595, %v1603
        %v1611 = vadd.f32 %v1596, %v1603
        %v1612 = vadd.f32 %v1597, %v1603
        %v1613 = vsub.f32 0.0, %v1605
        %v1614 = vsub.f32 0.0, %v1606
        %v1615 = vsub.f32 0.0, %v1607
        %v1616 = vsub.f32 0.0, %v1608
        %v1617 = vsub.f32 0.0, %v1609
        %v1618 = vsub.f32 0.0, %v1610
        %v1619 = vsub.f32 0.0, %v1611
        %v1620 = vsub.f32 0.0, %v1612
        %v1621 = vmul.f32 %v1613, 1.442695
        %v1622 = vpow.pop %v1621
        %v1623 = vmul.f32 %v1614, 1.442695
        %v1624 = vpow.pop %v1623
        %v1625 = vmul.f32 %v1615, 1.442695
        %v1626 = vpow.pop %v1625
        %v1627 = vmul.f32 %v1616, 1.442695
        %v1628 = vpow.pop %v1627
        %v1629 = vmul.f32 %v1617, 1.442695
        %v1630 = vpow.pop %v1629
        %v1631 = vmul.f32 %v1618, 1.442695
        %v1632 = vpow.pop %v1631
        %v1633 = vmul.f32 %v1619, 1.442695
        %v1634 = vpow.pop %v1633
        %v1635 = vmul.f32 %v1620, 1.442695
        %v1636 = vpow.pop %v1635
        %v1637 = vadd.f32 %v1622, 1.0
        %v1638 = vadd.f32 %v1624, 1.0
        %v1639 = vadd.f32 %v1626, 1.0
        %v1640 = vadd.f32 %v1628, 1.0
        %v1641 = vadd.f32 %v1630, 1.0
        %v1642 = vadd.f32 %v1632, 1.0
        %v1643 = vadd.f32 %v1634, 1.0
        %v1644 = vadd.f32 %v1636, 1.0
        %v1645 = vrcp.pop %v1637
        %v1646 = vrcp.pop %v1638
        %v1647 = vrcp.pop %v1639
        %v1648 = vrcp.pop %v1640
        %v1649 = vrcp.pop %v1641
        %v1650 = vrcp.pop %v1642
        %v1651 = vrcp.pop %v1643
        %v1652 = vrcp.pop %v1644
        %v1653 = vmul.f32 %v1605, %v1645
        %v1654 = vmul.f32 %v1606, %v1646
        %v1655 = vmul.f32 %v1607, %v1647
        %v1656 = vmul.f32 %v1608, %v1648
        %v1657 = vmul.f32 %v1609, %v1649
        %v1658 = vmul.f32 %v1610, %v1650
        %v1659 = vmul.f32 %v1611, %v1651
        %v1660 = vmul.f32 %v1612, %v1652
        %v1661 = vld [vmem:[%s812] sm:$0xf]
        %v1662 = vld [vmem:[%s812 + $0x4] sm:$0xf]
        %v1663 = vld [vmem:[%s812 + $0x8] sm:$0xf]
        %v1664 = vld [vmem:[%s812 + $0xc] sm:$0xf]
        %v1665 = vld [vmem:[%s812 + $0x10] sm:$0x1]
        %v1674 = vcombine.low %v1653, %v1654
        %v1675 = vcombine.low %v1655, %v1656
        %v1677 = vunpack.c.l.s4 1983009808
        %v1678 = vunpack.c.0.s8 %v1677
        %v1679 = vlaneseq
        %v1680 = vshrl.u32 %v1679, 7
        %v1681 = vsub.s32 %v1678, %v1680
        %v1682 = vrot.slane %v1674, %v1681
        %v1684 = vunpack.c.l.s4 1983009808
        %v1685 = vunpack.c.0.s8 %v1684
        %v1686 = vlaneseq
        %v1687 = vshrl.u32 %v1686, 7
        %v1688 = vsub.s32 %v1685, %v1687
        %v1689 = vrot.slane %v1675, %v1688
        %v1690 = vcombine.low %v1682, %v1689
        %v1691 = vcombine.low %v1657, %v1658
        %v1692 = vcombine.low %v1659, %v1660
        %v1694 = vunpack.c.l.s4 1983009808
        %v1695 = vunpack.c.0.s8 %v1694
        %v1696 = vlaneseq
        %v1697 = vshrl.u32 %v1696, 7
        %v1698 = vsub.s32 %v1695, %v1697
        %v1699 = vrot.slane %v1691, %v1698
        %v1701 = vunpack.c.l.s4 1983009808
        %v1702 = vunpack.c.0.s8 %v1701
        %v1703 = vlaneseq
        %v1704 = vshrl.u32 %v1703, 7
        %v1705 = vsub.s32 %v1702, %v1704
        %v1706 = vrot.slane %v1692, %v1705
        %v1707 = vcombine.low %v1699, %v1706
        %v1710 = vpack.c.bf16 %v1707, %v1690
        %v1716 = vunpack.c.l.b16 %v1661
        %v1717 = vunpack.c.l.b16 %v1662
        %v1718 = vunpack.c.l.b16 %v1663
        %v1719 = vunpack.c.l.b16 %v1664
        %v1720 = vunpack.c.l.b16 %v1665
        %v1721 = vpack.c.b16 %v1717, %v1716
        %v1722 = vpack.c.b16 %v1719, %v1718
        %v1723 = vpack.c.b16 %v1720, %v1720
        %vm1724 = vcmask 523264
        %v1726 = vsel %vm1724, %v1710, 0
        %v1729 = vsel %vm1724, %v1721, 0
        %v1732 = vsel %vm1724, %v1722, 0
        %v1735 = vsel %vm1724, %v1723, 0
        %1737 = vmatprep.subr.bf16.mxu0 0
        %1738 = vmatpush1.bf16.xpose.msra.mxu0 %v1729
        %1739 = vmatprep.subr.bf16.mxu0 0
        %1740 = vmatpush1.bf16.xpose.msra.mxu0 %v1732
        %1741 = vmatprep.subr.bf16.mxu0 0
        %1742 = vmatpush1.bf16.xpose.msra.mxu0 %v1735
        %1743 = vmatprep.subr.bf16.mxu0 0
        %1744 = vmatpush1.bf16.xpose.msra.mxu0 0
        %1745 = vmatprep.subr.bf16.mxu0 0
        %1746 = vmatpush1.bf16.xpose.msra.mxu0 0
        %1747 = vmatprep.subr.bf16.mxu0 0
        %1748 = vmatpush1.bf16.xpose.msra.mxu0 0
        %1749 = vmatprep.subr.bf16.mxu0 0
        %1750 = vmatpush1.bf16.xpose.msra.mxu0 0
        %1751 = vmatprep.subr.bf16.mxu0 0
        %1752 = vmatpush1.bf16.xpose.msra.mxu0 0
        %1753 = vmatprep.subr.bf16.mxu0 0
        %1754 = vmatpush1.bf16.xpose.msra.mxu0 0
        %1755 = vmatprep.subr.bf16.mxu0 0
        %1756 = vmatpush1.bf16.xpose.msra.mxu0 0
        %1757 = vmatprep.subr.bf16.mxu0 0
        %1758 = vmatpush1.bf16.xpose.msra.mxu0 0
        %1759 = vmatprep.subr.bf16.mxu0 0
        %1760 = vmatpush1.bf16.xpose.msra.mxu0 0
        %1761 = vmatprep.subr.bf16.mxu0 0
        %1762 = vmatpush1.bf16.xpose.msra.mxu0 0
        %1763 = vmatprep.subr.bf16.mxu0 0
        %1764 = vmatpush1.bf16.xpose.msra.mxu0 0
        %1765 = vmatprep.subr.bf16.mxu0 0
        %1766 = vmatpush1.bf16.xpose.msra.mxu0 0
        %1767 = vmatprep.subr.bf16.mxu0 0
        %1768 = vmatpush1.bf16.xpose.msra.mxu0 0
        %1769 = vmatprep.mubr.bf16.mxu0 0
        %1770 = vmatmul.mubr.bf16.gmra.mrb[0].mxu0 %v1726
        %v1771 = vpop.f32.mrb[0].mxu0
        %v1772 = vadd.f32 0.0, %v1771
        %v1773 = vpop.f32.mrb[0].mxu0
        %v1774 = vpop.f32.mrb[0].mxu0
        %v1775 = vadd.f32 0.0, %v1774
        %v1776 = vpop.f32.mrb[0].mxu0
        %1777 = vdwg.mxu0
        %v1778 = vld [vmem:[%s821] sm:$0xf]
        %v1779 = vld [vmem:[%s821 + $0x4] sm:$0xf]
        %v1780 = vld [vmem:[%s821 + $0x8] sm:$0xf]
        %v1781 = vld [vmem:[%s821 + $0xc] sm:$0xf]
        %v1782 = vld [vmem:[%s821 + $0x10] sm:$0xf]
        %v1783 = vld [vmem:[%s821 + $0x14] sm:$0xf]
        %v1784 = vld [vmem:[%s821 + $0x18] sm:$0xf]
        %v1785 = vld [vmem:[%s821 + $0x1c] sm:$0xf]
        %v1786 = vpack.c.bf16 %v1775, %v1772
        %v1787 = vld [vmem:[%s829] sm:$0x1]
        %v1789 = vlaneseq
        %v1790 = vshrl.u32 %v1789, 7
        %v1791 = vsub.s32 0, %v1790
        %v1792 = vrot.slane %v1787, %v1791
        %v1802 = vunpack.c.l.b16 %v1778
        %v1803 = vunpack.c.l.b16 %v1779
        %v1804 = vunpack.c.l.b16 %v1780
        %v1805 = vunpack.c.l.b16 %v1781
        %v1806 = vunpack.c.l.b16 %v1782
        %v1807 = vunpack.c.l.b16 %v1783
        %v1808 = vunpack.c.l.b16 %v1784
        %v1809 = vunpack.c.l.b16 %v1785
        %v1810 = vpack.c.b16 %v1803, %v1802
        %v1811 = vpack.c.b16 %v1805, %v1804
        %v1812 = vpack.c.b16 %v1807, %v1806
        %v1813 = vpack.c.b16 %v1809, %v1808
        %vm1814 = vcmask 15360
        %v1816 = vsel %vm1814, %v1786, 0
        %v1819 = vsel %vm1814, %v1810, 0
        %v1822 = vsel %vm1814, %v1811, 0
        %v1825 = vsel %vm1814, %v1812, 0
        %v1828 = vsel %vm1814, %v1813, 0
        %1830 = vmatprep.subr.bf16.mxu0 0
        %1831 = vmatpush1.bf16.xpose.msra.mxu0 %v1819
        %1832 = vmatprep.subr.bf16.mxu0 0
        %1833 = vmatpush1.bf16.xpose.msra.mxu0 %v1822
        %1834 = vmatprep.subr.bf16.mxu0 0
        %1835 = vmatpush1.bf16.xpose.msra.mxu0 %v1825
        %1836 = vmatprep.subr.bf16.mxu0 0
        %1837 = vmatpush1.bf16.xpose.msra.mxu0 %v1828
        %1838 = vmatprep.subr.bf16.mxu0 0
        %1839 = vmatpush1.bf16.xpose.msra.mxu0 0
        %1840 = vmatprep.subr.bf16.mxu0 0
        %1841 = vmatpush1.bf16.xpose.msra.mxu0 0
        %1842 = vmatprep.subr.bf16.mxu0 0
        %1843 = vmatpush1.bf16.xpose.msra.mxu0 0
        %1844 = vmatprep.subr.bf16.mxu0 0
        %1845 = vmatpush1.bf16.xpose.msra.mxu0 0
        %1846 = vmatprep.subr.bf16.mxu0 0
        %1847 = vmatpush1.bf16.xpose.msra.mxu0 0
        %1848 = vmatprep.subr.bf16.mxu0 0
        %1849 = vmatpush1.bf16.xpose.msra.mxu0 0
        %1850 = vmatprep.subr.bf16.mxu0 0
        %1851 = vmatpush1.bf16.xpose.msra.mxu0 0
        %1852 = vmatprep.subr.bf16.mxu0 0
        %1853 = vmatpush1.bf16.xpose.msra.mxu0 0
        %1854 = vmatprep.subr.bf16.mxu0 0
        %1855 = vmatpush1.bf16.xpose.msra.mxu0 0
        %1856 = vmatprep.subr.bf16.mxu0 0
        %1857 = vmatpush1.bf16.xpose.msra.mxu0 0
        %1858 = vmatprep.subr.bf16.mxu0 0
        %1859 = vmatpush1.bf16.xpose.msra.mxu0 0
        %1860 = vmatprep.subr.bf16.mxu0 0
        %1861 = vmatpush1.bf16.xpose.msra.mxu0 0
        %1862 = vmatprep.mubr.bf16.mxu0 0
        %1863 = vmatmul.mubr.bf16.gmra.mrb[0].mxu0 %v1816
        %v1864 = vpop.f32.mrb[0].mxu0
        %v1865 = vadd.f32 %v1792, %v1864
        %v1866 = vpop.f32.mrb[0].mxu0
        %v1867 = vpop.f32.mrb[0].mxu0
        %v1868 = vadd.f32 %v1792, %v1867
        %v1869 = vpop.f32.mrb[0].mxu0
        %1870 = vdwg.mxu0
        %vm1871 = vcmp.gt.f32.partialorder %v1865, 30.0
        %vm1872 = vcmp.gt.f32.partialorder %v1868, 30.0
        %v1873 = vmul.f32 %v1865, 1.442695
        %v1874 = vpow.pop %v1873
        %v1875 = vmul.f32 %v1868, 1.442695
        %v1876 = vpow.pop %v1875
        %v1877 = vadd.f32 %v1874, 1.0
        %v1878 = vadd.f32 %v1876, 1.0
        %v1879 = vlog2.pop %v1877
        %v1880 = vmul.f32 %v1879, 0.6931472
        %v1881 = vlog2.pop %v1878
        %v1882 = vmul.f32 %v1881, 0.6931472
        %v1883 = vsel %vm1871, %v1865, %v1880
        %v1884 = vsel %vm1872, %v1868, %v1882
        %v1887 = vcombine.high %v1883, %v1883
        %v1889 = vunpack.c.l.s4 1983009808
        %v1890 = vunpack.c.0.s8 %v1889
        %v1891 = vlaneseq
        %v1892 = vshrl.u32 %v1891, 7
        %v1893 = vsub.s32 %v1890, %v1892
        %v1894 = vrot.slane %v1883, %v1893
        %v1896 = vunpack.c.l.s4 1983009808
        %v1897 = vunpack.c.0.s8 %v1896
        %v1898 = vlaneseq
        %v1899 = vshrl.u32 %v1898, 7
        %v1900 = vsub.s32 %v1897, %v1899
        %v1901 = vrot.slane %v1887, %v1900
        %v1902 = vcombine.high %v1894, %v1894
        %v1903 = vcombine.high %v1901, %v1901
        %v1904 = vcombine.high %v1884, %v1884
        %v1906 = vunpack.c.l.s4 1983009808
        %v1907 = vunpack.c.0.s8 %v1906
        %v1908 = vlaneseq
        %v1909 = vshrl.u32 %v1908, 7
        %v1910 = vsub.s32 %v1907, %v1909
        %v1911 = vrot.slane %v1884, %v1910
        %v1913 = vunpack.c.l.s4 1983009808
        %v1914 = vunpack.c.0.s8 %v1913
        %v1915 = vlaneseq
        %v1916 = vshrl.u32 %v1915, 7
        %v1917 = vsub.s32 %v1914, %v1916
        %v1918 = vrot.slane %v1904, %v1917
        %v1919 = vcombine.high %v1911, %v1911
        %v1920 = vcombine.high %v1918, %v1918
        %1929 = vst.msk [vmem:[#allocation5] sm:$0x3] %vm1426, %v1894
        %1930 = vst.msk [vmem:[#allocation5 + $0x2] sm:$0x3] %vm1426, %v1902
        %1931 = vst.msk [vmem:[#allocation5 + $0x4] sm:$0x3] %vm1426, %v1901
        %1932 = vst.msk [vmem:[#allocation5 + $0x6] sm:$0x3] %vm1426, %v1903
        %1933 = vst.msk [vmem:[#allocation5 + $0x8] sm:$0x3] %vm1426, %v1911
        %1934 = vst.msk [vmem:[#allocation5 + $0xa] sm:$0x3] %vm1426, %v1919
        %1935 = vst.msk [vmem:[#allocation5 + $0xc] sm:$0x3] %vm1426, %v1918
        %1936 = vst.msk [vmem:[#allocation5 + $0xe] sm:$0x3] %vm1426, %v1920
        %v1937 = vmul.f32 %v1883, %v1690
        %v1938 = vmul.f32 %v1884, %v1707
        %v1941 = vcombine.high %v1937, %v1937
        %v1943 = vunpack.c.l.s4 1983009808
        %v1944 = vunpack.c.0.s8 %v1943
        %v1945 = vlaneseq
        %v1946 = vshrl.u32 %v1945, 7
        %v1947 = vsub.s32 %v1944, %v1946
        %v1948 = vrot.slane %v1937, %v1947
        %v1950 = vunpack.c.l.s4 1983009808
        %v1951 = vunpack.c.0.s8 %v1950
        %v1952 = vlaneseq
        %v1953 = vshrl.u32 %v1952, 7
        %v1954 = vsub.s32 %v1951, %v1953
        %v1955 = vrot.slane %v1941, %v1954
        %v1956 = vcombine.high %v1948, %v1948
        %v1957 = vcombine.high %v1955, %v1955
        %v1958 = vcombine.high %v1938, %v1938
        %v1960 = vunpack.c.l.s4 1983009808
        %v1961 = vunpack.c.0.s8 %v1960
        %v1962 = vlaneseq
        %v1963 = vshrl.u32 %v1962, 7
        %v1964 = vsub.s32 %v1961, %v1963
        %v1965 = vrot.slane %v1938, %v1964
        %v1967 = vunpack.c.l.s4 1983009808
        %v1968 = vunpack.c.0.s8 %v1967
        %v1969 = vlaneseq
        %v1970 = vshrl.u32 %v1969, 7
        %v1971 = vsub.s32 %v1968, %v1970
        %v1972 = vrot.slane %v1958, %v1971
        %v1973 = vcombine.high %v1965, %v1965
        %v1974 = vcombine.high %v1972, %v1972
        %1983 = vst.msk [vmem:[#allocation6] sm:$0x3] %vm1426, %v1948
        %1984 = vst.msk [vmem:[#allocation6 + $0x2] sm:$0x3] %vm1426, %v1956
        %1985 = vst.msk [vmem:[#allocation6 + $0x4] sm:$0x3] %vm1426, %v1955
        %1986 = vst.msk [vmem:[#allocation6 + $0x6] sm:$0x3] %vm1426, %v1957
        %1987 = vst.msk [vmem:[#allocation6 + $0x8] sm:$0x3] %vm1426, %v1965
        %1988 = vst.msk [vmem:[#allocation6 + $0xa] sm:$0x3] %vm1426, %v1973
        %1989 = vst.msk [vmem:[#allocation6 + $0xc] sm:$0x3] %vm1426, %v1972
        %1990 = vst.msk [vmem:[#allocation6 + $0xe] sm:$0x3] %vm1426, %v1974
        %v1993 = vcombine.high %v1772, %v1772
        %v1995 = vunpack.c.l.s4 1983009808
        %v1996 = vunpack.c.0.s8 %v1995
        %v1997 = vlaneseq
        %v1998 = vshrl.u32 %v1997, 7
        %v1999 = vsub.s32 %v1996, %v1998
        %v2000 = vrot.slane %v1772, %v1999
        %v2002 = vunpack.c.l.s4 1983009808
        %v2003 = vunpack.c.0.s8 %v2002
        %v2004 = vlaneseq
        %v2005 = vshrl.u32 %v2004, 7
        %v2006 = vsub.s32 %v2003, %v2005
        %v2007 = vrot.slane %v1993, %v2006
        %v2008 = vcombine.high %v2000, %v2000
        %v2009 = vcombine.high %v2007, %v2007
        %v2010 = vcombine.high %v1775, %v1775
        %v2012 = vunpack.c.l.s4 1983009808
        %v2013 = vunpack.c.0.s8 %v2012
        %v2014 = vlaneseq
        %v2015 = vshrl.u32 %v2014, 7
        %v2016 = vsub.s32 %v2013, %v2015
        %v2017 = vrot.slane %v1775, %v2016
        %v2019 = vunpack.c.l.s4 1983009808
        %v2020 = vunpack.c.0.s8 %v2019
        %v2021 = vlaneseq
        %v2022 = vshrl.u32 %v2021, 7
        %v2023 = vsub.s32 %v2020, %v2022
        %v2024 = vrot.slane %v2010, %v2023
        %v2025 = vcombine.high %v2017, %v2017
        %v2026 = vcombine.high %v2024, %v2024
        %v2028 = vunpack.c.l.s4 1983009808
        %v2029 = vunpack.c.0.s8 %v2028
        %v2030 = vlaneseq
        %v2031 = vshrl.u32 %v2030, 7
        %v2032 = vsub.s32 %v2029, %v2031
        %v2033 = vrot.slane %v2000, %v2032
        %v2035 = vunpack.c.l.s4 1983009808
        %v2036 = vunpack.c.0.s8 %v2035
        %v2037 = vlaneseq
        %v2038 = vshrl.u32 %v2037, 7
        %v2039 = vsub.s32 %v2036, %v2038
        %v2040 = vrot.slane %v2008, %v2039
        %v2042 = vunpack.c.l.s4 1983009808
        %v2043 = vunpack.c.0.s8 %v2042
        %v2044 = vlaneseq
        %v2045 = vshrl.u32 %v2044, 7
        %v2046 = vsub.s32 %v2043, %v2045
        %v2047 = vrot.slane %v2007, %v2046
        %v2049 = vunpack.c.l.s4 1983009808
        %v2050 = vunpack.c.0.s8 %v2049
        %v2051 = vlaneseq
        %v2052 = vshrl.u32 %v2051, 7
        %v2053 = vsub.s32 %v2050, %v2052
        %v2054 = vrot.slane %v2009, %v2053
        %v2056 = vunpack.c.l.s4 1983009808
        %v2057 = vunpack.c.0.s8 %v2056
        %v2058 = vlaneseq
        %v2059 = vshrl.u32 %v2058, 7
        %v2060 = vsub.s32 %v2057, %v2059
        %v2061 = vrot.slane %v2017, %v2060
        %v2063 = vunpack.c.l.s4 1983009808
        %v2064 = vunpack.c.0.s8 %v2063
        %v2065 = vlaneseq
        %v2066 = vshrl.u32 %v2065, 7
        %v2067 = vsub.s32 %v2064, %v2066
        %v2068 = vrot.slane %v2025, %v2067
        %v2070 = vunpack.c.l.s4 1983009808
        %v2071 = vunpack.c.0.s8 %v2070
        %v2072 = vlaneseq
        %v2073 = vshrl.u32 %v2072, 7
        %v2074 = vsub.s32 %v2071, %v2073
        %v2075 = vrot.slane %v2024, %v2074
        %v2077 = vunpack.c.l.s4 1983009808
        %v2078 = vunpack.c.0.s8 %v2077
        %v2079 = vlaneseq
        %v2080 = vshrl.u32 %v2079, 7
        %v2081 = vsub.s32 %v2078, %v2080
        %v2082 = vrot.slane %v2026, %v2081
        %2083 = vrot.lane.b32.xlu0 %v2033, 126
        %v2084 = vpop.permute.xlu0 %2083
        %2085 = vrot.lane.b32.xlu0 %v2040, 126
        %v2086 = vpop.permute.xlu0 %2085
        %2087 = vrot.lane.b32.xlu0 %v2047, 126
        %v2088 = vpop.permute.xlu0 %2087
        %2089 = vrot.lane.b32.xlu0 %v2054, 126
        %v2090 = vpop.permute.xlu0 %2089
        %2091 = vrot.lane.b32.xlu0 %v2061, 126
        %v2092 = vpop.permute.xlu0 %2091
        %2093 = vrot.lane.b32.xlu0 %v2068, 126
        %v2094 = vpop.permute.xlu0 %2093
        %2095 = vrot.lane.b32.xlu0 %v2075, 126
        %v2096 = vpop.permute.xlu0 %2095
        %2097 = vrot.lane.b32.xlu0 %v2082, 126
        %v2098 = vpop.permute.xlu0 %2097
        %vm2107 = vcmask 123904
        %2108 = vst.msk [vmem:[#allocation7] sm:$0x3] %vm2107, %v2084
        %2109 = vst.msk [vmem:[#allocation7 + $0x2] sm:$0x3] %vm2107, %v2086
        %2110 = vst.msk [vmem:[#allocation7 + $0x4] sm:$0x3] %vm2107, %v2088
        %2111 = vst.msk [vmem:[#allocation7 + $0x6] sm:$0x3] %vm2107, %v2090
        %2112 = vst.msk [vmem:[#allocation7 + $0x8] sm:$0x3] %vm2107, %v2092
        %2113 = vst.msk [vmem:[#allocation7 + $0xa] sm:$0x3] %vm2107, %v2094
        %2114 = vst.msk [vmem:[#allocation7 + $0xc] sm:$0x3] %vm2107, %v2096
        %2115 = vst.msk [vmem:[#allocation7 + $0xe] sm:$0x3] %vm2107, %v2098
        %2116 = vrot.lane.b32.xlu0 %v2033, 110
        %v2117 = vpop.permute.xlu0 %2116
        %2118 = vrot.lane.b32.xlu0 %v2040, 110
        %v2119 = vpop.permute.xlu0 %2118
        %2120 = vrot.lane.b32.xlu0 %v2047, 110
        %v2121 = vpop.permute.xlu0 %2120
        %2122 = vrot.lane.b32.xlu0 %v2054, 110
        %v2123 = vpop.permute.xlu0 %2122
        %2124 = vrot.lane.b32.xlu0 %v2061, 110
        %v2125 = vpop.permute.xlu0 %2124
        %2126 = vrot.lane.b32.xlu0 %v2068, 110
        %v2127 = vpop.permute.xlu0 %2126
        %2128 = vrot.lane.b32.xlu0 %v2075, 110
        %v2129 = vpop.permute.xlu0 %2128
        %2130 = vrot.lane.b32.xlu0 %v2082, 110
        %v2131 = vpop.permute.xlu0 %2130
        %2140 = vst.msk [vmem:[#allocation8] sm:$0x3] %vm2107, %v2117
        %2141 = vst.msk [vmem:[#allocation8 + $0x2] sm:$0x3] %vm2107, %v2119
        %2142 = vst.msk [vmem:[#allocation8 + $0x4] sm:$0x3] %vm2107, %v2121
        %2143 = vst.msk [vmem:[#allocation8 + $0x6] sm:$0x3] %vm2107, %v2123
        %2144 = vst.msk [vmem:[#allocation8 + $0x8] sm:$0x3] %vm2107, %v2125
        %2145 = vst.msk [vmem:[#allocation8 + $0xa] sm:$0x3] %vm2107, %v2127
        %2146 = vst.msk [vmem:[#allocation8 + $0xc] sm:$0x3] %vm2107, %v2129
        %2147 = vst.msk [vmem:[#allocation8 + $0xe] sm:$0x3] %vm2107, %v2131
        %v2148 = vld [vmem:[%s838] sm:$0xff]
        %v2149 = vld [vmem:[%s838 + $0x8] sm:$0xff]
        %v2150 = vld [vmem:[#allocation5] sm:$0x3]
        %v2153 = vunpack.c.l.s4 1966171168
        %v2154 = vunpack.c.0.s8 %v2153
        %v2155 = vlaneseq
        %v2156 = vshrl.u32 %v2155, 7
        %v2157 = vsub.s32 %v2154, %v2156
        %v2158 = vrot.slane %v2150, %v2157
        %v2159 = vcombine.high %v2158, %v2158
        %v2161 = vunpack.c.l.s4 1966171168
        %v2162 = vunpack.c.0.s8 %v2161
        %v2163 = vlaneseq
        %v2164 = vshrl.u32 %v2163, 7
        %v2165 = vsub.s32 %v2162, %v2164
        %v2166 = vrot.slane %v2158, %v2165
        %v2168 = vunpack.c.l.s4 1966171168
        %v2169 = vunpack.c.0.s8 %v2168
        %v2170 = vlaneseq
        %v2171 = vshrl.u32 %v2170, 7
        %v2172 = vsub.s32 %v2169, %v2171
        %v2173 = vrot.slane %v2159, %v2172
        %v2174 = vlaneseq
        %v2175 = vshrl.u32 %v2174, 7
        %v2176 = vsub.s32 0, %v2175
        %v2177 = vrot.slane %v2166, %v2176
        %v2178 = vlaneseq
        %v2179 = vshrl.u32 %v2178, 7
        %v2180 = vsub.s32 0, %v2179
        %v2181 = vrot.slane %v2173, %v2180
        %v2184 = vmul.f32 %v2177, %v2148
        %v2185 = vmul.f32 %v2177, %v2149
        %v2186 = vmul.f32 %v2181, %v2148
        %v2187 = vmul.f32 %v2181, %v2149
        %v2188 = vmul.f32 %v2184, 1.442695
        %v2189 = vpow.pop %v2188
        %v2190 = vmul.f32 %v2185, 1.442695
        %v2191 = vpow.pop %v2190
        %v2192 = vmul.f32 %v2186, 1.442695
        %v2193 = vpow.pop %v2192
        %v2194 = vmul.f32 %v2187, 1.442695
        %v2195 = vpow.pop %v2194
        %v2196 = vmul.f32 %v2189, 0.0
        %v2197 = vmul.f32 %v2191, 0.0
        %v2198 = vmul.f32 %v2193, 0.0
        %v2199 = vmul.f32 %v2195, 0.0
        %v2200 = vld [vmem:[#allocation7] sm:$0x3]
        %v2201 = vlaneseq
        %v2202 = vshrl.u32 %v2201, 7
        %v2203 = vsub.s32 0, %v2202
        %v2204 = vrot.slane %v2200, %v2203
        %2206 = vbcast.lane.b32.xlu0 %v2204, 256
        %v2207 = vpop.permute.xlu0 %2206
        %s2209 = sor.u32 256, 8
        %2210 = vbcast.lane.b32.xlu0 %v2204, %s2209
        %v2211 = vpop.permute.xlu0 %2210
        %v2212 = vlaneseq
        %v2213 = vshrl.u32 %v2212, 7
        %v2214 = vsub.s32 1, %v2213
        %v2215 = vrot.slane %v2200, %v2214
        %2217 = vbcast.lane.b32.xlu0 %v2215, 256
        %v2218 = vpop.permute.xlu0 %2217
        %s2220 = sor.u32 256, 8
        %2221 = vbcast.lane.b32.xlu0 %v2215, %s2220
        %v2222 = vpop.permute.xlu0 %2221
        %v2223 = vld [vmem:[#allocation6] sm:$0x3]
        %v2226 = vunpack.c.l.s4 1966171168
        %v2227 = vunpack.c.0.s8 %v2226
        %v2228 = vlaneseq
        %v2229 = vshrl.u32 %v2228, 7
        %v2230 = vsub.s32 %v2227, %v2229
        %v2231 = vrot.slane %v2223, %v2230
        %v2232 = vcombine.high %v2231, %v2231
        %v2234 = vunpack.c.l.s4 1966171168
        %v2235 = vunpack.c.0.s8 %v2234
        %v2236 = vlaneseq
        %v2237 = vshrl.u32 %v2236, 7
        %v2238 = vsub.s32 %v2235, %v2237
        %v2239 = vrot.slane %v2231, %v2238
        %v2241 = vunpack.c.l.s4 1966171168
        %v2242 = vunpack.c.0.s8 %v2241
        %v2243 = vlaneseq
        %v2244 = vshrl.u32 %v2243, 7
        %v2245 = vsub.s32 %v2242, %v2244
        %v2246 = vrot.slane %v2232, %v2245
        %v2247 = vlaneseq
        %v2248 = vshrl.u32 %v2247, 7
        %v2249 = vsub.s32 0, %v2248
        %v2250 = vrot.slane %v2239, %v2249
        %v2251 = vlaneseq
        %v2252 = vshrl.u32 %v2251, 7
        %v2253 = vsub.s32 0, %v2252
        %v2254 = vrot.slane %v2246, %v2253
        %v2257 = vmul.f32 %v2207, %v2250
        %v2258 = vmul.f32 %v2211, %v2250
        %v2259 = vmul.f32 %v2218, %v2254
        %v2260 = vmul.f32 %v2222, %v2254
        %v2261 = vadd.f32 %v2196, %v2257
        %v2262 = vadd.f32 %v2197, %v2258
        %v2263 = vadd.f32 %v2198, %v2259
        %v2264 = vadd.f32 %v2199, %v2260
        %v2265 = vld [vmem:[#allocation8] sm:$0x3]
        %v2266 = vlaneseq
        %v2267 = vshrl.u32 %v2266, 7
        %v2268 = vsub.s32 0, %v2267
        %v2269 = vrot.slane %v2265, %v2268
        %2271 = vbcast.lane.b32.xlu0 %v2269, 256
        %v2272 = vpop.permute.xlu0 %2271
        %s2274 = sor.u32 256, 8
        %2275 = vbcast.lane.b32.xlu0 %v2269, %s2274
        %v2276 = vpop.permute.xlu0 %2275
        %v2277 = vlaneseq
        %v2278 = vshrl.u32 %v2277, 7
        %v2279 = vsub.s32 1, %v2278
        %v2280 = vrot.slane %v2265, %v2279
        %2282 = vbcast.lane.b32.xlu0 %v2280, 256
        %v2283 = vpop.permute.xlu0 %2282
        %s2285 = sor.u32 256, 8
        %2286 = vbcast.lane.b32.xlu0 %v2280, %s2285
        %v2287 = vpop.permute.xlu0 %2286
        %v2288 = vmul.f32 %v2272, %v2261
        %v2289 = vmul.f32 %v2276, %v2262
        %v2290 = vmul.f32 %v2283, %v2263
        %v2291 = vmul.f32 %v2287, %v2264
        %v2292 = vsel %vm1724, %v2288, 0.0
        %v2293 = vsel %vm1724, %v2289, 0.0
        %v2294 = vadd.f32 %v2292, %v2293
        %v2295 = vrot.slane %v2294, 4
        %v2296 = vadd.f32 %v2294, %v2295
        %v2297 = vrot.slane %v2296, 2
        %v2298 = vadd.f32 %v2296, %v2297
        %v2299 = vrot.slane %v2298, 1
        %v2300 = vadd.f32 %v2298, %v2299
        %v2301 = vsel %vm1724, %v2290, 0.0
        %v2302 = vsel %vm1724, %v2291, 0.0
        %v2303 = vadd.f32 %v2301, %v2302
        %v2304 = vrot.slane %v2303, 4
        %v2305 = vadd.f32 %v2303, %v2304
        %v2306 = vrot.slane %v2305, 2
        %v2307 = vadd.f32 %v2305, %v2306
        %v2308 = vrot.slane %v2307, 1
        %v2309 = vadd.f32 %v2307, %v2308
        %vm2312 = vcmask 1041409
        %v2313 = vsel %vm2312, %v2309, %v2300
        %2315 = vst.msk [vmem:[#allocation9] sm:$0x3] %vm1426, %v2313
        %s2316 = scalar_lea.vmem [#allocation5], 2
        %v2317 = vld [vmem:[%s2316] sm:$0x3]
        %v2320 = vunpack.c.l.s4 1966171168
        %v2321 = vunpack.c.0.s8 %v2320
        %v2322 = vlaneseq
        %v2323 = vshrl.u32 %v2322, 7
        %v2324 = vsub.s32 %v2321, %v2323
        %v2325 = vrot.slane %v2317, %v2324
        %v2326 = vcombine.high %v2325, %v2325
        %v2328 = vunpack.c.l.s4 1966171168
        %v2329 = vunpack.c.0.s8 %v2328
        %v2330 = vlaneseq
        %v2331 = vshrl.u32 %v2330, 7
        %v2332 = vsub.s32 %v2329, %v2331
        %v2333 = vrot.slane %v2325, %v2332
        %v2335 = vunpack.c.l.s4 1966171168
        %v2336 = vunpack.c.0.s8 %v2335
        %v2337 = vlaneseq
        %v2338 = vshrl.u32 %v2337, 7
        %v2339 = vsub.s32 %v2336, %v2338
        %v2340 = vrot.slane %v2326, %v2339
        %v2341 = vlaneseq
        %v2342 = vshrl.u32 %v2341, 7
        %v2343 = vsub.s32 0, %v2342
        %v2344 = vrot.slane %v2333, %v2343
        %v2345 = vlaneseq
        %v2346 = vshrl.u32 %v2345, 7
        %v2347 = vsub.s32 0, %v2346
        %v2348 = vrot.slane %v2340, %v2347
        %v2351 = vmul.f32 %v2344, %v2148
        %v2352 = vmul.f32 %v2344, %v2149
        %v2353 = vmul.f32 %v2348, %v2148
        %v2354 = vmul.f32 %v2348, %v2149
        %v2355 = vmul.f32 %v2351, 1.442695
        %v2356 = vpow.pop %v2355
        %v2357 = vmul.f32 %v2352, 1.442695
        %v2358 = vpow.pop %v2357
        %v2359 = vmul.f32 %v2353, 1.442695
        %v2360 = vpow.pop %v2359
        %v2361 = vmul.f32 %v2354, 1.442695
        %v2362 = vpow.pop %v2361
        %v2363 = vmul.f32 %v2356, %v2261
        %v2364 = vmul.f32 %v2358, %v2262
        %v2365 = vmul.f32 %v2360, %v2263
        %v2366 = vmul.f32 %v2362, %v2264
        %s2367 = scalar_lea.vmem [#allocation7], 2
        %v2368 = vld [vmem:[%s2367] sm:$0x3]
        %v2369 = vlaneseq
        %v2370 = vshrl.u32 %v2369, 7
        %v2371 = vsub.s32 0, %v2370
        %v2372 = vrot.slane %v2368, %v2371
        %2374 = vbcast.lane.b32.xlu0 %v2372, 256
        %v2375 = vpop.permute.xlu0 %2374
        %s2377 = sor.u32 256, 8
        %2378 = vbcast.lane.b32.xlu0 %v2372, %s2377
        %v2379 = vpop.permute.xlu0 %2378
        %v2380 = vlaneseq
        %v2381 = vshrl.u32 %v2380, 7
        %v2382 = vsub.s32 1, %v2381
        %v2383 = vrot.slane %v2368, %v2382
        %2385 = vbcast.lane.b32.xlu0 %v2383, 256
        %v2386 = vpop.permute.xlu0 %2385
        %s2388 = sor.u32 256, 8
        %2389 = vbcast.lane.b32.xlu0 %v2383, %s2388
        %v2390 = vpop.permute.xlu0 %2389
        %s2391 = scalar_lea.vmem [#allocation6], 2
        %v2392 = vld [vmem:[%s2391] sm:$0x3]
        %v2395 = vunpack.c.l.s4 1966171168
        %v2396 = vunpack.c.0.s8 %v2395
        %v2397 = vlaneseq
        %v2398 = vshrl.u32 %v2397, 7
        %v2399 = vsub.s32 %v2396, %v2398
        %v2400 = vrot.slane %v2392, %v2399
        %v2401 = vcombine.high %v2400, %v2400
        %v2403 = vunpack.c.l.s4 1966171168
        %v2404 = vunpack.c.0.s8 %v2403
        %v2405 = vlaneseq
        %v2406 = vshrl.u32 %v2405, 7
        %v2407 = vsub.s32 %v2404, %v2406
        %v2408 = vrot.slane %v2400, %v2407
        %v2410 = vunpack.c.l.s4 1966171168
        %v2411 = vunpack.c.0.s8 %v2410
        %v2412 = vlaneseq
        %v2413 = vshrl.u32 %v2412, 7
        %v2414 = vsub.s32 %v2411, %v2413
        %v2415 = vrot.slane %v2401, %v2414
        %v2416 = vlaneseq
        %v2417 = vshrl.u32 %v2416, 7
        %v2418 = vsub.s32 0, %v2417
        %v2419 = vrot.slane %v2408, %v2418
        %v2420 = vlaneseq
        %v2421 = vshrl.u32 %v2420, 7
        %v2422 = vsub.s32 0, %v2421
        %v2423 = vrot.slane %v2415, %v2422
        %v2426 = vmul.f32 %v2375, %v2419
        %v2427 = vmul.f32 %v2379, %v2419
        %v2428 = vmul.f32 %v2386, %v2423
        %v2429 = vmul.f32 %v2390, %v2423
        %v2430 = vadd.f32 %v2363, %v2426
        %v2431 = vadd.f32 %v2364, %v2427
        %v2432 = vadd.f32 %v2365, %v2428
        %v2433 = vadd.f32 %v2366, %v2429
        %s2434 = scalar_lea.vmem [#allocation8], 2
        %v2435 = vld [vmem:[%s2434] sm:$0x3]
        %v2436 = vlaneseq
        %v2437 = vshrl.u32 %v2436, 7
        %v2438 = vsub.s32 0, %v2437
        %v2439 = vrot.slane %v2435, %v2438
        %2441 = vbcast.lane.b32.xlu0 %v2439, 256
        %v2442 = vpop.permute.xlu0 %2441
        %s2444 = sor.u32 256, 8
        %2445 = vbcast.lane.b32.xlu0 %v2439, %s2444
        %v2446 = vpop.permute.xlu0 %2445
        %v2447 = vlaneseq
        %v2448 = vshrl.u32 %v2447, 7
        %v2449 = vsub.s32 1, %v2448
        %v2450 = vrot.slane %v2435, %v2449
        %2452 = vbcast.lane.b32.xlu0 %v2450, 256
        %v2453 = vpop.permute.xlu0 %2452
        %s2455 = sor.u32 256, 8
        %2456 = vbcast.lane.b32.xlu0 %v2450, %s2455
        %v2457 = vpop.permute.xlu0 %2456
        %v2458 = vmul.f32 %v2442, %v2430
        %v2459 = vmul.f32 %v2446, %v2431
        %v2460 = vmul.f32 %v2453, %v2432
        %v2461 = vmul.f32 %v2457, %v2433
        %v2462 = vsel %vm1724, %v2458, 0.0
        %v2463 = vsel %vm1724, %v2459, 0.0
        %v2464 = vadd.f32 %v2462, %v2463
        %v2465 = vrot.slane %v2464, 4
        %v2466 = vadd.f32 %v2464, %v2465
        %v2467 = vrot.slane %v2466, 2
        %v2468 = vadd.f32 %v2466, %v2467
        %v2469 = vrot.slane %v2468, 1
        %v2470 = vadd.f32 %v2468, %v2469
        %v2471 = vsel %vm1724, %v2460, 0.0
        %v2472 = vsel %vm1724, %v2461, 0.0
        %v2473 = vadd.f32 %v2471, %v2472
        %v2474 = vrot.slane %v2473, 4
        %v2475 = vadd.f32 %v2473, %v2474
        %v2476 = vrot.slane %v2475, 2
        %v2477 = vadd.f32 %v2475, %v2476
        %v2478 = vrot.slane %v2477, 1
        %v2479 = vadd.f32 %v2477, %v2478
        %v2482 = vsel %vm2312, %v2479, %v2470
        %s2484 = scalar_lea.vmem [#allocation9], 2
        %2485 = vst.msk [vmem:[%s2484] sm:$0x3] %vm1426, %v2482
        %s2486 = scalar_lea.vmem [#allocation5], 4
        %v2487 = vld [vmem:[%s2486] sm:$0x3]
        %v2490 = vunpack.c.l.s4 1966171168
        %v2491 = vunpack.c.0.s8 %v2490
        %v2492 = vlaneseq
        %v2493 = vshrl.u32 %v2492, 7
        %v2494 = vsub.s32 %v2491, %v2493
        %v2495 = vrot.slane %v2487, %v2494
        %v2496 = vcombine.high %v2495, %v2495
        %v2498 = vunpack.c.l.s4 1966171168
        %v2499 = vunpack.c.0.s8 %v2498
        %v2500 = vlaneseq
        %v2501 = vshrl.u32 %v2500, 7
        %v2502 = vsub.s32 %v2499, %v2501
        %v2503 = vrot.slane %v2495, %v2502
        %v2505 = vunpack.c.l.s4 1966171168
        %v2506 = vunpack.c.0.s8 %v2505
        %v2507 = vlaneseq
        %v2508 = vshrl.u32 %v2507, 7
        %v2509 = vsub.s32 %v2506, %v2508
        %v2510 = vrot.slane %v2496, %v2509
        %v2511 = vlaneseq
        %v2512 = vshrl.u32 %v2511, 7
        %v2513 = vsub.s32 0, %v2512
        %v2514 = vrot.slane %v2503, %v2513
        %v2515 = vlaneseq
        %v2516 = vshrl.u32 %v2515, 7
        %v2517 = vsub.s32 0, %v2516
        %v2518 = vrot.slane %v2510, %v2517
        %v2521 = vmul.f32 %v2514, %v2148
        %v2522 = vmul.f32 %v2514, %v2149
        %v2523 = vmul.f32 %v2518, %v2148
        %v2524 = vmul.f32 %v2518, %v2149
        %v2525 = vmul.f32 %v2521, 1.442695
        %v2526 = vpow.pop %v2525
        %v2527 = vmul.f32 %v2522, 1.442695
        %v2528 = vpow.pop %v2527
        %v2529 = vmul.f32 %v2523, 1.442695
        %v2530 = vpow.pop %v2529
        %v2531 = vmul.f32 %v2524, 1.442695
        %v2532 = vpow.pop %v2531
        %v2533 = vmul.f32 %v2526, %v2430
        %v2534 = vmul.f32 %v2528, %v2431
        %v2535 = vmul.f32 %v2530, %v2432
        %v2536 = vmul.f32 %v2532, %v2433
        %s2537 = scalar_lea.vmem [#allocation7], 4
        %v2538 = vld [vmem:[%s2537] sm:$0x3]
        %v2539 = vlaneseq
        %v2540 = vshrl.u32 %v2539, 7
        %v2541 = vsub.s32 0, %v2540
        %v2542 = vrot.slane %v2538, %v2541
        %2544 = vbcast.lane.b32.xlu0 %v2542, 256
        %v2545 = vpop.permute.xlu0 %2544
        %s2547 = sor.u32 256, 8
        %2548 = vbcast.lane.b32.xlu0 %v2542, %s2547
        %v2549 = vpop.permute.xlu0 %2548
        %v2550 = vlaneseq
        %v2551 = vshrl.u32 %v2550, 7
        %v2552 = vsub.s32 1, %v2551
        %v2553 = vrot.slane %v2538, %v2552
        %2555 = vbcast.lane.b32.xlu0 %v2553, 256
        %v2556 = vpop.permute.xlu0 %2555
        %s2558 = sor.u32 256, 8
        %2559 = vbcast.lane.b32.xlu0 %v2553, %s2558
        %v2560 = vpop.permute.xlu0 %2559
        %s2561 = scalar_lea.vmem [#allocation6], 4
        %v2562 = vld [vmem:[%s2561] sm:$0x3]
        %v2565 = vunpack.c.l.s4 1966171168
        %v2566 = vunpack.c.0.s8 %v2565
        %v2567 = vlaneseq
        %v2568 = vshrl.u32 %v2567, 7
        %v2569 = vsub.s32 %v2566, %v2568
        %v2570 = vrot.slane %v2562, %v2569
        %v2571 = vcombine.high %v2570, %v2570
        %v2573 = vunpack.c.l.s4 1966171168
        %v2574 = vunpack.c.0.s8 %v2573
        %v2575 = vlaneseq
        %v2576 = vshrl.u32 %v2575, 7
        %v2577 = vsub.s32 %v2574, %v2576
        %v2578 = vrot.slane %v2570, %v2577
        %v2580 = vunpack.c.l.s4 1966171168
        %v2581 = vunpack.c.0.s8 %v2580
        %v2582 = vlaneseq
        %v2583 = vshrl.u32 %v2582, 7
        %v2584 = vsub.s32 %v2581, %v2583
        %v2585 = vrot.slane %v2571, %v2584
        %v2586 = vlaneseq
        %v2587 = vshrl.u32 %v2586, 7
        %v2588 = vsub.s32 0, %v2587
        %v2589 = vrot.slane %v2578, %v2588
        %v2590 = vlaneseq
        %v2591 = vshrl.u32 %v2590, 7
        %v2592 = vsub.s32 0, %v2591
        %v2593 = vrot.slane %v2585, %v2592
        %v2596 = vmul.f32 %v2545, %v2589
        %v2597 = vmul.f32 %v2549, %v2589
        %v2598 = vmul.f32 %v2556, %v2593
        %v2599 = vmul.f32 %v2560, %v2593
        %v2600 = vadd.f32 %v2533, %v2596
        %v2601 = vadd.f32 %v2534, %v2597
        %v2602 = vadd.f32 %v2535, %v2598
        %v2603 = vadd.f32 %v2536, %v2599
        %s2604 = scalar_lea.vmem [#allocation8], 4
        %v2605 = vld [vmem:[%s2604] sm:$0x3]
        %v2606 = vlaneseq
        %v2607 = vshrl.u32 %v2606, 7
        %v2608 = vsub.s32 0, %v2607
        %v2609 = vrot.slane %v2605, %v2608
        %2611 = vbcast.lane.b32.xlu0 %v2609, 256
        %v2612 = vpop.permute.xlu0 %2611
        %s2614 = sor.u32 256, 8
        %2615 = vbcast.lane.b32.xlu0 %v2609, %s2614
        %v2616 = vpop.permute.xlu0 %2615
        %v2617 = vlaneseq
        %v2618 = vshrl.u32 %v2617, 7
        %v2619 = vsub.s32 1, %v2618
        %v2620 = vrot.slane %v2605, %v2619
        %2622 = vbcast.lane.b32.xlu0 %v2620, 256
        %v2623 = vpop.permute.xlu0 %2622
        %s2625 = sor.u32 256, 8
        %2626 = vbcast.lane.b32.xlu0 %v2620, %s2625
        %v2627 = vpop.permute.xlu0 %2626
        %v2628 = vmul.f32 %v2612, %v2600
        %v2629 = vmul.f32 %v2616, %v2601
        %v2630 = vmul.f32 %v2623, %v2602
        %v2631 = vmul.f32 %v2627, %v2603
        %v2632 = vsel %vm1724, %v2628, 0.0
        %v2633 = vsel %vm1724, %v2629, 0.0
        %v2634 = vadd.f32 %v2632, %v2633
        %v2635 = vrot.slane %v2634, 4
        %v2636 = vadd.f32 %v2634, %v2635
        %v2637 = vrot.slane %v2636, 2
        %v2638 = vadd.f32 %v2636, %v2637
        %v2639 = vrot.slane %v2638, 1
        %v2640 = vadd.f32 %v2638, %v2639
        %v2641 = vsel %vm1724, %v2630, 0.0
        %v2642 = vsel %vm1724, %v2631, 0.0
        %v2643 = vadd.f32 %v2641, %v2642
        %v2644 = vrot.slane %v2643, 4
        %v2645 = vadd.f32 %v2643, %v2644
        %v2646 = vrot.slane %v2645, 2
        %v2647 = vadd.f32 %v2645, %v2646
        %v2648 = vrot.slane %v2647, 1
        %v2649 = vadd.f32 %v2647, %v2648
        %v2652 = vsel %vm2312, %v2649, %v2640
        %s2654 = scalar_lea.vmem [#allocation9], 4
        %2655 = vst.msk [vmem:[%s2654] sm:$0x3] %vm1426, %v2652
        %s2656 = scalar_lea.vmem [#allocation5], 6
        %v2657 = vld [vmem:[%s2656] sm:$0x3]
        %v2660 = vunpack.c.l.s4 1966171168
        %v2661 = vunpack.c.0.s8 %v2660
        %v2662 = vlaneseq
        %v2663 = vshrl.u32 %v2662, 7
        %v2664 = vsub.s32 %v2661, %v2663
        %v2665 = vrot.slane %v2657, %v2664
        %v2666 = vcombine.high %v2665, %v2665
        %v2668 = vunpack.c.l.s4 1966171168
        %v2669 = vunpack.c.0.s8 %v2668
        %v2670 = vlaneseq
        %v2671 = vshrl.u32 %v2670, 7
        %v2672 = vsub.s32 %v2669, %v2671
        %v2673 = vrot.slane %v2665, %v2672
        %v2675 = vunpack.c.l.s4 1966171168
        %v2676 = vunpack.c.0.s8 %v2675
        %v2677 = vlaneseq
        %v2678 = vshrl.u32 %v2677, 7
        %v2679 = vsub.s32 %v2676, %v2678
        %v2680 = vrot.slane %v2666, %v2679
        %v2681 = vlaneseq
        %v2682 = vshrl.u32 %v2681, 7
        %v2683 = vsub.s32 0, %v2682
        %v2684 = vrot.slane %v2673, %v2683
        %v2685 = vlaneseq
        %v2686 = vshrl.u32 %v2685, 7
        %v2687 = vsub.s32 0, %v2686
        %v2688 = vrot.slane %v2680, %v2687
        %v2691 = vmul.f32 %v2684, %v2148
        %v2692 = vmul.f32 %v2684, %v2149
        %v2693 = vmul.f32 %v2688, %v2148
        %v2694 = vmul.f32 %v2688, %v2149
        %v2695 = vmul.f32 %v2691, 1.442695
        %v2696 = vpow.pop %v2695
        %v2697 = vmul.f32 %v2692, 1.442695
        %v2698 = vpow.pop %v2697
        %v2699 = vmul.f32 %v2693, 1.442695
        %v2700 = vpow.pop %v2699
        %v2701 = vmul.f32 %v2694, 1.442695
        %v2702 = vpow.pop %v2701
        %v2703 = vmul.f32 %v2696, %v2600
        %v2704 = vmul.f32 %v2698, %v2601
        %v2705 = vmul.f32 %v2700, %v2602
        %v2706 = vmul.f32 %v2702, %v2603
        %s2707 = scalar_lea.vmem [#allocation7], 6
        %v2708 = vld [vmem:[%s2707] sm:$0x3]
        %v2709 = vlaneseq
        %v2710 = vshrl.u32 %v2709, 7
        %v2711 = vsub.s32 0, %v2710
        %v2712 = vrot.slane %v2708, %v2711
        %2714 = vbcast.lane.b32.xlu0 %v2712, 256
        %v2715 = vpop.permute.xlu0 %2714
        %s2717 = sor.u32 256, 8
        %2718 = vbcast.lane.b32.xlu0 %v2712, %s2717
        %v2719 = vpop.permute.xlu0 %2718
        %v2720 = vlaneseq
        %v2721 = vshrl.u32 %v2720, 7
        %v2722 = vsub.s32 1, %v2721
        %v2723 = vrot.slane %v2708, %v2722
        %2725 = vbcast.lane.b32.xlu0 %v2723, 256
        %v2726 = vpop.permute.xlu0 %2725
        %s2728 = sor.u32 256, 8
        %2729 = vbcast.lane.b32.xlu0 %v2723, %s2728
        %v2730 = vpop.permute.xlu0 %2729
        %s2731 = scalar_lea.vmem [#allocation6], 6
        %v2732 = vld [vmem:[%s2731] sm:$0x3]
        %v2735 = vunpack.c.l.s4 1966171168
        %v2736 = vunpack.c.0.s8 %v2735
        %v2737 = vlaneseq
        %v2738 = vshrl.u32 %v2737, 7
        %v2739 = vsub.s32 %v2736, %v2738
        %v2740 = vrot.slane %v2732, %v2739
        %v2741 = vcombine.high %v2740, %v2740
        %v2743 = vunpack.c.l.s4 1966171168
        %v2744 = vunpack.c.0.s8 %v2743
        %v2745 = vlaneseq
        %v2746 = vshrl.u32 %v2745, 7
        %v2747 = vsub.s32 %v2744, %v2746
        %v2748 = vrot.slane %v2740, %v2747
        %v2750 = vunpack.c.l.s4 1966171168
        %v2751 = vunpack.c.0.s8 %v2750
        %v2752 = vlaneseq
        %v2753 = vshrl.u32 %v2752, 7
        %v2754 = vsub.s32 %v2751, %v2753
        %v2755 = vrot.slane %v2741, %v2754
        %v2756 = vlaneseq
        %v2757 = vshrl.u32 %v2756, 7
        %v2758 = vsub.s32 0, %v2757
        %v2759 = vrot.slane %v2748, %v2758
        %v2760 = vlaneseq
        %v2761 = vshrl.u32 %v2760, 7
        %v2762 = vsub.s32 0, %v2761
        %v2763 = vrot.slane %v2755, %v2762
        %v2766 = vmul.f32 %v2715, %v2759
        %v2767 = vmul.f32 %v2719, %v2759
        %v2768 = vmul.f32 %v2726, %v2763
        %v2769 = vmul.f32 %v2730, %v2763
        %v2770 = vadd.f32 %v2703, %v2766
        %v2771 = vadd.f32 %v2704, %v2767
        %v2772 = vadd.f32 %v2705, %v2768
        %v2773 = vadd.f32 %v2706, %v2769
        %s2774 = scalar_lea.vmem [#allocation8], 6
        %v2775 = vld [vmem:[%s2774] sm:$0x3]
        %v2776 = vlaneseq
        %v2777 = vshrl.u32 %v2776, 7
        %v2778 = vsub.s32 0, %v2777
        %v2779 = vrot.slane %v2775, %v2778
        %2781 = vbcast.lane.b32.xlu0 %v2779, 256
        %v2782 = vpop.permute.xlu0 %2781
        %s2784 = sor.u32 256, 8
        %2785 = vbcast.lane.b32.xlu0 %v2779, %s2784
        %v2786 = vpop.permute.xlu0 %2785
        %v2787 = vlaneseq
        %v2788 = vshrl.u32 %v2787, 7
        %v2789 = vsub.s32 1, %v2788
        %v2790 = vrot.slane %v2775, %v2789
        %2792 = vbcast.lane.b32.xlu0 %v2790, 256
        %v2793 = vpop.permute.xlu0 %2792
        %s2795 = sor.u32 256, 8
        %2796 = vbcast.lane.b32.xlu0 %v2790, %s2795
        %v2797 = vpop.permute.xlu0 %2796
        %v2798 = vmul.f32 %v2782, %v2770
        %v2799 = vmul.f32 %v2786, %v2771
        %v2800 = vmul.f32 %v2793, %v2772
        %v2801 = vmul.f32 %v2797, %v2773
        %v2802 = vsel %vm1724, %v2798, 0.0
        %v2803 = vsel %vm1724, %v2799, 0.0
        %v2804 = vadd.f32 %v2802, %v2803
        %v2805 = vrot.slane %v2804, 4
        %v2806 = vadd.f32 %v2804, %v2805
        %v2807 = vrot.slane %v2806, 2
        %v2808 = vadd.f32 %v2806, %v2807
        %v2809 = vrot.slane %v2808, 1
        %v2810 = vadd.f32 %v2808, %v2809
        %v2811 = vsel %vm1724, %v2800, 0.0
        %v2812 = vsel %vm1724, %v2801, 0.0
        %v2813 = vadd.f32 %v2811, %v2812
        %v2814 = vrot.slane %v2813, 4
        %v2815 = vadd.f32 %v2813, %v2814
        %v2816 = vrot.slane %v2815, 2
        %v2817 = vadd.f32 %v2815, %v2816
        %v2818 = vrot.slane %v2817, 1
        %v2819 = vadd.f32 %v2817, %v2818
        %v2822 = vsel %vm2312, %v2819, %v2810
        %s2824 = scalar_lea.vmem [#allocation9], 6
        %2825 = vst.msk [vmem:[%s2824] sm:$0x3] %vm1426, %v2822
        %s2826 = scalar_lea.vmem [#allocation5], 8
        %v2827 = vld [vmem:[%s2826] sm:$0x3]
        %v2830 = vunpack.c.l.s4 1966171168
        %v2831 = vunpack.c.0.s8 %v2830
        %v2832 = vlaneseq
        %v2833 = vshrl.u32 %v2832, 7
        %v2834 = vsub.s32 %v2831, %v2833
        %v2835 = vrot.slane %v2827, %v2834
        %v2836 = vcombine.high %v2835, %v2835
        %v2838 = vunpack.c.l.s4 1966171168
        %v2839 = vunpack.c.0.s8 %v2838
        %v2840 = vlaneseq
        %v2841 = vshrl.u32 %v2840, 7
        %v2842 = vsub.s32 %v2839, %v2841
        %v2843 = vrot.slane %v2835, %v2842
        %v2845 = vunpack.c.l.s4 1966171168
        %v2846 = vunpack.c.0.s8 %v2845
        %v2847 = vlaneseq
        %v2848 = vshrl.u32 %v2847, 7
        %v2849 = vsub.s32 %v2846, %v2848
        %v2850 = vrot.slane %v2836, %v2849
        %v2851 = vlaneseq
        %v2852 = vshrl.u32 %v2851, 7
        %v2853 = vsub.s32 0, %v2852
        %v2854 = vrot.slane %v2843, %v2853
        %v2855 = vlaneseq
        %v2856 = vshrl.u32 %v2855, 7
        %v2857 = vsub.s32 0, %v2856
        %v2858 = vrot.slane %v2850, %v2857
        %v2861 = vmul.f32 %v2854, %v2148
        %v2862 = vmul.f32 %v2854, %v2149
        %v2863 = vmul.f32 %v2858, %v2148
        %v2864 = vmul.f32 %v2858, %v2149
        %v2865 = vmul.f32 %v2861, 1.442695
        %v2866 = vpow.pop %v2865
        %v2867 = vmul.f32 %v2862, 1.442695
        %v2868 = vpow.pop %v2867
        %v2869 = vmul.f32 %v2863, 1.442695
        %v2870 = vpow.pop %v2869
        %v2871 = vmul.f32 %v2864, 1.442695
        %v2872 = vpow.pop %v2871
        %v2873 = vmul.f32 %v2866, %v2770
        %v2874 = vmul.f32 %v2868, %v2771
        %v2875 = vmul.f32 %v2870, %v2772
        %v2876 = vmul.f32 %v2872, %v2773
        %s2877 = scalar_lea.vmem [#allocation7], 8
        %v2878 = vld [vmem:[%s2877] sm:$0x3]
        %v2879 = vlaneseq
        %v2880 = vshrl.u32 %v2879, 7
        %v2881 = vsub.s32 0, %v2880
        %v2882 = vrot.slane %v2878, %v2881
        %2884 = vbcast.lane.b32.xlu0 %v2882, 256
        %v2885 = vpop.permute.xlu0 %2884
        %s2887 = sor.u32 256, 8
        %2888 = vbcast.lane.b32.xlu0 %v2882, %s2887
        %v2889 = vpop.permute.xlu0 %2888
        %v2890 = vlaneseq
        %v2891 = vshrl.u32 %v2890, 7
        %v2892 = vsub.s32 1, %v2891
        %v2893 = vrot.slane %v2878, %v2892
        %2895 = vbcast.lane.b32.xlu0 %v2893, 256
        %v2896 = vpop.permute.xlu0 %2895
        %s2898 = sor.u32 256, 8
        %2899 = vbcast.lane.b32.xlu0 %v2893, %s2898
        %v2900 = vpop.permute.xlu0 %2899
        %s2901 = scalar_lea.vmem [#allocation6], 8
        %v2902 = vld [vmem:[%s2901] sm:$0x3]
        %v2905 = vunpack.c.l.s4 1966171168
        %v2906 = vunpack.c.0.s8 %v2905
        %v2907 = vlaneseq
        %v2908 = vshrl.u32 %v2907, 7
        %v2909 = vsub.s32 %v2906, %v2908
        %v2910 = vrot.slane %v2902, %v2909
        %v2911 = vcombine.high %v2910, %v2910
        %v2913 = vunpack.c.l.s4 1966171168
        %v2914 = vunpack.c.0.s8 %v2913
        %v2915 = vlaneseq
        %v2916 = vshrl.u32 %v2915, 7
        %v2917 = vsub.s32 %v2914, %v2916
        %v2918 = vrot.slane %v2910, %v2917
        %v2920 = vunpack.c.l.s4 1966171168
        %v2921 = vunpack.c.0.s8 %v2920
        %v2922 = vlaneseq
        %v2923 = vshrl.u32 %v2922, 7
        %v2924 = vsub.s32 %v2921, %v2923
        %v2925 = vrot.slane %v2911, %v2924
        %v2926 = vlaneseq
        %v2927 = vshrl.u32 %v2926, 7
        %v2928 = vsub.s32 0, %v2927
        %v2929 = vrot.slane %v2918, %v2928
        %v2930 = vlaneseq
        %v2931 = vshrl.u32 %v2930, 7
        %v2932 = vsub.s32 0, %v2931
        %v2933 = vrot.slane %v2925, %v2932
        %v2936 = vmul.f32 %v2885, %v2929
        %v2937 = vmul.f32 %v2889, %v2929
        %v2938 = vmul.f32 %v2896, %v2933
        %v2939 = vmul.f32 %v2900, %v2933
        %v2940 = vadd.f32 %v2873, %v2936
        %v2941 = vadd.f32 %v2874, %v2937
        %v2942 = vadd.f32 %v2875, %v2938
        %v2943 = vadd.f32 %v2876, %v2939
        %s2944 = scalar_lea.vmem [#allocation8], 8
        %v2945 = vld [vmem:[%s2944] sm:$0x3]
        %v2946 = vlaneseq
        %v2947 = vshrl.u32 %v2946, 7
        %v2948 = vsub.s32 0, %v2947
        %v2949 = vrot.slane %v2945, %v2948
        %2951 = vbcast.lane.b32.xlu0 %v2949, 256
        %v2952 = vpop.permute.xlu0 %2951
        %s2954 = sor.u32 256, 8
        %2955 = vbcast.lane.b32.xlu0 %v2949, %s2954
        %v2956 = vpop.permute.xlu0 %2955
        %v2957 = vlaneseq
        %v2958 = vshrl.u32 %v2957, 7
        %v2959 = vsub.s32 1, %v2958
        %v2960 = vrot.slane %v2945, %v2959
        %2962 = vbcast.lane.b32.xlu0 %v2960, 256
        %v2963 = vpop.permute.xlu0 %2962
        %s2965 = sor.u32 256, 8
        %2966 = vbcast.lane.b32.xlu0 %v2960, %s2965
        %v2967 = vpop.permute.xlu0 %2966
        %v2968 = vmul.f32 %v2952, %v2940
        %v2969 = vmul.f32 %v2956, %v2941
        %v2970 = vmul.f32 %v2963, %v2942
        %v2971 = vmul.f32 %v2967, %v2943
        %v2972 = vsel %vm1724, %v2968, 0.0
        %v2973 = vsel %vm1724, %v2969, 0.0
        %v2974 = vadd.f32 %v2972, %v2973
        %v2975 = vrot.slane %v2974, 4
        %v2976 = vadd.f32 %v2974, %v2975
        %v2977 = vrot.slane %v2976, 2
        %v2978 = vadd.f32 %v2976, %v2977
        %v2979 = vrot.slane %v2978, 1
        %v2980 = vadd.f32 %v2978, %v2979
        %v2981 = vsel %vm1724, %v2970, 0.0
        %v2982 = vsel %vm1724, %v2971, 0.0
        %v2983 = vadd.f32 %v2981, %v2982
        %v2984 = vrot.slane %v2983, 4
        %v2985 = vadd.f32 %v2983, %v2984
        %v2986 = vrot.slane %v2985, 2
        %v2987 = vadd.f32 %v2985, %v2986
        %v2988 = vrot.slane %v2987, 1
        %v2989 = vadd.f32 %v2987, %v2988
        %v2992 = vsel %vm2312, %v2989, %v2980
        %s2994 = scalar_lea.vmem [#allocation9], 8
        %2995 = vst.msk [vmem:[%s2994] sm:$0x3] %vm1426, %v2992
        %s2996 = scalar_lea.vmem [#allocation5], 10
        %v2997 = vld [vmem:[%s2996] sm:$0x3]
        %v3000 = vunpack.c.l.s4 1966171168
        %v3001 = vunpack.c.0.s8 %v3000
        %v3002 = vlaneseq
        %v3003 = vshrl.u32 %v3002, 7
        %v3004 = vsub.s32 %v3001, %v3003
        %v3005 = vrot.slane %v2997, %v3004
        %v3006 = vcombine.high %v3005, %v3005
        %v3008 = vunpack.c.l.s4 1966171168
        %v3009 = vunpack.c.0.s8 %v3008
        %v3010 = vlaneseq
        %v3011 = vshrl.u32 %v3010, 7
        %v3012 = vsub.s32 %v3009, %v3011
        %v3013 = vrot.slane %v3005, %v3012
        %v3015 = vunpack.c.l.s4 1966171168
        %v3016 = vunpack.c.0.s8 %v3015
        %v3017 = vlaneseq
        %v3018 = vshrl.u32 %v3017, 7
        %v3019 = vsub.s32 %v3016, %v3018
        %v3020 = vrot.slane %v3006, %v3019
        %v3021 = vlaneseq
        %v3022 = vshrl.u32 %v3021, 7
        %v3023 = vsub.s32 0, %v3022
        %v3024 = vrot.slane %v3013, %v3023
        %v3025 = vlaneseq
        %v3026 = vshrl.u32 %v3025, 7
        %v3027 = vsub.s32 0, %v3026
        %v3028 = vrot.slane %v3020, %v3027
        %v3031 = vmul.f32 %v3024, %v2148
        %v3032 = vmul.f32 %v3024, %v2149
        %v3033 = vmul.f32 %v3028, %v2148
        %v3034 = vmul.f32 %v3028, %v2149
        %v3035 = vmul.f32 %v3031, 1.442695
        %v3036 = vpow.pop %v3035
        %v3037 = vmul.f32 %v3032, 1.442695
        %v3038 = vpow.pop %v3037
        %v3039 = vmul.f32 %v3033, 1.442695
        %v3040 = vpow.pop %v3039
        %v3041 = vmul.f32 %v3034, 1.442695
        %v3042 = vpow.pop %v3041
        %v3043 = vmul.f32 %v3036, %v2940
        %v3044 = vmul.f32 %v3038, %v2941
        %v3045 = vmul.f32 %v3040, %v2942
        %v3046 = vmul.f32 %v3042, %v2943
        %s3047 = scalar_lea.vmem [#allocation7], 10
        %v3048 = vld [vmem:[%s3047] sm:$0x3]
        %v3049 = vlaneseq
        %v3050 = vshrl.u32 %v3049, 7
        %v3051 = vsub.s32 0, %v3050
        %v3052 = vrot.slane %v3048, %v3051
        %3054 = vbcast.lane.b32.xlu0 %v3052, 256
        %v3055 = vpop.permute.xlu0 %3054
        %s3057 = sor.u32 256, 8
        %3058 = vbcast.lane.b32.xlu0 %v3052, %s3057
        %v3059 = vpop.permute.xlu0 %3058
        %v3060 = vlaneseq
        %v3061 = vshrl.u32 %v3060, 7
        %v3062 = vsub.s32 1, %v3061
        %v3063 = vrot.slane %v3048, %v3062
        %3065 = vbcast.lane.b32.xlu0 %v3063, 256
        %v3066 = vpop.permute.xlu0 %3065
        %s3068 = sor.u32 256, 8
        %3069 = vbcast.lane.b32.xlu0 %v3063, %s3068
        %v3070 = vpop.permute.xlu0 %3069
        %s3071 = scalar_lea.vmem [#allocation6], 10
        %v3072 = vld [vmem:[%s3071] sm:$0x3]
        %v3075 = vunpack.c.l.s4 1966171168
        %v3076 = vunpack.c.0.s8 %v3075
        %v3077 = vlaneseq
        %v3078 = vshrl.u32 %v3077, 7
        %v3079 = vsub.s32 %v3076, %v3078
        %v3080 = vrot.slane %v3072, %v3079
        %v3081 = vcombine.high %v3080, %v3080
        %v3083 = vunpack.c.l.s4 1966171168
        %v3084 = vunpack.c.0.s8 %v3083
        %v3085 = vlaneseq
        %v3086 = vshrl.u32 %v3085, 7
        %v3087 = vsub.s32 %v3084, %v3086
        %v3088 = vrot.slane %v3080, %v3087
        %v3090 = vunpack.c.l.s4 1966171168
        %v3091 = vunpack.c.0.s8 %v3090
        %v3092 = vlaneseq
        %v3093 = vshrl.u32 %v3092, 7
        %v3094 = vsub.s32 %v3091, %v3093
        %v3095 = vrot.slane %v3081, %v3094
        %v3096 = vlaneseq
        %v3097 = vshrl.u32 %v3096, 7
        %v3098 = vsub.s32 0, %v3097
        %v3099 = vrot.slane %v3088, %v3098
        %v3100 = vlaneseq
        %v3101 = vshrl.u32 %v3100, 7
        %v3102 = vsub.s32 0, %v3101
        %v3103 = vrot.slane %v3095, %v3102
        %v3106 = vmul.f32 %v3055, %v3099
        %v3107 = vmul.f32 %v3059, %v3099
        %v3108 = vmul.f32 %v3066, %v3103
        %v3109 = vmul.f32 %v3070, %v3103
        %v3110 = vadd.f32 %v3043, %v3106
        %v3111 = vadd.f32 %v3044, %v3107
        %v3112 = vadd.f32 %v3045, %v3108
        %v3113 = vadd.f32 %v3046, %v3109
        %s3114 = scalar_lea.vmem [#allocation8], 10
        %v3115 = vld [vmem:[%s3114] sm:$0x3]
        %v3116 = vlaneseq
        %v3117 = vshrl.u32 %v3116, 7
        %v3118 = vsub.s32 0, %v3117
        %v3119 = vrot.slane %v3115, %v3118
        %3121 = vbcast.lane.b32.xlu0 %v3119, 256
        %v3122 = vpop.permute.xlu0 %3121
        %s3124 = sor.u32 256, 8
        %3125 = vbcast.lane.b32.xlu0 %v3119, %s3124
        %v3126 = vpop.permute.xlu0 %3125
        %v3127 = vlaneseq
        %v3128 = vshrl.u32 %v3127, 7
        %v3129 = vsub.s32 1, %v3128
        %v3130 = vrot.slane %v3115, %v3129
        %3132 = vbcast.lane.b32.xlu0 %v3130, 256
        %v3133 = vpop.permute.xlu0 %3132
        %s3135 = sor.u32 256, 8
        %3136 = vbcast.lane.b32.xlu0 %v3130, %s3135
        %v3137 = vpop.permute.xlu0 %3136
        %v3138 = vmul.f32 %v3122, %v3110
        %v3139 = vmul.f32 %v3126, %v3111
        %v3140 = vmul.f32 %v3133, %v3112
        %v3141 = vmul.f32 %v3137, %v3113
        %v3142 = vsel %vm1724, %v3138, 0.0
        %v3143 = vsel %vm1724, %v3139, 0.0
        %v3144 = vadd.f32 %v3142, %v3143
        %v3145 = vrot.slane %v3144, 4
        %v3146 = vadd.f32 %v3144, %v3145
        %v3147 = vrot.slane %v3146, 2
        %v3148 = vadd.f32 %v3146, %v3147
        %v3149 = vrot.slane %v3148, 1
        %v3150 = vadd.f32 %v3148, %v3149
        %v3151 = vsel %vm1724, %v3140, 0.0
        %v3152 = vsel %vm1724, %v3141, 0.0
        %v3153 = vadd.f32 %v3151, %v3152
        %v3154 = vrot.slane %v3153, 4
        %v3155 = vadd.f32 %v3153, %v3154
        %v3156 = vrot.slane %v3155, 2
        %v3157 = vadd.f32 %v3155, %v3156
        %v3158 = vrot.slane %v3157, 1
        %v3159 = vadd.f32 %v3157, %v3158
        %v3162 = vsel %vm2312, %v3159, %v3150
        %s3164 = scalar_lea.vmem [#allocation9], 10
        %3165 = vst.msk [vmem:[%s3164] sm:$0x3] %vm1426, %v3162
        %s3166 = scalar_lea.vmem [#allocation5], 12
        %v3167 = vld [vmem:[%s3166] sm:$0x3]
        %v3170 = vunpack.c.l.s4 1966171168
        %v3171 = vunpack.c.0.s8 %v3170
        %v3172 = vlaneseq
        %v3173 = vshrl.u32 %v3172, 7
        %v3174 = vsub.s32 %v3171, %v3173
        %v3175 = vrot.slane %v3167, %v3174
        %v3176 = vcombine.high %v3175, %v3175
        %v3178 = vunpack.c.l.s4 1966171168
        %v3179 = vunpack.c.0.s8 %v3178
        %v3180 = vlaneseq
        %v3181 = vshrl.u32 %v3180, 7
        %v3182 = vsub.s32 %v3179, %v3181
        %v3183 = vrot.slane %v3175, %v3182
        %v3185 = vunpack.c.l.s4 1966171168
        %v3186 = vunpack.c.0.s8 %v3185
        %v3187 = vlaneseq
        %v3188 = vshrl.u32 %v3187, 7
        %v3189 = vsub.s32 %v3186, %v3188
        %v3190 = vrot.slane %v3176, %v3189
        %v3191 = vlaneseq
        %v3192 = vshrl.u32 %v3191, 7
        %v3193 = vsub.s32 0, %v3192
        %v3194 = vrot.slane %v3183, %v3193
        %v3195 = vlaneseq
        %v3196 = vshrl.u32 %v3195, 7
        %v3197 = vsub.s32 0, %v3196
        %v3198 = vrot.slane %v3190, %v3197
        %v3201 = vmul.f32 %v3194, %v2148
        %v3202 = vmul.f32 %v3194, %v2149
        %v3203 = vmul.f32 %v3198, %v2148
        %v3204 = vmul.f32 %v3198, %v2149
        %v3205 = vmul.f32 %v3201, 1.442695
        %v3206 = vpow.pop %v3205
        %v3207 = vmul.f32 %v3202, 1.442695
        %v3208 = vpow.pop %v3207
        %v3209 = vmul.f32 %v3203, 1.442695
        %v3210 = vpow.pop %v3209
        %v3211 = vmul.f32 %v3204, 1.442695
        %v3212 = vpow.pop %v3211
        %v3213 = vmul.f32 %v3206, %v3110
        %v3214 = vmul.f32 %v3208, %v3111
        %v3215 = vmul.f32 %v3210, %v3112
        %v3216 = vmul.f32 %v3212, %v3113
        %s3217 = scalar_lea.vmem [#allocation7], 12
        %v3218 = vld [vmem:[%s3217] sm:$0x3]
        %v3219 = vlaneseq
        %v3220 = vshrl.u32 %v3219, 7
        %v3221 = vsub.s32 0, %v3220
        %v3222 = vrot.slane %v3218, %v3221
        %3224 = vbcast.lane.b32.xlu0 %v3222, 256
        %v3225 = vpop.permute.xlu0 %3224
        %s3227 = sor.u32 256, 8
        %3228 = vbcast.lane.b32.xlu0 %v3222, %s3227
        %v3229 = vpop.permute.xlu0 %3228
        %v3230 = vlaneseq
        %v3231 = vshrl.u32 %v3230, 7
        %v3232 = vsub.s32 1, %v3231
        %v3233 = vrot.slane %v3218, %v3232
        %3235 = vbcast.lane.b32.xlu0 %v3233, 256
        %v3236 = vpop.permute.xlu0 %3235
        %s3238 = sor.u32 256, 8
        %3239 = vbcast.lane.b32.xlu0 %v3233, %s3238
        %v3240 = vpop.permute.xlu0 %3239
        %s3241 = scalar_lea.vmem [#allocation6], 12
        %v3242 = vld [vmem:[%s3241] sm:$0x3]
        %v3245 = vunpack.c.l.s4 1966171168
        %v3246 = vunpack.c.0.s8 %v3245
        %v3247 = vlaneseq
        %v3248 = vshrl.u32 %v3247, 7
        %v3249 = vsub.s32 %v3246, %v3248
        %v3250 = vrot.slane %v3242, %v3249
        %v3251 = vcombine.high %v3250, %v3250
        %v3253 = vunpack.c.l.s4 1966171168
        %v3254 = vunpack.c.0.s8 %v3253
        %v3255 = vlaneseq
        %v3256 = vshrl.u32 %v3255, 7
        %v3257 = vsub.s32 %v3254, %v3256
        %v3258 = vrot.slane %v3250, %v3257
        %v3260 = vunpack.c.l.s4 1966171168
        %v3261 = vunpack.c.0.s8 %v3260
        %v3262 = vlaneseq
        %v3263 = vshrl.u32 %v3262, 7
        %v3264 = vsub.s32 %v3261, %v3263
        %v3265 = vrot.slane %v3251, %v3264
        %v3266 = vlaneseq
        %v3267 = vshrl.u32 %v3266, 7
        %v3268 = vsub.s32 0, %v3267
        %v3269 = vrot.slane %v3258, %v3268
        %v3270 = vlaneseq
        %v3271 = vshrl.u32 %v3270, 7
        %v3272 = vsub.s32 0, %v3271
        %v3273 = vrot.slane %v3265, %v3272
        %v3276 = vmul.f32 %v3225, %v3269
        %v3277 = vmul.f32 %v3229, %v3269
        %v3278 = vmul.f32 %v3236, %v3273
        %v3279 = vmul.f32 %v3240, %v3273
        %v3280 = vadd.f32 %v3213, %v3276
        %v3281 = vadd.f32 %v3214, %v3277
        %v3282 = vadd.f32 %v3215, %v3278
        %v3283 = vadd.f32 %v3216, %v3279
        %s3284 = scalar_lea.vmem [#allocation8], 12
        %v3285 = vld [vmem:[%s3284] sm:$0x3]
        %v3286 = vlaneseq
        %v3287 = vshrl.u32 %v3286, 7
        %v3288 = vsub.s32 0, %v3287
        %v3289 = vrot.slane %v3285, %v3288
        %3291 = vbcast.lane.b32.xlu0 %v3289, 256
        %v3292 = vpop.permute.xlu0 %3291
        %s3294 = sor.u32 256, 8
        %3295 = vbcast.lane.b32.xlu0 %v3289, %s3294
        %v3296 = vpop.permute.xlu0 %3295
        %v3297 = vlaneseq
        %v3298 = vshrl.u32 %v3297, 7
        %v3299 = vsub.s32 1, %v3298
        %v3300 = vrot.slane %v3285, %v3299
        %3302 = vbcast.lane.b32.xlu0 %v3300, 256
        %v3303 = vpop.permute.xlu0 %3302
        %s3305 = sor.u32 256, 8
        %3306 = vbcast.lane.b32.xlu0 %v3300, %s3305
        %v3307 = vpop.permute.xlu0 %3306
        %v3308 = vmul.f32 %v3292, %v3280
        %v3309 = vmul.f32 %v3296, %v3281
        %v3310 = vmul.f32 %v3303, %v3282
        %v3311 = vmul.f32 %v3307, %v3283
        %v3312 = vsel %vm1724, %v3308, 0.0
        %v3313 = vsel %vm1724, %v3309, 0.0
        %v3314 = vadd.f32 %v3312, %v3313
        %v3315 = vrot.slane %v3314, 4
        %v3316 = vadd.f32 %v3314, %v3315
        %v3317 = vrot.slane %v3316, 2
        %v3318 = vadd.f32 %v3316, %v3317
        %v3319 = vrot.slane %v3318, 1
        %v3320 = vadd.f32 %v3318, %v3319
        %v3321 = vsel %vm1724, %v3310, 0.0
        %v3322 = vsel %vm1724, %v3311, 0.0
        %v3323 = vadd.f32 %v3321, %v3322
        %v3324 = vrot.slane %v3323, 4
        %v3325 = vadd.f32 %v3323, %v3324
        %v3326 = vrot.slane %v3325, 2
        %v3327 = vadd.f32 %v3325, %v3326
        %v3328 = vrot.slane %v3327, 1
        %v3329 = vadd.f32 %v3327, %v3328
        %v3332 = vsel %vm2312, %v3329, %v3320
        %s3334 = scalar_lea.vmem [#allocation9], 12
        %3335 = vst.msk [vmem:[%s3334] sm:$0x3] %vm1426, %v3332
        %s3336 = scalar_lea.vmem [#allocation5], 14
        %v3337 = vld [vmem:[%s3336] sm:$0x3]
        %v3340 = vunpack.c.l.s4 1966171168
        %v3341 = vunpack.c.0.s8 %v3340
        %v3342 = vlaneseq
        %v3343 = vshrl.u32 %v3342, 7
        %v3344 = vsub.s32 %v3341, %v3343
        %v3345 = vrot.slane %v3337, %v3344
        %v3346 = vcombine.high %v3345, %v3345
        %v3348 = vunpack.c.l.s4 1966171168
        %v3349 = vunpack.c.0.s8 %v3348
        %v3350 = vlaneseq
        %v3351 = vshrl.u32 %v3350, 7
        %v3352 = vsub.s32 %v3349, %v3351
        %v3353 = vrot.slane %v3345, %v3352
        %v3355 = vunpack.c.l.s4 1966171168
        %v3356 = vunpack.c.0.s8 %v3355
        %v3357 = vlaneseq
        %v3358 = vshrl.u32 %v3357, 7
        %v3359 = vsub.s32 %v3356, %v3358
        %v3360 = vrot.slane %v3346, %v3359
        %v3361 = vlaneseq
        %v3362 = vshrl.u32 %v3361, 7
        %v3363 = vsub.s32 0, %v3362
        %v3364 = vrot.slane %v3353, %v3363
        %v3365 = vlaneseq
        %v3366 = vshrl.u32 %v3365, 7
        %v3367 = vsub.s32 0, %v3366
        %v3368 = vrot.slane %v3360, %v3367
        %v3371 = vmul.f32 %v3364, %v2148
        %v3372 = vmul.f32 %v3364, %v2149
        %v3373 = vmul.f32 %v3368, %v2148
        %v3374 = vmul.f32 %v3368, %v2149
        %v3375 = vmul.f32 %v3371, 1.442695
        %v3376 = vpow.pop %v3375
        %v3377 = vmul.f32 %v3372, 1.442695
        %v3378 = vpow.pop %v3377
        %v3379 = vmul.f32 %v3373, 1.442695
        %v3380 = vpow.pop %v3379
        %v3381 = vmul.f32 %v3374, 1.442695
        %v3382 = vpow.pop %v3381
        %v3383 = vmul.f32 %v3376, %v3280
        %v3384 = vmul.f32 %v3378, %v3281
        %v3385 = vmul.f32 %v3380, %v3282
        %v3386 = vmul.f32 %v3382, %v3283
        %s3387 = scalar_lea.vmem [#allocation7], 14
        %v3388 = vld [vmem:[%s3387] sm:$0x3]
        %v3389 = vlaneseq
        %v3390 = vshrl.u32 %v3389, 7
        %v3391 = vsub.s32 0, %v3390
        %v3392 = vrot.slane %v3388, %v3391
        %3394 = vbcast.lane.b32.xlu0 %v3392, 256
        %v3395 = vpop.permute.xlu0 %3394
        %s3397 = sor.u32 256, 8
        %3398 = vbcast.lane.b32.xlu0 %v3392, %s3397
        %v3399 = vpop.permute.xlu0 %3398
        %v3400 = vlaneseq
        %v3401 = vshrl.u32 %v3400, 7
        %v3402 = vsub.s32 1, %v3401
        %v3403 = vrot.slane %v3388, %v3402
        %3405 = vbcast.lane.b32.xlu0 %v3403, 256
        %v3406 = vpop.permute.xlu0 %3405
        %s3408 = sor.u32 256, 8
        %3409 = vbcast.lane.b32.xlu0 %v3403, %s3408
        %v3410 = vpop.permute.xlu0 %3409
        %s3411 = scalar_lea.vmem [#allocation6], 14
        %v3412 = vld [vmem:[%s3411] sm:$0x3]
        %v3415 = vunpack.c.l.s4 1966171168
        %v3416 = vunpack.c.0.s8 %v3415
        %v3417 = vlaneseq
        %v3418 = vshrl.u32 %v3417, 7
        %v3419 = vsub.s32 %v3416, %v3418
        %v3420 = vrot.slane %v3412, %v3419
        %v3421 = vcombine.high %v3420, %v3420
        %v3423 = vunpack.c.l.s4 1966171168
        %v3424 = vunpack.c.0.s8 %v3423
        %v3425 = vlaneseq
        %v3426 = vshrl.u32 %v3425, 7
        %v3427 = vsub.s32 %v3424, %v3426
        %v3428 = vrot.slane %v3420, %v3427
        %v3430 = vunpack.c.l.s4 1966171168
        %v3431 = vunpack.c.0.s8 %v3430
        %v3432 = vlaneseq
        %v3433 = vshrl.u32 %v3432, 7
        %v3434 = vsub.s32 %v3431, %v3433
        %v3435 = vrot.slane %v3421, %v3434
        %v3436 = vlaneseq
        %v3437 = vshrl.u32 %v3436, 7
        %v3438 = vsub.s32 0, %v3437
        %v3439 = vrot.slane %v3428, %v3438
        %v3440 = vlaneseq
        %v3441 = vshrl.u32 %v3440, 7
        %v3442 = vsub.s32 0, %v3441
        %v3443 = vrot.slane %v3435, %v3442
        %v3446 = vmul.f32 %v3395, %v3439
        %v3447 = vmul.f32 %v3399, %v3439
        %v3448 = vmul.f32 %v3406, %v3443
        %v3449 = vmul.f32 %v3410, %v3443
        %v3450 = vadd.f32 %v3383, %v3446
        %v3451 = vadd.f32 %v3384, %v3447
        %v3452 = vadd.f32 %v3385, %v3448
        %v3453 = vadd.f32 %v3386, %v3449
        %s3454 = scalar_lea.vmem [#allocation8], 14
        %v3455 = vld [vmem:[%s3454] sm:$0x3]
        %v3456 = vlaneseq
        %v3457 = vshrl.u32 %v3456, 7
        %v3458 = vsub.s32 0, %v3457
        %v3459 = vrot.slane %v3455, %v3458
        %3461 = vbcast.lane.b32.xlu0 %v3459, 256
        %v3462 = vpop.permute.xlu0 %3461
        %s3464 = sor.u32 256, 8
        %3465 = vbcast.lane.b32.xlu0 %v3459, %s3464
        %v3466 = vpop.permute.xlu0 %3465
        %v3467 = vlaneseq
        %v3468 = vshrl.u32 %v3467, 7
        %v3469 = vsub.s32 1, %v3468
        %v3470 = vrot.slane %v3455, %v3469
        %3472 = vbcast.lane.b32.xlu0 %v3470, 256
        %v3473 = vpop.permute.xlu0 %3472
        %s3475 = sor.u32 256, 8
        %3476 = vbcast.lane.b32.xlu0 %v3470, %s3475
        %v3477 = vpop.permute.xlu0 %3476
        %v3478 = vmul.f32 %v3462, %v3450
        %v3479 = vmul.f32 %v3466, %v3451
        %v3480 = vmul.f32 %v3473, %v3452
        %v3481 = vmul.f32 %v3477, %v3453
        %v3482 = vsel %vm1724, %v3478, 0.0
        %v3483 = vsel %vm1724, %v3479, 0.0
        %v3484 = vadd.f32 %v3482, %v3483
        %v3485 = vrot.slane %v3484, 4
        %v3486 = vadd.f32 %v3484, %v3485
        %v3487 = vrot.slane %v3486, 2
        %v3488 = vadd.f32 %v3486, %v3487
        %v3489 = vrot.slane %v3488, 1
        %v3490 = vadd.f32 %v3488, %v3489
        %v3491 = vsel %vm1724, %v3480, 0.0
        %v3492 = vsel %vm1724, %v3481, 0.0
        %v3493 = vadd.f32 %v3491, %v3492
        %v3494 = vrot.slane %v3493, 4
        %v3495 = vadd.f32 %v3493, %v3494
        %v3496 = vrot.slane %v3495, 2
        %v3497 = vadd.f32 %v3495, %v3496
        %v3498 = vrot.slane %v3497, 1
        %v3499 = vadd.f32 %v3497, %v3498
        %v3502 = vsel %vm2312, %v3499, %v3490
        %s3504 = scalar_lea.vmem [#allocation9], 14
        %3505 = vst.msk [vmem:[%s3504] sm:$0x3] %vm1426, %v3502
        %v3506 = vld [vmem:[#allocation9] sm:$0x3]
        %v3507 = vld [vmem:[#allocation9 + $0x2] sm:$0x3]
        %v3508 = vld [vmem:[#allocation9 + $0x4] sm:$0x3]
        %v3509 = vld [vmem:[#allocation9 + $0x6] sm:$0x3]
        %v3510 = vld [vmem:[#allocation9 + $0x8] sm:$0x3]
        %v3511 = vld [vmem:[#allocation9 + $0xa] sm:$0x3]
        %v3512 = vld [vmem:[#allocation9 + $0xc] sm:$0x3]
        %v3513 = vld [vmem:[#allocation9 + $0xe] sm:$0x3]
        %v3514 = vld [vmem:[%s846] sm:$0x1]
        %v3516 = vlaneseq
        %v3517 = vshrl.u32 %v3516, 7
        %v3518 = vsub.s32 0, %v3517
        %v3519 = vrot.slane %v3514, %v3518
        %v3521 = vmul.f32 %v3519, %v1690
        %v3522 = vmul.f32 %v3519, %v1707
        %v3525 = vcombine.high %v3521, %v3521
        %v3527 = vunpack.c.l.s4 1983009808
        %v3528 = vunpack.c.0.s8 %v3527
        %v3529 = vlaneseq
        %v3530 = vshrl.u32 %v3529, 7
        %v3531 = vsub.s32 %v3528, %v3530
        %v3532 = vrot.slane %v3521, %v3531
        %v3534 = vunpack.c.l.s4 1983009808
        %v3535 = vunpack.c.0.s8 %v3534
        %v3536 = vlaneseq
        %v3537 = vshrl.u32 %v3536, 7
        %v3538 = vsub.s32 %v3535, %v3537
        %v3539 = vrot.slane %v3525, %v3538
        %v3540 = vcombine.high %v3532, %v3532
        %v3541 = vcombine.high %v3539, %v3539
        %v3542 = vcombine.high %v3522, %v3522
        %v3544 = vunpack.c.l.s4 1983009808
        %v3545 = vunpack.c.0.s8 %v3544
        %v3546 = vlaneseq
        %v3547 = vshrl.u32 %v3546, 7
        %v3548 = vsub.s32 %v3545, %v3547
        %v3549 = vrot.slane %v3522, %v3548
        %v3551 = vunpack.c.l.s4 1983009808
        %v3552 = vunpack.c.0.s8 %v3551
        %v3553 = vlaneseq
        %v3554 = vshrl.u32 %v3553, 7
        %v3555 = vsub.s32 %v3552, %v3554
        %v3556 = vrot.slane %v3542, %v3555
        %v3557 = vcombine.high %v3549, %v3549
        %v3558 = vcombine.high %v3556, %v3556
        %v3567 = vadd.f32 %v3506, %v3532
        %v3568 = vadd.f32 %v3507, %v3540
        %v3569 = vadd.f32 %v3508, %v3539
        %v3570 = vadd.f32 %v3509, %v3541
        %v3571 = vadd.f32 %v3510, %v3549
        %v3572 = vadd.f32 %v3511, %v3557
        %v3573 = vadd.f32 %v3512, %v3556
        %v3574 = vadd.f32 %v3513, %v3558
        %v3575 = vsub.f32 0.0, %v1420
        %v3576 = vsub.f32 0.0, %v1423
        %v3577 = vmul.f32 %v3575, 1.442695
        %v3578 = vpow.pop %v3577
        %v3579 = vmul.f32 %v3576, 1.442695
        %v3580 = vpow.pop %v3579
        %v3581 = vadd.f32 %v3578, 1.0
        %v3582 = vadd.f32 %v3580, 1.0
        %v3583 = vrcp.pop %v3581
        %v3584 = vrcp.pop %v3582
        %v3585 = vmul.f32 %v1420, %v3583
        %v3586 = vmul.f32 %v1423, %v3584
        %v3589 = vcombine.high %v3585, %v3585
        %v3591 = vunpack.c.l.s4 1983009808
        %v3592 = vunpack.c.0.s8 %v3591
        %v3593 = vlaneseq
        %v3594 = vshrl.u32 %v3593, 7
        %v3595 = vsub.s32 %v3592, %v3594
        %v3596 = vrot.slane %v3585, %v3595
        %v3598 = vunpack.c.l.s4 1983009808
        %v3599 = vunpack.c.0.s8 %v3598
        %v3600 = vlaneseq
        %v3601 = vshrl.u32 %v3600, 7
        %v3602 = vsub.s32 %v3599, %v3601
        %v3603 = vrot.slane %v3589, %v3602
        %v3604 = vcombine.high %v3596, %v3596
        %v3605 = vcombine.high %v3603, %v3603
        %v3606 = vcombine.high %v3586, %v3586
        %v3608 = vunpack.c.l.s4 1983009808
        %v3609 = vunpack.c.0.s8 %v3608
        %v3610 = vlaneseq
        %v3611 = vshrl.u32 %v3610, 7
        %v3612 = vsub.s32 %v3609, %v3611
        %v3613 = vrot.slane %v3586, %v3612
        %v3615 = vunpack.c.l.s4 1983009808
        %v3616 = vunpack.c.0.s8 %v3615
        %v3617 = vlaneseq
        %v3618 = vshrl.u32 %v3617, 7
        %v3619 = vsub.s32 %v3616, %v3618
        %v3620 = vrot.slane %v3606, %v3619
        %v3621 = vcombine.high %v3613, %v3613
        %v3622 = vcombine.high %v3620, %v3620
        %3623 = vrot.lane.b32.xlu0 %v3596, 64
        %v3624 = vpop.permute.xlu0 %3623
        %3625 = vrot.lane.b32.xlu0 %v3604, 64
        %v3626 = vpop.permute.xlu0 %3625
        %3627 = vrot.lane.b32.xlu0 %v3603, 64
        %v3628 = vpop.permute.xlu0 %3627
        %3629 = vrot.lane.b32.xlu0 %v3605, 64
        %v3630 = vpop.permute.xlu0 %3629
        %3631 = vrot.lane.b32.xlu0 %v3613, 64
        %v3632 = vpop.permute.xlu0 %3631
        %3633 = vrot.lane.b32.xlu0 %v3621, 64
        %v3634 = vpop.permute.xlu0 %3633
        %3635 = vrot.lane.b32.xlu0 %v3620, 64
        %v3636 = vpop.permute.xlu0 %3635
        %3637 = vrot.lane.b32.xlu0 %v3622, 64
        %v3638 = vpop.permute.xlu0 %3637
        %v3647 = vmul.f32 %v3567, %v3624
        %v3648 = vmul.f32 %v3568, %v3626
        %v3649 = vmul.f32 %v3569, %v3628
        %v3650 = vmul.f32 %v3570, %v3630
        %v3651 = vmul.f32 %v3571, %v3632
        %v3652 = vmul.f32 %v3572, %v3634
        %v3653 = vmul.f32 %v3573, %v3636
        %v3654 = vmul.f32 %v3574, %v3638
        %v3655 = vld [vmem:[%s855] sm:$0xf]
        %v3656 = vld [vmem:[%s855 + $0x4] sm:$0xf]
        %v3657 = vld [vmem:[%s855 + $0x8] sm:$0xf]
        %v3658 = vld [vmem:[%s855 + $0xc] sm:$0xf]
        %v3667 = vcombine.low %v3647, %v3648
        %v3668 = vcombine.low %v3649, %v3650
        %v3670 = vunpack.c.l.s4 1983009808
        %v3671 = vunpack.c.0.s8 %v3670
        %v3672 = vlaneseq
        %v3673 = vshrl.u32 %v3672, 7
        %v3674 = vsub.s32 %v3671, %v3673
        %v3675 = vrot.slane %v3667, %v3674
        %v3677 = vunpack.c.l.s4 1983009808
        %v3678 = vunpack.c.0.s8 %v3677
        %v3679 = vlaneseq
        %v3680 = vshrl.u32 %v3679, 7
        %v3681 = vsub.s32 %v3678, %v3680
        %v3682 = vrot.slane %v3668, %v3681
        %v3683 = vcombine.low %v3675, %v3682
        %v3684 = vcombine.low %v3651, %v3652
        %v3685 = vcombine.low %v3653, %v3654
        %v3687 = vunpack.c.l.s4 1983009808
        %v3688 = vunpack.c.0.s8 %v3687
        %v3689 = vlaneseq
        %v3690 = vshrl.u32 %v3689, 7
        %v3691 = vsub.s32 %v3688, %v3690
        %v3692 = vrot.slane %v3684, %v3691
        %v3694 = vunpack.c.l.s4 1983009808
        %v3695 = vunpack.c.0.s8 %v3694
        %v3696 = vlaneseq
        %v3697 = vshrl.u32 %v3696, 7
        %v3698 = vsub.s32 %v3695, %v3697
        %v3699 = vrot.slane %v3685, %v3698
        %v3700 = vcombine.low %v3692, %v3699
        %v3703 = vpack.c.bf16 %v3700, %v3683
        %v3708 = vunpack.c.l.b16 %v3655
        %v3709 = vunpack.c.l.b16 %v3656
        %v3710 = vunpack.c.l.b16 %v3657
        %v3711 = vunpack.c.l.b16 %v3658
        %v3712 = vpack.c.b16 %v3709, %v3708
        %v3713 = vpack.c.b16 %v3711, %v3710
        %v3715 = vsel %vm1724, %v3703, 0
        %v3718 = vsel %vm1724, %v3712, 0
        %v3721 = vsel %vm1724, %v3713, 0
        %3723 = vmatprep.subr.bf16.mxu0 0
        %3724 = vmatpush1.bf16.xpose.msra.mxu0 %v3718
        %3725 = vmatprep.subr.bf16.mxu0 0
        %3726 = vmatpush1.bf16.xpose.msra.mxu0 %v3721
        %3727 = vmatprep.subr.bf16.mxu0 0
        %3728 = vmatpush1.bf16.xpose.msra.mxu0 0
        %3729 = vmatprep.subr.bf16.mxu0 0
        %3730 = vmatpush1.bf16.xpose.msra.mxu0 0
        %3731 = vmatprep.subr.bf16.mxu0 0
        %3732 = vmatpush1.bf16.xpose.msra.mxu0 0
        %3733 = vmatprep.subr.bf16.mxu0 0
        %3734 = vmatpush1.bf16.xpose.msra.mxu0 0
        %3735 = vmatprep.subr.bf16.mxu0 0
        %3736 = vmatpush1.bf16.xpose.msra.mxu0 0
        %3737 = vmatprep.subr.bf16.mxu0 0
        %3738 = vmatpush1.bf16.xpose.msra.mxu0 0
        %3739 = vmatprep.subr.bf16.mxu0 0
        %3740 = vmatpush1.bf16.xpose.msra.mxu0 0
        %3741 = vmatprep.subr.bf16.mxu0 0
        %3742 = vmatpush1.bf16.xpose.msra.mxu0 0
        %3743 = vmatprep.subr.bf16.mxu0 0
        %3744 = vmatpush1.bf16.xpose.msra.mxu0 0
        %3745 = vmatprep.subr.bf16.mxu0 0
        %3746 = vmatpush1.bf16.xpose.msra.mxu0 0
        %3747 = vmatprep.subr.bf16.mxu0 0
        %3748 = vmatpush1.bf16.xpose.msra.mxu0 0
        %3749 = vmatprep.subr.bf16.mxu0 0
        %3750 = vmatpush1.bf16.xpose.msra.mxu0 0
        %3751 = vmatprep.subr.bf16.mxu0 0
        %3752 = vmatpush1.bf16.xpose.msra.mxu0 0
        %3753 = vmatprep.subr.bf16.mxu0 0
        %3754 = vmatpush1.bf16.xpose.msra.mxu0 0
        %3755 = vmatprep.mubr.bf16.mxu0 0
        %3756 = vmatmul.mubr.bf16.gmra.mrb[0].mxu0 %v3715
        %v3757 = vpop.f32.mrb[0].mxu0
        %v3758 = vadd.f32 0.0, %v3757
        %v3759 = vpop.f32.mrb[0].mxu0
        %v3760 = vpop.f32.mrb[0].mxu0
        %v3761 = vadd.f32 0.0, %v3760
        %v3762 = vpop.f32.mrb[0].mxu0
        %3763 = vdwg.mxu0
        %v3766 = vcombine.high %v3758, %v3758
        %v3768 = vunpack.c.l.s4 1983009808
        %v3769 = vunpack.c.0.s8 %v3768
        %v3770 = vlaneseq
        %v3771 = vshrl.u32 %v3770, 7
        %v3772 = vsub.s32 %v3769, %v3771
        %v3773 = vrot.slane %v3758, %v3772
        %v3775 = vunpack.c.l.s4 1983009808
        %v3776 = vunpack.c.0.s8 %v3775
        %v3777 = vlaneseq
        %v3778 = vshrl.u32 %v3777, 7
        %v3779 = vsub.s32 %v3776, %v3778
        %v3780 = vrot.slane %v3766, %v3779
        %v3781 = vcombine.high %v3773, %v3773
        %v3782 = vcombine.high %v3780, %v3780
        %v3783 = vcombine.high %v3761, %v3761
        %v3785 = vunpack.c.l.s4 1983009808
        %v3786 = vunpack.c.0.s8 %v3785
        %v3787 = vlaneseq
        %v3788 = vshrl.u32 %v3787, 7
        %v3789 = vsub.s32 %v3786, %v3788
        %v3790 = vrot.slane %v3761, %v3789
        %v3792 = vunpack.c.l.s4 1983009808
        %v3793 = vunpack.c.0.s8 %v3792
        %v3794 = vlaneseq
        %v3795 = vshrl.u32 %v3794, 7
        %v3796 = vsub.s32 %v3793, %v3795
        %v3797 = vrot.slane %v3783, %v3796
        %v3798 = vcombine.high %v3790, %v3790
        %v3799 = vcombine.high %v3797, %v3797
        %p3808 = scmp.ne.s32.totalorder %s52, 1
        // Predicated region
        $region153: #{tpu_custom_call.1} parent=83 // pred_check
          %p3809 = pneg %p3808
        $region154: #{tpu_custom_call.1} parent=83 // pred_check_branch
          %3811 = sbr.rel (%p3809) target = $region156
        $region155: #{tpu_custom_call.1} parent=83 // pred_region
          %3812 = vst.msk [vmem:[#allocation2] sm:$0x3] %vm1167, %v3773
          %3813 = vst.msk [vmem:[#allocation2 + $0x2] sm:$0x3] %vm1167, %v3781
          %3814 = vst.msk [vmem:[#allocation2 + $0x4] sm:$0x3] %vm1167, %v3780
          %3815 = vst.msk [vmem:[#allocation2 + $0x6] sm:$0x3] %vm1167, %v3782
          %3816 = vst.msk [vmem:[#allocation2 + $0x8] sm:$0x3] %vm1167, %v3790
          %3817 = vst.msk [vmem:[#allocation2 + $0xa] sm:$0x3] %vm1167, %v3798
          %3818 = vst.msk [vmem:[#allocation2 + $0xc] sm:$0x3] %vm1167, %v3797
          %3819 = vst.msk [vmem:[#allocation2 + $0xe] sm:$0x3] %vm1167, %v3799
        $region156: #{tpu_custom_call.1} parent=83 // pred_fallthru
          _
        %p3820 = scmp.eq.s32.totalorder %s52, 1
        // Predicated region
        $region157: #{tpu_custom_call.1} parent=83 // pred_check
          %p3821 = pneg %p3820
        $region158: #{tpu_custom_call.1} parent=83 // pred_check_branch
          %3823 = sbr.rel (%p3821) target = $region160
        $region159: #{tpu_custom_call.1} parent=83 // pred_region
          %v3824 = vld [vmem:[#allocation3] sm:$0x3]
          %v3825 = vld [vmem:[#allocation3 + $0x2] sm:$0x3]
          %v3826 = vld [vmem:[#allocation3 + $0x4] sm:$0x3]
          %v3827 = vld [vmem:[#allocation3 + $0x6] sm:$0x3]
          %v3828 = vld [vmem:[#allocation3 + $0x8] sm:$0x3]
          %v3829 = vld [vmem:[#allocation3 + $0xa] sm:$0x3]
          %v3830 = vld [vmem:[#allocation3 + $0xc] sm:$0x3]
          %v3831 = vld [vmem:[#allocation3 + $0xe] sm:$0x3]
          %v3832 = vadd.f32 %v3773, %v3824
          %v3833 = vadd.f32 %v3781, %v3825
          %v3834 = vadd.f32 %v3780, %v3826
          %v3835 = vadd.f32 %v3782, %v3827
          %v3836 = vadd.f32 %v3790, %v3828
          %v3837 = vadd.f32 %v3798, %v3829
          %v3838 = vadd.f32 %v3797, %v3830
          %v3839 = vadd.f32 %v3799, %v3831
          %v3840 = vld [vmem:[#allocation31] sm:$0x1]
          %v3841 = vmul.f32 %v3832, %v3832
          %v3842 = vmul.f32 %v3833, %v3833
          %v3843 = vmul.f32 %v3834, %v3834
          %v3844 = vmul.f32 %v3835, %v3835
          %v3845 = vmul.f32 %v3836, %v3836
          %v3846 = vmul.f32 %v3837, %v3837
          %v3847 = vmul.f32 %v3838, %v3838
          %v3848 = vmul.f32 %v3839, %v3839
          %v3849 = vsel %vm1167, %v3841, 0.0
          %3850 = vadd.xlane.f32.xlu0 %v3849
          %v3851 = vpop.xlane.xlu0 %3850
          %v3852 = vsel %vm1167, %v3842, 0.0
          %3853 = vadd.xlane.f32.xlu0 %v3852
          %v3854 = vpop.xlane.xlu0 %3853
          %v3855 = vsel %vm1167, %v3843, 0.0
          %3856 = vadd.xlane.f32.xlu0 %v3855
          %v3857 = vpop.xlane.xlu0 %3856
          %v3858 = vsel %vm1167, %v3844, 0.0
          %3859 = vadd.xlane.f32.xlu0 %v3858
          %v3860 = vpop.xlane.xlu0 %3859
          %v3861 = vsel %vm1167, %v3845, 0.0
          %3862 = vadd.xlane.f32.xlu0 %v3861
          %v3863 = vpop.xlane.xlu0 %3862
          %v3864 = vsel %vm1167, %v3846, 0.0
          %3865 = vadd.xlane.f32.xlu0 %v3864
          %v3866 = vpop.xlane.xlu0 %3865
          %v3867 = vsel %vm1167, %v3847, 0.0
          %3868 = vadd.xlane.f32.xlu0 %v3867
          %v3869 = vpop.xlane.xlu0 %3868
          %v3870 = vsel %vm1167, %v3848, 0.0
          %3871 = vadd.xlane.f32.xlu0 %v3870
          %v3872 = vpop.xlane.xlu0 %3871
          %v3873 = vmul.f32 %v3851, %v1209
          %v3874 = vmul.f32 %v3854, %v1209
          %v3875 = vmul.f32 %v3857, %v1209
          %v3876 = vmul.f32 %v3860, %v1209
          %v3877 = vmul.f32 %v3863, %v1209
          %v3878 = vmul.f32 %v3866, %v1209
          %v3879 = vmul.f32 %v3869, %v1209
          %v3880 = vmul.f32 %v3872, %v1209
          %v3881 = vadd.f32 %v3873, 1e-05
          %v3882 = vadd.f32 %v3874, 1e-05
          %v3883 = vadd.f32 %v3875, 1e-05
          %v3884 = vadd.f32 %v3876, 1e-05
          %v3885 = vadd.f32 %v3877, 1e-05
          %v3886 = vadd.f32 %v3878, 1e-05
          %v3887 = vadd.f32 %v3879, 1e-05
          %v3888 = vadd.f32 %v3880, 1e-05
          %v3889 = vrsqrt.pop %v3881
          %v3890 = vrsqrt.pop %v3882
          %v3891 = vrsqrt.pop %v3883
          %v3892 = vrsqrt.pop %v3884
          %v3893 = vrsqrt.pop %v3885
          %v3894 = vrsqrt.pop %v3886
          %v3895 = vrsqrt.pop %v3887
          %v3896 = vrsqrt.pop %v3888
          %v3897 = vmul.f32 %v3832, %v3889
          %v3898 = vmul.f32 %v3833, %v3890
          %v3899 = vmul.f32 %v3834, %v3891
          %v3900 = vmul.f32 %v3835, %v3892
          %v3901 = vmul.f32 %v3836, %v3893
          %v3902 = vmul.f32 %v3837, %v3894
          %v3903 = vmul.f32 %v3838, %v3895
          %v3904 = vmul.f32 %v3839, %v3896
          %v3906 = vlaneseq
          %v3907 = vshrl.u32 %v3906, 7
          %v3908 = vsub.s32 0, %v3907
          %v3909 = vrot.slane %v3840, %v3908
          %v3911 = vmul.f32 %v3897, %v3909
          %v3912 = vmul.f32 %v3898, %v3909
          %v3913 = vmul.f32 %v3899, %v3909
          %v3914 = vmul.f32 %v3900, %v3909
          %v3915 = vmul.f32 %v3901, %v3909
          %v3916 = vmul.f32 %v3902, %v3909
          %v3917 = vmul.f32 %v3903, %v3909
          %v3918 = vmul.f32 %v3904, %v3909
          %v3919 = vld [vmem:[#allocation33] sm:$0xf]
          %v3920 = vld [vmem:[#allocation33 + $0x4] sm:$0xf]
          %v3929 = vcombine.low %v3911, %v3912
          %v3930 = vcombine.low %v3913, %v3914
          %v3932 = vunpack.c.l.s4 1983009808
          %v3933 = vunpack.c.0.s8 %v3932
          %v3934 = vlaneseq
          %v3935 = vshrl.u32 %v3934, 7
          %v3936 = vsub.s32 %v3933, %v3935
          %v3937 = vrot.slane %v3929, %v3936
          %v3939 = vunpack.c.l.s4 1983009808
          %v3940 = vunpack.c.0.s8 %v3939
          %v3941 = vlaneseq
          %v3942 = vshrl.u32 %v3941, 7
          %v3943 = vsub.s32 %v3940, %v3942
          %v3944 = vrot.slane %v3930, %v3943
          %v3945 = vcombine.low %v3937, %v3944
          %v3946 = vcombine.low %v3915, %v3916
          %v3947 = vcombine.low %v3917, %v3918
          %v3949 = vunpack.c.l.s4 1983009808
          %v3950 = vunpack.c.0.s8 %v3949
          %v3951 = vlaneseq
          %v3952 = vshrl.u32 %v3951, 7
          %v3953 = vsub.s32 %v3950, %v3952
          %v3954 = vrot.slane %v3946, %v3953
          %v3956 = vunpack.c.l.s4 1983009808
          %v3957 = vunpack.c.0.s8 %v3956
          %v3958 = vlaneseq
          %v3959 = vshrl.u32 %v3958, 7
          %v3960 = vsub.s32 %v3957, %v3959
          %v3961 = vrot.slane %v3947, %v3960
          %v3962 = vcombine.low %v3954, %v3961
          %v3965 = vpack.c.bf16 %v3962, %v3945
          %v3966 = vld [vmem:[#allocation34] sm:$0x1]
          %v3968 = vlaneseq
          %v3969 = vshrl.u32 %v3968, 7
          %v3970 = vsub.s32 0, %v3969
          %v3971 = vrot.slane %v3966, %v3970
          %v3975 = vunpack.c.l.b16 %v3919
          %v3976 = vunpack.c.l.b16 %v3920
          %v3977 = vpack.c.b16 %v3976, %v3975
          %v3979 = vsel %vm1357, %v3965, 0
          %v3982 = vsel %vm1357, %v3977, 0
          %3984 = vmatprep.subr.bf16.mxu0 0
          %3985 = vmatpush1.bf16.xpose.msra.mxu0 %v3982
          %3986 = vmatprep.subr.bf16.mxu0 0
          %3987 = vmatpush1.bf16.xpose.msra.mxu0 0
          %3988 = vmatprep.subr.bf16.mxu0 0
          %3989 = vmatpush1.bf16.xpose.msra.mxu0 0
          %3990 = vmatprep.subr.bf16.mxu0 0
          %3991 = vmatpush1.bf16.xpose.msra.mxu0 0
          %3992 = vmatprep.subr.bf16.mxu0 0
          %3993 = vmatpush1.bf16.xpose.msra.mxu0 0
          %3994 = vmatprep.subr.bf16.mxu0 0
          %3995 = vmatpush1.bf16.xpose.msra.mxu0 0
          %3996 = vmatprep.subr.bf16.mxu0 0
          %3997 = vmatpush1.bf16.xpose.msra.mxu0 0
          %3998 = vmatprep.subr.bf16.mxu0 0
          %3999 = vmatpush1.bf16.xpose.msra.mxu0 0
          %4000 = vmatprep.subr.bf16.mxu0 0
          %4001 = vmatpush1.bf16.xpose.msra.mxu0 0
          %4002 = vmatprep.subr.bf16.mxu0 0
          %4003 = vmatpush1.bf16.xpose.msra.mxu0 0
          %4004 = vmatprep.subr.bf16.mxu0 0
          %4005 = vmatpush1.bf16.xpose.msra.mxu0 0
          %4006 = vmatprep.subr.bf16.mxu0 0
          %4007 = vmatpush1.bf16.xpose.msra.mxu0 0
          %4008 = vmatprep.subr.bf16.mxu0 0
          %4009 = vmatpush1.bf16.xpose.msra.mxu0 0
          %4010 = vmatprep.subr.bf16.mxu0 0
          %4011 = vmatpush1.bf16.xpose.msra.mxu0 0
          %4012 = vmatprep.subr.bf16.mxu0 0
          %4013 = vmatpush1.bf16.xpose.msra.mxu0 0
          %4014 = vmatprep.subr.bf16.mxu0 0
          %4015 = vmatpush1.bf16.xpose.msra.mxu0 0
          %4016 = vmatprep.mubr.bf16.mxu0 0
          %4017 = vmatmul.mubr.bf16.gmra.mrb[0].mxu0 %v3979
          %v4018 = vpop.f32.mrb[0].mxu0
          %v4019 = vadd.f32 %v3971, %v4018
          %v4020 = vpop.f32.mrb[0].mxu0
          %v4021 = vpop.f32.mrb[0].mxu0
          %v4022 = vadd.f32 %v3971, %v4021
          %v4023 = vpop.f32.mrb[0].mxu0
          %4024 = vdwg.mxu0
          %v4027 = vcombine.high %v4019, %v4019
          %v4029 = vunpack.c.l.s4 1983009808
          %v4030 = vunpack.c.0.s8 %v4029
          %v4031 = vlaneseq
          %v4032 = vshrl.u32 %v4031, 7
          %v4033 = vsub.s32 %v4030, %v4032
          %v4034 = vrot.slane %v4019, %v4033
          %v4036 = vunpack.c.l.s4 1983009808
          %v4037 = vunpack.c.0.s8 %v4036
          %v4038 = vlaneseq
          %v4039 = vshrl.u32 %v4038, 7
          %v4040 = vsub.s32 %v4037, %v4039
          %v4041 = vrot.slane %v4027, %v4040
          %v4042 = vcombine.high %v4034, %v4034
          %v4043 = vcombine.high %v4041, %v4041
          %v4044 = vcombine.high %v4022, %v4022
          %v4046 = vunpack.c.l.s4 1983009808
          %v4047 = vunpack.c.0.s8 %v4046
          %v4048 = vlaneseq
          %v4049 = vshrl.u32 %v4048, 7
          %v4050 = vsub.s32 %v4047, %v4049
          %v4051 = vrot.slane %v4022, %v4050
          %v4053 = vunpack.c.l.s4 1983009808
          %v4054 = vunpack.c.0.s8 %v4053
          %v4055 = vlaneseq
          %v4056 = vshrl.u32 %v4055, 7
          %v4057 = vsub.s32 %v4054, %v4056
          %v4058 = vrot.slane %v4044, %v4057
          %v4059 = vcombine.high %v4051, %v4051
          %v4060 = vcombine.high %v4058, %v4058
          %4069 = vst.msk [vmem:[#allocation36] sm:$0x3] %vm2107, %v4034
          %4070 = vst.msk [vmem:[#allocation36 + $0x2] sm:$0x3] %vm2107, %v4042
          %4071 = vst.msk [vmem:[#allocation36 + $0x4] sm:$0x3] %vm2107, %v4041
          %4072 = vst.msk [vmem:[#allocation36 + $0x6] sm:$0x3] %vm2107, %v4043
          %4073 = vst.msk [vmem:[#allocation36 + $0x8] sm:$0x3] %vm2107, %v4051
          %4074 = vst.msk [vmem:[#allocation36 + $0xa] sm:$0x3] %vm2107, %v4059
          %4075 = vst.msk [vmem:[#allocation36 + $0xc] sm:$0x3] %vm2107, %v4058
          %4076 = vst.msk [vmem:[#allocation36 + $0xe] sm:$0x3] %vm2107, %v4060
        $region160: #{tpu_custom_call.1} parent=83 // pred_fallthru
          _
        // Predicated region
        $region161: #{tpu_custom_call.1} parent=83 // pred_check
          %p4077 = pneg %p468
        $region162: #{tpu_custom_call.1} parent=83 // pred_check_branch
          %4079 = sbr.rel (%p4077) target = $region164
        $region163: #{tpu_custom_call.1} parent=83 // pred_region
          %s4081 = ssub.s32 256, 256
          %4082 = vsyncadd [#allocation12], %s4081
          %s4083 = smul.addr %s51, 32
          %s4084 = scalar_lea.hbm %s16, %s4083
          %s4085 = sshll.u32 [#allocation36], 4
          %s4086 = int_to_ptr.vmem [resolvable:$true] %s4085
          %4091 = dma.vmem_to_hbm [thread:$0]  %s4086, 256, %s4084, [#allocation12], 32, 32, 2
        $region164: #{tpu_custom_call.1} parent=83 // pred_fallthru
          _
        // Predicated region
        $region165: #{tpu_custom_call.1} parent=83 // pred_check
          %p4092 = pneg %p468
        $region166: #{tpu_custom_call.1} parent=83 // pred_check_branch
          %4094 = sbr.rel (%p4092) target = $region168
        $region167: #{tpu_custom_call.1} parent=83 // pred_region
          %4095 = dma.done [#allocation12], 256
        $region168: #{tpu_custom_call.1} parent=83 // pred_fallthru
          _
      $region84: #{tpu_custom_call.1} parent=5 // pred_fallthru
        _
      %p4096 = scmp.le.s32.totalorder 2, %s42
      // Predicated region
      $region169: #{tpu_custom_call.1} parent=5 // pred_check
        %p4097 = pneg %p4096
      $region170: #{tpu_custom_call.1} parent=5 // pred_check_branch
        %4099 = sbr.rel (%p4097) target = $region172
      $region171: #{tpu_custom_call.1} parent=5 // pred_region
        %s4100 = ssub.s32 %s42, 2
      $region172: #{tpu_custom_call.1} parent=5 // pred_fallthru
        _
    $region6: #{tpu_custom_call.1} parent=1 // loop_footer
      %s46 = sadd.s32 1, %s42
    $region7: #{tpu_custom_call.1} parent=1 // loop_footer_branch
      %41 = sbr.rel target = $region3
    $region8: #{tpu_custom_call.1} parent=1 // loop_exit
      _
    %4101 = vsyncpa [#allocation11], 1
    %s4102 = scalar_lea.sflag [#allocation11], 1
    %4103 = vsyncpa %s4102, 1
    %4104 = vsyncpa [#allocation14], 1
    %4105 = vsyncpa [#allocation17], 1
    %s4106 = scalar_lea.sflag [#allocation17], 1
    %4107 = vsyncpa %s4106, 1
    %4108 = vsyncpa [#allocation20], 1
    %s4109 = scalar_lea.sflag [#allocation20], 1
    %4110 = vsyncpa %s4109, 1
    %4111 = vsyncpa [#allocation23], 1
    %s4112 = scalar_lea.sflag [#allocation23], 1
    %4113 = vsyncpa %s4112, 1
    %4114 = vsyncpa [#allocation26], 1
    %s4115 = scalar_lea.sflag [#allocation26], 1
    %4116 = vsyncpa %s4115, 1
    %4117 = vsyncpa [#allocation29], 1
    %s4118 = scalar_lea.sflag [#allocation29], 1
    %4119 = vsyncpa %s4118, 1
    %4120 = vsyncpa [#allocation32], 1
    %4121 = vsyncpa [#allocation35], 1
    %4122 = vsyncpa [#allocation12], 1
    %s4123 = scalar_lea.sflag [#allocation12], 1
    %4124 = vsyncpa %s4123, 1

</llo_original>
